<compile_context>
chip_gen: v5e
topology: v5e:2x2
jax: 0.10.0
libtpu: 0.0.40
codegen_flags: <defaults>
</compile_context>

<pallas_src>
import jax
import jax.numpy as jnp
from jax.experimental import pallas as pl
from jax.experimental.pallas import tpu as pltpu

K = 3              # Tnet k (output is k x k transform)
N_POINTS = 1024    # MaxPool1d(kernel_size=1024) implies 1024 points per cloud
BATCH = 2
CHUNK = 256        # points processed per grid step (1024 % 256 == 0)


# ----------------------------- Pallas kernel --------------------------------
def tnet_kernel(x_ref,                      # (1, CHUNK, 3)   f32
                w1, b1,                     # (3,64) f32, (1,64) f32
                w2, b2,                     # (64,128) bf16, (1,128) f32
                w3, b3,                     # (128,1024) bf16, (1,1024) f32
                w4_hbm, b4,                 # HBM (1024,512) f32, (1,512) f32
                w5_hbm, b5,                 # HBM (512,256) f32, (1,256) f32
                w6, b6,                     # (256,9) f32, (1,9) f32
                eye_ref,                    # (1,9) f32
                o_ref,                      # (1,1,9) f32 output block
                gmax_ref,                   # VMEM (1,1024) f32 running max
                w4_vmem, w5_vmem,           # VMEM staging for w4 / w5
                dma_sems):                  # DMA semaphores (2,)
    c = pl.program_id(1)
    nc = pl.num_programs(1)

    @pl.when(c == 0)
    def _start():
        # Kick off the post-pool weight DMA; it overlaps with the pointwise
        # MLP over all chunks of this batch element.
        pltpu.make_async_copy(w4_hbm, w4_vmem, dma_sems.at[0]).start()
        pltpu.make_async_copy(w5_hbm, w5_vmem, dma_sems.at[1]).start()
        gmax_ref[...] = jnp.full_like(gmax_ref, -jnp.inf)

    xb = x_ref[0]                                                  # (CHUNK, 3)

    # layer 1: 3 -> 64. K=3 contraction -> VPU broadcast-FMAs, not the MXU.
    h = (xb[:, 0:1] * w1[0:1, :]
         + xb[:, 1:2] * w1[1:2, :]
         + xb[:, 2:3] * w1[2:3, :]) + b1[...]
    h = jnp.maximum(h, 0.0)                                        # (CHUNK, 64)

    # layers 2-3: bf16 operands on the MXU, f32 accumulation.
    h = jnp.dot(h.astype(jnp.bfloat16), w2[...],
                preferred_element_type=jnp.float32) + b2[...]
    h = jnp.maximum(h, 0.0)                                        # (CHUNK, 128)
    h = jnp.dot(h.astype(jnp.bfloat16), w3[...],
                preferred_element_type=jnp.float32) + b3[...]
    h = jnp.maximum(h, 0.0)                                        # (CHUNK, 1024)

    # fused global max-pool (MaxPool1d(1024)): running max over point chunks.
    gmax_ref[...] = jnp.maximum(gmax_ref[...],
                                jnp.max(h, axis=0, keepdims=True))

    @pl.when(c == nc - 1)
    def _finish():
        # Post-pool MLP: 1024 -> 512 -> 256 -> 9, then + flattened identity.
        pltpu.make_async_copy(w4_hbm, w4_vmem, dma_sems.at[0]).wait()
        pltpu.make_async_copy(w5_hbm, w5_vmem, dma_sems.at[1]).wait()
        g = gmax_ref[...]                                          # (1, 1024)
        m = jnp.dot(g, w4_vmem[...],
                    preferred_element_type=jnp.float32) + b4[...]
        m = jnp.maximum(m, 0.0)                                    # (1, 512)
        m = jnp.dot(m, w5_vmem[...],
                    preferred_element_type=jnp.float32) + b5[...]
        m = jnp.maximum(m, 0.0)                                    # (1, 256)
        out = jnp.dot(m, w6[...],
                      preferred_element_type=jnp.float32) + b6[...]
        o_ref[0] = out + eye_ref[...]                              # (1, 9)


# ------------------------------ wrapper --------------------------------------
def _full_spec(arr):
    zeros = (0,) * arr.ndim
    return pl.BlockSpec(arr.shape, lambda b, c: zeros)


def tnet_pallas(x_bcn, params, *, chunk=CHUNK):
    """x_bcn: (B, 3, N) float32 (PyTorch NCW layout). Returns (B, 3, 3)."""
    (w1, b1), (w2, b2), (w3, b3), (w4, b4), (w5, b5), (w6, b6) = params
    B, C, N = x_bcn.shape
    assert C == 3 and N % chunk == 0, (C, N, chunk)

    # channels-last for the pointwise MLP; the transpose is a tiny one-off.
    x_bnc = jnp.transpose(x_bcn, (0, 2, 1)).astype(jnp.float32)    # (B, N, 3)

    # bf16 weights for the two big MXU layers (also halves their DMA / VMEM).
    w2b = w2.astype(jnp.bfloat16)
    w3b = w3.astype(jnp.bfloat16)

    eye_flat = jnp.eye(K, dtype=jnp.float32).reshape(1, K * K)
    nc = N // chunk

    in_specs = [
        pl.BlockSpec((1, chunk, 3), lambda b, c: (b, c, 0)),       # x chunk
        _full_spec(w1), _full_spec(b1),
        _full_spec(w2b), _full_spec(b2),
        _full_spec(w3b), _full_spec(b3),
        pl.BlockSpec(memory_space=pl.ANY),                         # w4 (HBM)
        _full_spec(b4),
        pl.BlockSpec(memory_space=pl.ANY),                         # w5 (HBM)
        _full_spec(b5),
        _full_spec(w6), _full_spec(b6),
        _full_spec(eye_flat),
    ]

    out9 = pl.pallas_call(
        tnet_kernel,
        out_shape=jax.ShapeDtypeStruct((B, 1, K * K), jnp.float32),
        grid_spec=pltpu.PrefetchScalarGridSpec(
            num_scalar_prefetch=0,
            grid=(B, nc),
            in_specs=in_specs,
            out_specs=pl.BlockSpec((1, 1, K * K), lambda b, c: (b, 0, 0)),
            scratch_shapes=[
                pltpu.VMEM((1, w3.shape[1]), jnp.float32),   # running max (1,1024)
                pltpu.VMEM(w4.shape, jnp.float32),           # staged w4
                pltpu.VMEM(w5.shape, jnp.float32),           # staged w5
                pltpu.SemaphoreType.DMA((2,)),
            ]),
        compiler_params=pltpu.CompilerParams(
            dimension_semantics=("parallel", "arbitrary"),   # batch across TCs
            vmem_limit_bytes=32 * 1024 * 1024),              # v7x-safe (<= 64 MiB)
    )(x_bnc, w1, b1, w2b, b2, w3b, b3, w4, b4, w5, b5, w6, b6, eye_flat)

    return out9.reshape(B, K, K)


# --------------------------- parameter setup ---------------------------------
def _fold_bn(w, b, gamma, beta, mean, var, eps=1e-5):
    scale = gamma / jnp.sqrt(var + eps)
    return w * scale[None, :], (b - mean) * scale + beta


def _layer(key, cin, cout, with_bn=True):
    k1, k2, k3, k4, k5, k6 = jax.random.split(key, 6)
    w = jax.random.normal(k1, (cin, cout), jnp.float32) / jnp.sqrt(float(cin))
    b = 0.05 * jax.random.normal(k2, (cout,), jnp.float32)
    if with_bn:
        gamma = 1.0 + 0.1 * jax.random.normal(k3, (cout,), jnp.float32)
        beta = 0.1 * jax.random.normal(k4, (cout,), jnp.float32)
        mean = 0.1 * jax.random.normal(k5, (cout,), jnp.float32)
        var = 0.5 + jax.random.uniform(k6, (cout,), jnp.float32)
        w, b = _fold_bn(w, b, gamma, beta, mean, var)
    return w, b.reshape(1, cout)


def init_params(key):
    keys = jax.random.split(key, 6)
    dims = [(3, 64), (64, 128), (128, 1024), (1024, 512), (512, 256)]
    params = [_layer(k, cin, cout, with_bn=True)
              for k, (cin, cout) in zip(keys[:5], dims)]
    params.append(_layer(keys[5], 256, K * K, with_bn=False))  # final Linear
    return params


# ----------------------------- pure-JAX reference ----------------------------
def tnet_ref(x_bcn, params):
    (w1, b1), (w2, b2), (w3, b3), (w4, b4), (w5, b5), (w6, b6) = params
    x = jnp.transpose(x_bcn, (0, 2, 1))                        # (B, N, 3)
    hp = jax.lax.Precision.HIGHEST
    h = jax.nn.relu(jnp.matmul(x, w1, precision=hp) + b1)
    h = jax.nn.relu(jnp.matmul(h, w2, precision=hp) + b2)
    h = jax.nn.relu(jnp.matmul(h, w3, precision=hp) + b3)
    g = jnp.max(h, axis=1)                                     # (B, 1024)
    m = jax.nn.relu(jnp.matmul(g, w4, precision=hp) + b4)
    m = jax.nn.relu(jnp.matmul(m, w5, precision=hp) + b5)
    o = jnp.matmul(m, w6, precision=hp) + b6
    return o.reshape(-1, K, K) + jnp.eye(K, dtype=jnp.float32)[None]


# --------------------------------- main ---------------------------------------
if __name__ == "__main__":
    key = jax.random.PRNGKey(0)
    kx, kp = jax.random.split(key)

    # PyTorch-layout input: (B, C=3, N=1024) point cloud
    x = jax.random.normal(kx, (BATCH, 3, N_POINTS), jnp.float32)
    params = init_params(kp)

    out = jax.block_until_ready(tnet_pallas(x, params))
    ref = jax.block_until_ready(tnet_ref(x, params))

    assert out.shape == (BATCH, K, K), out.shape
    assert bool(jnp.all(jnp.isfinite(out)))
    max_err = float(jnp.max(jnp.abs(out - ref)))
    # Layers 2/3 use bf16 MXU operands (f32 accumulate) vs an f32 HIGHEST
    # reference; 5e-2 tolerance absorbs the bf16 rounding.
    assert bool(jnp.allclose(out, ref, rtol=5e-2, atol=5e-2)), max_err

    print("KERNEL_OK")
</pallas_src>

<mosaic_0001>
module attributes {stable_mosaic.version = 11 : i64} {
  func.func @tnet_kernel(%arg0: i32, %arg1: i32, %arg2: memref<1x256x3xf32, #tpu.memory_space<vmem>>, %arg3: memref<3x64xf32, #tpu.memory_space<vmem>>, %arg4: memref<1x64xf32, #tpu.memory_space<vmem>>, %arg5: memref<64x128xbf16, #tpu.memory_space<vmem>>, %arg6: memref<1x128xf32, #tpu.memory_space<vmem>>, %arg7: memref<128x1024xbf16, #tpu.memory_space<vmem>>, %arg8: memref<1x1024xf32, #tpu.memory_space<vmem>>, %arg9: memref<1024x512xf32, #tpu.memory_space<any>>, %arg10: memref<1x512xf32, #tpu.memory_space<vmem>>, %arg11: memref<512x256xf32, #tpu.memory_space<any>>, %arg12: memref<1x256xf32, #tpu.memory_space<vmem>>, %arg13: memref<256x9xf32, #tpu.memory_space<vmem>>, %arg14: memref<1x9xf32, #tpu.memory_space<vmem>>, %arg15: memref<1x9xf32, #tpu.memory_space<vmem>>, %arg16: memref<1x1x9xf32, #tpu.memory_space<vmem>>, %arg17: memref<1x1024xf32, #tpu.memory_space<vmem>>, %arg18: memref<1024x512xf32, #tpu.memory_space<vmem>>, %arg19: memref<512x256xf32, #tpu.memory_space<vmem>>, %arg20: memref<2x!tpu.dma_semaphore, #tpu.memory_space<semaphore_mem>>) attributes {dimension_semantics = [#tpu.dimension_semantics<parallel>, #tpu.dimension_semantics<arbitrary>], iteration_bounds = array<i64: 2, 4>, scalar_prefetch = 0 : i64, scratch_operands = 4 : i64, tpu.core_type = #tpu.core_type<tc>, window_params = [{transform_indices = @transform_0, window_bounds = array<i64: 1, 256, 3>}, {pipeline_mode = #tpu.pipeline_mode<synchronous>, transform_indices = @transform_1, window_bounds = array<i64: 3, 64>}, {pipeline_mode = #tpu.pipeline_mode<synchronous>, transform_indices = @transform_2, window_bounds = array<i64: 1, 64>}, {pipeline_mode = #tpu.pipeline_mode<synchronous>, transform_indices = @transform_3, window_bounds = array<i64: 64, 128>}, {pipeline_mode = #tpu.pipeline_mode<synchronous>, transform_indices = @transform_4, window_bounds = array<i64: 1, 128>}, {pipeline_mode = #tpu.pipeline_mode<synchronous>, transform_indices = @transform_5, window_bounds = array<i64: 128, 1024>}, {pipeline_mode = #tpu.pipeline_mode<synchronous>, transform_indices = @transform_6, window_bounds = array<i64: 1, 1024>}, {}, {pipeline_mode = #tpu.pipeline_mode<synchronous>, transform_indices = @transform_8, window_bounds = array<i64: 1, 512>}, {}, {pipeline_mode = #tpu.pipeline_mode<synchronous>, transform_indices = @transform_10, window_bounds = array<i64: 1, 256>}, {pipeline_mode = #tpu.pipeline_mode<synchronous>, transform_indices = @transform_11, window_bounds = array<i64: 256, 9>}, {pipeline_mode = #tpu.pipeline_mode<synchronous>, transform_indices = @transform_12, window_bounds = array<i64: 1, 9>}, {pipeline_mode = #tpu.pipeline_mode<synchronous>, transform_indices = @transform_13, window_bounds = array<i64: 1, 9>}, {transform_indices = @transform_14, window_bounds = array<i64: 1, 1, 9>}]} {
    %c0_i32 = arith.constant 0 : i32
    %0 = arith.cmpi eq, %arg1, %c0_i32 : i32
    %1 = arith.extui %0 : i1 to i32
    %c0_i32_0 = arith.constant 0 : i32
    %2 = arith.cmpi ne, %1, %c0_i32_0 : i32
    scf.if %2 {
      %c0_i32_27 = arith.constant 0 : i32
      %51 = tpu.memref_slice %arg20[%c0_i32_27] : memref<2x!tpu.dma_semaphore, #tpu.memory_space<semaphore_mem>> -> memref<1x!tpu.dma_semaphore, #tpu.memory_space<semaphore_mem>>
      %52 = tpu.memref_squeeze %51 : memref<1x!tpu.dma_semaphore, #tpu.memory_space<semaphore_mem>> -> memref<!tpu.dma_semaphore, #tpu.memory_space<semaphore_mem>>
      tpu.enqueue_dma source(%arg9 : memref<1024x512xf32, #tpu.memory_space<any>>) target(%arg18 : memref<1024x512xf32, #tpu.memory_space<vmem>>) target_semaphore(%52 : memref<!tpu.dma_semaphore, #tpu.memory_space<semaphore_mem>>)
      %c1_i32 = arith.constant 1 : i32
      %53 = tpu.memref_slice %arg20[%c1_i32] : memref<2x!tpu.dma_semaphore, #tpu.memory_space<semaphore_mem>> -> memref<1x!tpu.dma_semaphore, #tpu.memory_space<semaphore_mem>>
      %54 = tpu.memref_squeeze %53 : memref<1x!tpu.dma_semaphore, #tpu.memory_space<semaphore_mem>> -> memref<!tpu.dma_semaphore, #tpu.memory_space<semaphore_mem>>
      tpu.enqueue_dma source(%arg11 : memref<512x256xf32, #tpu.memory_space<any>>) target(%arg19 : memref<512x256xf32, #tpu.memory_space<vmem>>) target_semaphore(%54 : memref<!tpu.dma_semaphore, #tpu.memory_space<semaphore_mem>>)
      %cst_28 = arith.constant 0xFF800000 : f32
      %55 = vector.broadcast %cst_28 : f32 to vector<1x1024xf32>
      %c0_29 = arith.constant 0 : index
      %c0_30 = arith.constant 0 : index
      %56 = vector.load %arg17[%c0_29, %c0_30] : memref<1x1024xf32, #tpu.memory_space<vmem>>, vector<1x1024xf32>
      tpu.vector_store %arg17[%c0_29, %c0_30], %55 {strides = array<i32>} : memref<1x1024xf32, #tpu.memory_space<vmem>>, vector<1x1024xf32>,
    } else {
    }
    %c0 = arith.constant 0 : index
    %c0_1 = arith.constant 0 : index
    %c0_2 = arith.constant 0 : index
    %3 = vector.load %arg2[%c0, %c0_1, %c0_2] : memref<1x256x3xf32, #tpu.memory_space<vmem>>, vector<1x256x3xf32>
    %4 = vector.shape_cast %3 : vector<1x256x3xf32> to vector<256x3xf32>
    %5 = vector.extract_strided_slice %4 {offsets = [0, 0], sizes = [256, 1], strides = [1, 1]} : vector<256x3xf32> to vector<256x1xf32>
    %c0_3 = arith.constant 0 : index
    %c0_4 = arith.constant 0 : index
    %6 = vector.load %arg3[%c0_3, %c0_4] : memref<3x64xf32, #tpu.memory_space<vmem>>, vector<1x64xf32>
    %7 = vector.broadcast %5 : vector<256x1xf32> to vector<256x64xf32>
    %8 = vector.broadcast %6 : vector<1x64xf32> to vector<256x64xf32>
    %9 = arith.mulf %7, %8 : vector<256x64xf32>
    %10 = vector.extract_strided_slice %4 {offsets = [0, 1], sizes = [256, 1], strides = [1, 1]} : vector<256x3xf32> to vector<256x1xf32>
    %c1 = arith.constant 1 : index
    %c0_5 = arith.constant 0 : index
    %11 = vector.load %arg3[%c1, %c0_5] : memref<3x64xf32, #tpu.memory_space<vmem>>, vector<1x64xf32>
    %12 = vector.broadcast %10 : vector<256x1xf32> to vector<256x64xf32>
    %13 = vector.broadcast %11 : vector<1x64xf32> to vector<256x64xf32>
    %14 = arith.mulf %12, %13 : vector<256x64xf32>
    %15 = arith.addf %9, %14 : vector<256x64xf32>
    %16 = vector.extract_strided_slice %4 {offsets = [0, 2], sizes = [256, 1], strides = [1, 1]} : vector<256x3xf32> to vector<256x1xf32>
    %c2 = arith.constant 2 : index
    %c0_6 = arith.constant 0 : index
    %17 = vector.load %arg3[%c2, %c0_6] : memref<3x64xf32, #tpu.memory_space<vmem>>, vector<1x64xf32>
    %18 = vector.broadcast %16 : vector<256x1xf32> to vector<256x64xf32>
    %19 = vector.broadcast %17 : vector<1x64xf32> to vector<256x64xf32>
    %20 = arith.mulf %18, %19 : vector<256x64xf32>
    %21 = arith.addf %15, %20 : vector<256x64xf32>
    %c0_7 = arith.constant 0 : index
    %c0_8 = arith.constant 0 : index
    %22 = vector.load %arg4[%c0_7, %c0_8] : memref<1x64xf32, #tpu.memory_space<vmem>>, vector<1x64xf32>
    %23 = vector.broadcast %22 : vector<1x64xf32> to vector<256x64xf32>
    %24 = arith.addf %21, %23 : vector<256x64xf32>
    %cst = arith.constant 0.000000e+00 : f32
    %25 = vector.broadcast %cst : f32 to vector<256x64xf32>
    %26 = arith.maximumf %24, %25 : vector<256x64xf32>
    %27 = arith.truncf %26 : vector<256x64xf32> to vector<256x64xbf16>
    %c0_9 = arith.constant 0 : index
    %c0_10 = arith.constant 0 : index
    %28 = vector.load %arg5[%c0_9, %c0_10] : memref<64x128xbf16, #tpu.memory_space<vmem>>, vector<64x128xbf16>
    %cst_11 = arith.constant dense<0.000000e+00> : vector<256x128xf32>
    %29 = tpu.matmul %27, %28, %cst_11 {dimension_numbers = #tpu.dot_dimension_numbers<[1], [0], [0], [1], [0, 0, 1, 1], [], []>} : vector<256x64xbf16>, vector<64x128xbf16>, vector<256x128xf32> -> vector<256x128xf32>
    %c0_12 = arith.constant 0 : index
    %c0_13 = arith.constant 0 : index
    %30 = vector.load %arg6[%c0_12, %c0_13] : memref<1x128xf32, #tpu.memory_space<vmem>>, vector<1x128xf32>
    %31 = vector.broadcast %30 : vector<1x128xf32> to vector<256x128xf32>
    %32 = arith.addf %29, %31 : vector<256x128xf32>
    %cst_14 = arith.constant 0.000000e+00 : f32
    %33 = vector.broadcast %cst_14 : f32 to vector<256x128xf32>
    %34 = arith.maximumf %32, %33 : vector<256x128xf32>
    %35 = arith.truncf %34 : vector<256x128xf32> to vector<256x128xbf16>
    %c0_15 = arith.constant 0 : index
    %c0_16 = arith.constant 0 : index
    %36 = vector.load %arg7[%c0_15, %c0_16] : memref<128x1024xbf16, #tpu.memory_space<vmem>>, vector<128x1024xbf16>
    %cst_17 = arith.constant dense<0.000000e+00> : vector<256x1024xf32>
    %37 = tpu.matmul %35, %36, %cst_17 {dimension_numbers = #tpu.dot_dimension_numbers<[1], [0], [0], [1], [0, 0, 1, 1], [], []>} : vector<256x128xbf16>, vector<128x1024xbf16>, vector<256x1024xf32> -> vector<256x1024xf32>
    %c0_18 = arith.constant 0 : index
    %c0_19 = arith.constant 0 : index
    %38 = vector.load %arg8[%c0_18, %c0_19] : memref<1x1024xf32, #tpu.memory_space<vmem>>, vector<1x1024xf32>
    %39 = vector.broadcast %38 : vector<1x1024xf32> to vector<256x1024xf32>
    %40 = arith.addf %37, %39 : vector<256x1024xf32>
    %cst_20 = arith.constant 0.000000e+00 : f32
    %41 = vector.broadcast %cst_20 : f32 to vector<256x1024xf32>
    %42 = arith.maximumf %40, %41 : vector<256x1024xf32>
    %c0_21 = arith.constant 0 : index
    %c0_22 = arith.constant 0 : index
    %43 = vector.load %arg17[%c0_21, %c0_22] : memref<1x1024xf32, #tpu.memory_space<vmem>>, vector<1x1024xf32>
    %cst_23 = arith.constant dense<0xFF800000> : vector<1024xf32>
    %44 = vector.multi_reduction <maximumf>, %42, %cst_23 [0] : vector<256x1024xf32> to vector<1024xf32>
    %45 = vector.shape_cast %44 : vector<1024xf32> to vector<1x1024xf32>
    %46 = arith.maximumf %43, %45 : vector<1x1024xf32>
    %c0_24 = arith.constant 0 : index
    %c0_25 = arith.constant 0 : index
    %47 = vector.load %arg17[%c0_24, %c0_25] : memref<1x1024xf32, #tpu.memory_space<vmem>>, vector<1x1024xf32>
    tpu.vector_store %arg17[%c0_24, %c0_25], %46 {strides = array<i32>} : memref<1x1024xf32, #tpu.memory_space<vmem>>, vector<1x1024xf32>,
    %c3_i32 = arith.constant 3 : i32
    %48 = arith.cmpi eq, %arg1, %c3_i32 : i32
    %49 = arith.extui %48 : i1 to i32
    %c0_i32_26 = arith.constant 0 : i32
    %50 = arith.cmpi ne, %49, %c0_i32_26 : i32
    scf.if %50 {
      %c0_i32_27 = arith.constant 0 : i32
      %51 = tpu.memref_slice %arg20[%c0_i32_27] : memref<2x!tpu.dma_semaphore, #tpu.memory_space<semaphore_mem>> -> memref<1x!tpu.dma_semaphore, #tpu.memory_space<semaphore_mem>>
      %52 = tpu.memref_squeeze %51 : memref<1x!tpu.dma_semaphore, #tpu.memory_space<semaphore_mem>> -> memref<!tpu.dma_semaphore, #tpu.memory_space<semaphore_mem>>
      tpu.wait_dma2 semaphore(%52 : memref<!tpu.dma_semaphore, #tpu.memory_space<semaphore_mem>>) src(%arg9 : memref<1024x512xf32, #tpu.memory_space<any>>) dst(%arg18 : memref<1024x512xf32, #tpu.memory_space<vmem>>)
      %c1_i32 = arith.constant 1 : i32
      %53 = tpu.memref_slice %arg20[%c1_i32] : memref<2x!tpu.dma_semaphore, #tpu.memory_space<semaphore_mem>> -> memref<1x!tpu.dma_semaphore, #tpu.memory_space<semaphore_mem>>
      %54 = tpu.memref_squeeze %53 : memref<1x!tpu.dma_semaphore, #tpu.memory_space<semaphore_mem>> -> memref<!tpu.dma_semaphore, #tpu.memory_space<semaphore_mem>>
      tpu.wait_dma2 semaphore(%54 : memref<!tpu.dma_semaphore, #tpu.memory_space<semaphore_mem>>) src(%arg11 : memref<512x256xf32, #tpu.memory_space<any>>) dst(%arg19 : memref<512x256xf32, #tpu.memory_space<vmem>>)
      %c0_28 = arith.constant 0 : index
      %c0_29 = arith.constant 0 : index
      %55 = vector.load %arg17[%c0_28, %c0_29] : memref<1x1024xf32, #tpu.memory_space<vmem>>, vector<1x1024xf32>
      %c0_30 = arith.constant 0 : index
      %c0_31 = arith.constant 0 : index
      %56 = vector.load %arg18[%c0_30, %c0_31] : memref<1024x512xf32, #tpu.memory_space<vmem>>, vector<1024x512xf32>
      %cst_32 = arith.constant dense<0.000000e+00> : vector<1x512xf32>
      %57 = tpu.matmul %55, %56, %cst_32 {dimension_numbers = #tpu.dot_dimension_numbers<[1], [0], [0], [1], [0, 0, 1, 1], [], []>} : vector<1x1024xf32>, vector<1024x512xf32>, vector<1x512xf32> -> vector<1x512xf32>
      %c0_33 = arith.constant 0 : index
      %c0_34 = arith.constant 0 : index
      %58 = vector.load %arg10[%c0_33, %c0_34] : memref<1x512xf32, #tpu.memory_space<vmem>>, vector<1x512xf32>
      %59 = arith.addf %57, %58 : vector<1x512xf32>
      %cst_35 = arith.constant 0.000000e+00 : f32
      %60 = vector.broadcast %cst_35 : f32 to vector<1x512xf32>
      %61 = arith.maximumf %59, %60 : vector<1x512xf32>
      %c0_36 = arith.constant 0 : index
      %c0_37 = arith.constant 0 : index
      %62 = vector.load %arg19[%c0_36, %c0_37] : memref<512x256xf32, #tpu.memory_space<vmem>>, vector<512x256xf32>
      %cst_38 = arith.constant dense<0.000000e+00> : vector<1x256xf32>
      %63 = tpu.matmul %61, %62, %cst_38 {dimension_numbers = #tpu.dot_dimension_numbers<[1], [0], [0], [1], [0, 0, 1, 1], [], []>} : vector<1x512xf32>, vector<512x256xf32>, vector<1x256xf32> -> vector<1x256xf32>
      %c0_39 = arith.constant 0 : index
      %c0_40 = arith.constant 0 : index
      %64 = vector.load %arg12[%c0_39, %c0_40] : memref<1x256xf32, #tpu.memory_space<vmem>>, vector<1x256xf32>
      %65 = arith.addf %63, %64 : vector<1x256xf32>
      %cst_41 = arith.constant 0.000000e+00 : f32
      %66 = vector.broadcast %cst_41 : f32 to vector<1x256xf32>
      %67 = arith.maximumf %65, %66 : vector<1x256xf32>
      %c0_42 = arith.constant 0 : index
      %c0_43 = arith.constant 0 : index
      %68 = vector.load %arg13[%c0_42, %c0_43] : memref<256x9xf32, #tpu.memory_space<vmem>>, vector<256x9xf32>
      %cst_44 = arith.constant dense<0.000000e+00> : vector<1x9xf32>
      %69 = tpu.matmul %67, %68, %cst_44 {dimension_numbers = #tpu.dot_dimension_numbers<[1], [0], [0], [1], [0, 0, 1, 1], [], []>} : vector<1x256xf32>, vector<256x9xf32>, vector<1x9xf32> -> vector<1x9xf32>
      %c0_45 = arith.constant 0 : index
      %c0_46 = arith.constant 0 : index
      %70 = vector.load %arg14[%c0_45, %c0_46] : memref<1x9xf32, #tpu.memory_space<vmem>>, vector<1x9xf32>
      %71 = arith.addf %69, %70 : vector<1x9xf32>
      %c0_47 = arith.constant 0 : index
      %c0_48 = arith.constant 0 : index
      %72 = vector.load %arg15[%c0_47, %c0_48] : memref<1x9xf32, #tpu.memory_space<vmem>>, vector<1x9xf32>
      %73 = arith.addf %71, %72 : vector<1x9xf32>
      %c0_49 = arith.constant 0 : index
      %c0_50 = arith.constant 0 : index
      %c0_51 = arith.constant 0 : index
      %74 = vector.load %arg16[%c0_49, %c0_50, %c0_51] : memref<1x1x9xf32, #tpu.memory_space<vmem>>, vector<1x1x9xf32>
      %75 = vector.shape_cast %74 : vector<1x1x9xf32> to vector<1x9xf32>
      %76 = vector.shape_cast %73 : vector<1x9xf32> to vector<1x1x9xf32>
      tpu.vector_store %arg16[%c0_49, %c0_50, %c0_51], %76 {strides = array<i32>} : memref<1x1x9xf32, #tpu.memory_space<vmem>>, vector<1x1x9xf32>,
    } else {
    }
    return
  }
  func.func @transform_0(%arg0: i32, %arg1: i32) -> (i32, i32, i32) {
    %c0_i32 = arith.constant 0 : i32
    %c0_i32_0 = arith.constant 0 : i32
    return %arg0, %arg1, %c0_i32 : i32, i32, i32
  }
  func.func @transform_1(%arg0: i32, %arg1: i32) -> (i32, i32) {
    %c0_i32 = arith.constant 0 : i32
    %c0_i32_0 = arith.constant 0 : i32
    %c0_i32_1 = arith.constant 0 : i32
    return %c0_i32, %c0_i32_0 : i32, i32
  }
  func.func @transform_2(%arg0: i32, %arg1: i32) -> (i32, i32) {
    %c0_i32 = arith.constant 0 : i32
    %c0_i32_0 = arith.constant 0 : i32
    %c0_i32_1 = arith.constant 0 : i32
    return %c0_i32, %c0_i32_0 : i32, i32
  }
  func.func @transform_3(%arg0: i32, %arg1: i32) -> (i32, i32) {
    %c0_i32 = arith.constant 0 : i32
    %c0_i32_0 = arith.constant 0 : i32
    %c0_i32_1 = arith.constant 0 : i32
    return %c0_i32, %c0_i32_0 : i32, i32
  }
  func.func @transform_4(%arg0: i32, %arg1: i32) -> (i32, i32) {
    %c0_i32 = arith.constant 0 : i32
    %c0_i32_0 = arith.constant 0 : i32
    %c0_i32_1 = arith.constant 0 : i32
    return %c0_i32, %c0_i32_0 : i32, i32
  }
  func.func @transform_5(%arg0: i32, %arg1: i32) -> (i32, i32) {
    %c0_i32 = arith.constant 0 : i32
    %c0_i32_0 = arith.constant 0 : i32
    %c0_i32_1 = arith.constant 0 : i32
    return %c0_i32, %c0_i32_0 : i32, i32
  }
  func.func @transform_6(%arg0: i32, %arg1: i32) -> (i32, i32) {
    %c0_i32 = arith.constant 0 : i32
    %c0_i32_0 = arith.constant 0 : i32
    %c0_i32_1 = arith.constant 0 : i32
    return %c0_i32, %c0_i32_0 : i32, i32
  }
  func.func @transform_8(%arg0: i32, %arg1: i32) -> (i32, i32) {
    %c0_i32 = arith.constant 0 : i32
    %c0_i32_0 = arith.constant 0 : i32
    %c0_i32_1 = arith.constant 0 : i32
    return %c0_i32, %c0_i32_0 : i32, i32
  }
  func.func @transform_10(%arg0: i32, %arg1: i32) -> (i32, i32) {
    %c0_i32 = arith.constant 0 : i32
    %c0_i32_0 = arith.constant 0 : i32
    %c0_i32_1 = arith.constant 0 : i32
    return %c0_i32, %c0_i32_0 : i32, i32
  }
  func.func @transform_11(%arg0: i32, %arg1: i32) -> (i32, i32) {
    %c0_i32 = arith.constant 0 : i32
    %c0_i32_0 = arith.constant 0 : i32
    %c0_i32_1 = arith.constant 0 : i32
    return %c0_i32, %c0_i32_0 : i32, i32
  }
  func.func @transform_12(%arg0: i32, %arg1: i32) -> (i32, i32) {
    %c0_i32 = arith.constant 0 : i32
    %c0_i32_0 = arith.constant 0 : i32
    %c0_i32_1 = arith.constant 0 : i32
    return %c0_i32, %c0_i32_0 : i32, i32
  }
  func.func @transform_13(%arg0: i32, %arg1: i32) -> (i32, i32) {
    %c0_i32 = arith.constant 0 : i32
    %c0_i32_0 = arith.constant 0 : i32
    %c0_i32_1 = arith.constant 0 : i32
    return %c0_i32, %c0_i32_0 : i32, i32
  }
  func.func @transform_14(%arg0: i32, %arg1: i32) -> (i32, i32, i32) {
    %c0_i32 = arith.constant 0 : i32
    %c0_i32_0 = arith.constant 0 : i32
    %c0_i32_1 = arith.constant 0 : i32
    return %arg0, %c0_i32, %c0_i32_0 : i32, i32, i32
  }
}

</mosaic_0001>

<llo_original>
// kernel: tpu_custom_call.1
$region0: #{tpu_custom_call.1}
  #allocation0 [shape = 'u32[]', space=smem, size = 0x4, offset = 0x4, fixed_abs, tag = 'smem constant byte address 0x4 - core index']
  #allocation1 [shape = 'u32[72,128]{1,0:T(1,128)}', space=vmem, size = 0x9000, scoped, tag = 'internal scratch']
  #allocation2 [shape = 'f32[1,1024]{1,0:T(1,128)}', space=vmem, size = 0x1000, scoped, tag = 'scratch operand']
  #allocation3 [shape = 'f32[1024,512]{1,0:T(8,128)}', space=vmem, size = 0x200000, scoped, tag = 'scratch operand']
  #allocation4 [shape = 'f32[512,256]{1,0:T(8,128)}', space=vmem, size = 0x80000, scoped, tag = 'scratch operand']
  #allocation5 [shape = 's32[2]{0}', space=sflag, size = 0x8, scoped, tag = 'scratch operand']
  #allocation24 [shape = 's32[]', space=sflag, size = 0x4, offset = 0, fixed_abs, tag = 'sflag constant byte address 0x0 - dummy sync flag']
  #allocation25 [shape = 's32[]', space=sflag, size = 0x4, offset = 0, fixed_abs, tag = 'sflag constant byte address 0x0 - dummy sync flag']
  #allocation26 [shape = 'u32[]', space=smem, size = 0x4, offset = 0x44, fixed_abs, tag = 'smem constant byte address 0x44 - assertion arg 0']
  #allocation27 [shape = 'u32[]', space=smem, size = 0x4, offset = 0x48, fixed_abs, tag = 'smem constant byte address 0x48 - assertion arg 1']
  #allocation28 [shape = 's32[]', space=sflag, size = 0x4, offset = 0, fixed_abs, tag = 'sflag constant byte address 0x0 - dummy sync flag']
  #allocation29 [shape = 's32[]', space=sflag, size = 0x4, offset = 0, fixed_abs, tag = 'sflag constant byte address 0x0 - dummy sync flag']
  %s0 = inlined_call_operand.vmem [shape: f32[2,1024,3], index: 0, kind: input, shape index: {}]
  %s1 = inlined_call_operand.hbm [shape: f32[3,64], index: 1, kind: input, shape index: {}]
  %s2 = inlined_call_operand.hbm [shape: f32[1,64], index: 2, kind: input, shape index: {}]
  %s3 = inlined_call_operand.hbm [shape: bf16[64,128], index: 3, kind: input, shape index: {}]
  %s4 = inlined_call_operand.hbm [shape: f32[1,128], index: 4, kind: input, shape index: {}]
  %s5 = inlined_call_operand.hbm [shape: bf16[128,1024], index: 5, kind: input, shape index: {}]
  %s6 = inlined_call_operand.hbm [shape: f32[1,1024], index: 6, kind: input, shape index: {}]
  %s7 = inlined_call_operand.hbm [shape: f32[1024,512], index: 7, kind: input, shape index: {}]
  %s8 = inlined_call_operand.hbm [shape: f32[1,512], index: 8, kind: input, shape index: {}]
  %s9 = inlined_call_operand.hbm [shape: f32[512,256], index: 9, kind: input, shape index: {}]
  %s10 = inlined_call_operand.hbm [shape: f32[1,256], index: 10, kind: input, shape index: {}]
  %s11 = inlined_call_operand.vmem [shape: f32[256,9], index: 11, kind: input, shape index: {}]
  %s12 = inlined_call_operand.hbm [shape: f32[1,9], index: 12, kind: input, shape index: {}]
  %s13 = inlined_call_operand.hbm [shape: f32[1,9], index: 13, kind: input, shape index: {}]
  %s14 = inlined_call_operand.hbm [shape: f32[2,1,9], index: 14, kind: output, shape index: {}]
  %s15 = sld [smem:[#allocation0]]
  $region137: #{tpu_custom_call.1} parent=0
    _
  %s17 = ssub.s32 1, %s15
  %s18 = scalar_select 0, %s17, %s15
  $region1: #{tpu_custom_call.1} parent=0
    #allocation6 [shape = 'u8[2048]{0}', space=vmem, size = 0x800, scoped, tag = 'input window, operand 1, single buffered']
    #allocation7 [shape = 's32[2]{0}', space=sflag, size = 0x8, scoped, tag = 'scoped memory for tpu_custom_call.1']
    #allocation8 [shape = 's32[2]{0}', space=sflag, size = 0x8, scoped, tag = 'scoped memory for tpu_custom_call.1']
    #allocation9 [shape = 'u8[512]{0}', space=vmem, size = 0x400, scoped, tag = 'input window, operand 2, single buffered']
    #allocation10 [shape = 's32[1]{0}', space=sflag, size = 0x4, scoped, tag = 'scoped memory for tpu_custom_call.1']
    #allocation11 [shape = 'u8[16384]{0}', space=vmem, size = 0x4000, scoped, tag = 'input window, operand 3, single buffered']
    #allocation12 [shape = 'u8[512]{0}', space=vmem, size = 0x400, scoped, tag = 'input window, operand 4, single buffered']
    #allocation13 [shape = 's32[1]{0}', space=sflag, size = 0x4, scoped, tag = 'scoped memory for tpu_custom_call.1']
    #allocation14 [shape = 'u8[262144]{0}', space=vmem, size = 0x40000, scoped, tag = 'input window, operand 5, single buffered']
    #allocation15 [shape = 'u8[4096]{0}', space=vmem, size = 0x1000, scoped, tag = 'input window, operand 6, single buffered']
    #allocation16 [shape = 's32[1]{0}', space=sflag, size = 0x4, scoped, tag = 'scoped memory for tpu_custom_call.1']
    #allocation17 [shape = 'u8[2048]{0}', space=vmem, size = 0x800, scoped, tag = 'input window, operand 8, single buffered']
    #allocation18 [shape = 'u8[1024]{0}', space=vmem, size = 0x400, scoped, tag = 'input window, operand 10, single buffered']
    #allocation19 [shape = 's32[1]{0}', space=sflag, size = 0x4, scoped, tag = 'scoped memory for tpu_custom_call.1']
    #allocation20 [shape = 'u8[512]{0}', space=vmem, size = 0x400, scoped, tag = 'input window, operand 12, single buffered']
    #allocation21 [shape = 'u8[512]{0}', space=vmem, size = 0x400, scoped, tag = 'input window, operand 13, single buffered']
    #allocation22 [shape = 's32[1]{0}', space=sflag, size = 0x4, scoped, tag = 'scoped memory for tpu_custom_call.1']
    #allocation23 [shape = 'u8[1024]{0}', space=vmem, size = 0x400, scoped, tag = 'output window, operand 0']
    %19 = vsyncpa [#allocation7], 0
    %20 = vsyncpa [#allocation10], 0
    %21 = vsyncpa [#allocation13], 0
    %22 = vsyncpa [#allocation16], 0
    %23 = vsyncpa [#allocation19], 0
    %24 = vsyncpa [#allocation22], 0
    %25 = vsyncpa [#allocation8], 0
    %s26 = scalar_lea.sflag [#allocation8], 1
    %27 = vsyncpa %s26, 0
    loop: start=0, step=1, limit=10
    $region2: #{tpu_custom_call.1} parent=1 // loop_pre_header
      _
    $region3: #{tpu_custom_call.1} parent=1 // loop_header
      %s29 = sphi 0, %s33
      %p30 = scmp.ge.s32.totalorder %s29, 10
      %s36 = sphi 0, %s48
      %s37 = sphi 0, %s44
      %s38 = sphi 0, %s36
      %s39 = sphi 0, %s37
      %s40 = sphi 0, %s38
      %s41 = sphi 0, %s39
      %s53 = sphi 0, %s55
      %s56 = sphi 0, %s53
      %s57 = sphi 0, %s56
      %s73 = sphi 0, %s57
      %s77 = sphi 0, %s77
      %s79 = sphi 0, %s77
      %s80 = sphi 0, %s79
      %s94 = sphi 0, %s80
      %s98 = sphi 0, %s98
      %s100 = sphi 0, %s98
      %s101 = sphi 0, %s100
      %s115 = sphi 0, %s101
      %s119 = sphi 0, %s119
      %s121 = sphi 0, %s119
      %s122 = sphi 0, %s121
      %s136 = sphi 0, %s122
      %s140 = sphi 0, %s140
      %s142 = sphi 0, %s140
      %s143 = sphi 0, %s142
      %s157 = sphi 0, %s143
      %s161 = sphi 0, %s161
      %s163 = sphi 0, %s161
      %s164 = sphi 0, %s163
      %s178 = sphi 0, %s164
      %s182 = sphi 0, %s182
      %s184 = sphi 0, %s182
      %s185 = sphi 0, %s184
      %s199 = sphi 0, %s185
      %s203 = sphi 0, %s203
      %s205 = sphi 0, %s203
      %s206 = sphi 0, %s205
      %s220 = sphi 0, %s206
      %s224 = sphi 0, %s224
      %s226 = sphi 0, %s224
      %s227 = sphi 0, %s226
      %s241 = sphi 0, %s227
      %s245 = sphi 0, %s245
      %s247 = sphi 0, %s245
      %s248 = sphi 0, %s247
      %s262 = sphi 0, %s248
      %s266 = sphi 0, %s266
      %s268 = sphi 0, %s266
      %s269 = sphi 0, %s268
      %s283 = sphi 0, %s269
      %s287 = sphi 0, %s287
      %s289 = sphi 0, %s287
      %s290 = sphi 0, %s289
      %s304 = sphi 0, %s290
      %s310 = sphi 0, %s312
      %s313 = sphi 0, %s310
      %s314 = sphi 0, %s313
      %s330 = sphi 0, %s314
    $region4: #{tpu_custom_call.1} parent=1 // loop_header_branch
      %32 = sbr.rel (%p30) target = $region8
    $region5: #{tpu_custom_call.1} parent=1 // loop_body
      %s34 = ssub.s32 %s29, 1
      %s35 = ssub.s32 %s29, 2
      %s42 = sadd.s32 1, %s37
      %p43 = scmp.ge.s32.totalorder %s42, 4
      %s44 = scalar_select %p43, 0, %s42
      %s45 = sadd.s32 1, %s36
      %s46 = scalar_select %p43, %s45, %s36
      %p47 = scmp.ge.s32.totalorder %s46, 2
      %s48 = scalar_select %p47, 0, %s46
      %s49 = ssub.s32 %s36, %s48
      %s50 = ssub.s32 %s37, %s44
      %s51 = sor.u32 %s49, %s50
      %p52 = scmp.eq.s32.totalorder %s51, 0
      %s54 = sadd.s32 %s53, 1
      %s55 = scalar_select %p52, %s53, %s54
      %p58 = pneg %p52
      %p59 = scmp.eq.s32.totalorder %s29, 7
      %p60 = por %p58, %p59
      %p61 = scmp.ne.s32.totalorder %s53, %s56
      %p62 = scmp.eq.s32.totalorder %s29, 0
      %p63 = por %p61, %p62
      %p64 = scmp.ne.s32.totalorder %s53, %s56
      %p65 = scmp.eq.s32.totalorder %s34, 7
      %p66 = por %p64, %p65
      %p67 = scmp.ne.s32.totalorder %s56, %s57
      %p68 = scmp.eq.s32.totalorder %s34, 0
      %p69 = por %p67, %p68
      %p70 = scmp.ne.s32.totalorder %s56, %s57
      %p71 = scmp.eq.s32.totalorder %s35, 7
      %p72 = por %p70, %p71
      %p74 = scmp.ne.s32.totalorder %s57, %s73
      %p75 = scmp.eq.s32.totalorder %s35, 0
      %p76 = por %p74, %p75
      %s78 = sadd.s32 %s77, 1
      %p81 = scmp.eq.s32.totalorder %s29, 7
      %p82 = scmp.ne.s32.totalorder %s77, %s79
      %p83 = scmp.eq.s32.totalorder %s29, 0
      %p84 = por %p82, %p83
      %p85 = scmp.ne.s32.totalorder %s77, %s79
      %p86 = scmp.eq.s32.totalorder %s34, 7
      %p87 = por %p85, %p86
      %p88 = scmp.ne.s32.totalorder %s79, %s80
      %p89 = scmp.eq.s32.totalorder %s34, 0
      %p90 = por %p88, %p89
      %p91 = scmp.ne.s32.totalorder %s79, %s80
      %p92 = scmp.eq.s32.totalorder %s35, 7
      %p93 = por %p91, %p92
      %p95 = scmp.ne.s32.totalorder %s80, %s94
      %p96 = scmp.eq.s32.totalorder %s35, 0
      %p97 = por %p95, %p96
      %s99 = sadd.s32 %s98, 1
      %p102 = scmp.eq.s32.totalorder %s29, 7
      %p103 = scmp.ne.s32.totalorder %s98, %s100
      %p104 = scmp.eq.s32.totalorder %s29, 0
      %p105 = por %p103, %p104
      %p106 = scmp.ne.s32.totalorder %s98, %s100
      %p107 = scmp.eq.s32.totalorder %s34, 7
      %p108 = por %p106, %p107
      %p109 = scmp.ne.s32.totalorder %s100, %s101
      %p110 = scmp.eq.s32.totalorder %s34, 0
      %p111 = por %p109, %p110
      %p112 = scmp.ne.s32.totalorder %s100, %s101
      %p113 = scmp.eq.s32.totalorder %s35, 7
      %p114 = por %p112, %p113
      %p116 = scmp.ne.s32.totalorder %s101, %s115
      %p117 = scmp.eq.s32.totalorder %s35, 0
      %p118 = por %p116, %p117
      %s120 = sadd.s32 %s119, 1
      %p123 = scmp.eq.s32.totalorder %s29, 7
      %p124 = scmp.ne.s32.totalorder %s119, %s121
      %p125 = scmp.eq.s32.totalorder %s29, 0
      %p126 = por %p124, %p125
      %p127 = scmp.ne.s32.totalorder %s119, %s121
      %p128 = scmp.eq.s32.totalorder %s34, 7
      %p129 = por %p127, %p128
      %p130 = scmp.ne.s32.totalorder %s121, %s122
      %p131 = scmp.eq.s32.totalorder %s34, 0
      %p132 = por %p130, %p131
      %p133 = scmp.ne.s32.totalorder %s121, %s122
      %p134 = scmp.eq.s32.totalorder %s35, 7
      %p135 = por %p133, %p134
      %p137 = scmp.ne.s32.totalorder %s122, %s136
      %p138 = scmp.eq.s32.totalorder %s35, 0
      %p139 = por %p137, %p138
      %s141 = sadd.s32 %s140, 1
      %p144 = scmp.eq.s32.totalorder %s29, 7
      %p145 = scmp.ne.s32.totalorder %s140, %s142
      %p146 = scmp.eq.s32.totalorder %s29, 0
      %p147 = por %p145, %p146
      %p148 = scmp.ne.s32.totalorder %s140, %s142
      %p149 = scmp.eq.s32.totalorder %s34, 7
      %p150 = por %p148, %p149
      %p151 = scmp.ne.s32.totalorder %s142, %s143
      %p152 = scmp.eq.s32.totalorder %s34, 0
      %p153 = por %p151, %p152
      %p154 = scmp.ne.s32.totalorder %s142, %s143
      %p155 = scmp.eq.s32.totalorder %s35, 7
      %p156 = por %p154, %p155
      %p158 = scmp.ne.s32.totalorder %s143, %s157
      %p159 = scmp.eq.s32.totalorder %s35, 0
      %p160 = por %p158, %p159
      %s162 = sadd.s32 %s161, 1
      %p165 = scmp.eq.s32.totalorder %s29, 7
      %p166 = scmp.ne.s32.totalorder %s161, %s163
      %p167 = scmp.eq.s32.totalorder %s29, 0
      %p168 = por %p166, %p167
      %p169 = scmp.ne.s32.totalorder %s161, %s163
      %p170 = scmp.eq.s32.totalorder %s34, 7
      %p171 = por %p169, %p170
      %p172 = scmp.ne.s32.totalorder %s163, %s164
      %p173 = scmp.eq.s32.totalorder %s34, 0
      %p174 = por %p172, %p173
      %p175 = scmp.ne.s32.totalorder %s163, %s164
      %p176 = scmp.eq.s32.totalorder %s35, 7
      %p177 = por %p175, %p176
      %p179 = scmp.ne.s32.totalorder %s164, %s178
      %p180 = scmp.eq.s32.totalorder %s35, 0
      %p181 = por %p179, %p180
      %s183 = sadd.s32 %s182, 1
      %p186 = scmp.eq.s32.totalorder %s29, 7
      %p187 = scmp.ne.s32.totalorder %s182, %s184
      %p188 = scmp.eq.s32.totalorder %s29, 0
      %p189 = por %p187, %p188
      %p190 = scmp.ne.s32.totalorder %s182, %s184
      %p191 = scmp.eq.s32.totalorder %s34, 7
      %p192 = por %p190, %p191
      %p193 = scmp.ne.s32.totalorder %s184, %s185
      %p194 = scmp.eq.s32.totalorder %s34, 0
      %p195 = por %p193, %p194
      %p196 = scmp.ne.s32.totalorder %s184, %s185
      %p197 = scmp.eq.s32.totalorder %s35, 7
      %p198 = por %p196, %p197
      %p200 = scmp.ne.s32.totalorder %s185, %s199
      %p201 = scmp.eq.s32.totalorder %s35, 0
      %p202 = por %p200, %p201
      %s204 = sadd.s32 %s203, 1
      %p207 = scmp.eq.s32.totalorder %s29, 7
      %p208 = scmp.ne.s32.totalorder %s203, %s205
      %p209 = scmp.eq.s32.totalorder %s29, 0
      %p210 = por %p208, %p209
      %p211 = scmp.ne.s32.totalorder %s203, %s205
      %p212 = scmp.eq.s32.totalorder %s34, 7
      %p213 = por %p211, %p212
      %p214 = scmp.ne.s32.totalorder %s205, %s206
      %p215 = scmp.eq.s32.totalorder %s34, 0
      %p216 = por %p214, %p215
      %p217 = scmp.ne.s32.totalorder %s205, %s206
      %p218 = scmp.eq.s32.totalorder %s35, 7
      %p219 = por %p217, %p218
      %p221 = scmp.ne.s32.totalorder %s206, %s220
      %p222 = scmp.eq.s32.totalorder %s35, 0
      %p223 = por %p221, %p222
      %s225 = sadd.s32 %s224, 1
      %p228 = scmp.eq.s32.totalorder %s29, 7
      %p229 = scmp.ne.s32.totalorder %s224, %s226
      %p230 = scmp.eq.s32.totalorder %s29, 0
      %p231 = por %p229, %p230
      %p232 = scmp.ne.s32.totalorder %s224, %s226
      %p233 = scmp.eq.s32.totalorder %s34, 7
      %p234 = por %p232, %p233
      %p235 = scmp.ne.s32.totalorder %s226, %s227
      %p236 = scmp.eq.s32.totalorder %s34, 0
      %p237 = por %p235, %p236
      %p238 = scmp.ne.s32.totalorder %s226, %s227
      %p239 = scmp.eq.s32.totalorder %s35, 7
      %p240 = por %p238, %p239
      %p242 = scmp.ne.s32.totalorder %s227, %s241
      %p243 = scmp.eq.s32.totalorder %s35, 0
      %p244 = por %p242, %p243
      %s246 = sadd.s32 %s245, 1
      %p249 = scmp.eq.s32.totalorder %s29, 7
      %p250 = scmp.ne.s32.totalorder %s245, %s247
      %p251 = scmp.eq.s32.totalorder %s29, 0
      %p252 = por %p250, %p251
      %p253 = scmp.ne.s32.totalorder %s245, %s247
      %p254 = scmp.eq.s32.totalorder %s34, 7
      %p255 = por %p253, %p254
      %p256 = scmp.ne.s32.totalorder %s247, %s248
      %p257 = scmp.eq.s32.totalorder %s34, 0
      %p258 = por %p256, %p257
      %p259 = scmp.ne.s32.totalorder %s247, %s248
      %p260 = scmp.eq.s32.totalorder %s35, 7
      %p261 = por %p259, %p260
      %p263 = scmp.ne.s32.totalorder %s248, %s262
      %p264 = scmp.eq.s32.totalorder %s35, 0
      %p265 = por %p263, %p264
      %s267 = sadd.s32 %s266, 1
      %p270 = scmp.eq.s32.totalorder %s29, 7
      %p271 = scmp.ne.s32.totalorder %s266, %s268
      %p272 = scmp.eq.s32.totalorder %s29, 0
      %p273 = por %p271, %p272
      %p274 = scmp.ne.s32.totalorder %s266, %s268
      %p275 = scmp.eq.s32.totalorder %s34, 7
      %p276 = por %p274, %p275
      %p277 = scmp.ne.s32.totalorder %s268, %s269
      %p278 = scmp.eq.s32.totalorder %s34, 0
      %p279 = por %p277, %p278
      %p280 = scmp.ne.s32.totalorder %s268, %s269
      %p281 = scmp.eq.s32.totalorder %s35, 7
      %p282 = por %p280, %p281
      %p284 = scmp.ne.s32.totalorder %s269, %s283
      %p285 = scmp.eq.s32.totalorder %s35, 0
      %p286 = por %p284, %p285
      %s288 = sadd.s32 %s287, 1
      %p291 = scmp.eq.s32.totalorder %s29, 7
      %p292 = scmp.ne.s32.totalorder %s287, %s289
      %p293 = scmp.eq.s32.totalorder %s29, 0
      %p294 = por %p292, %p293
      %p295 = scmp.ne.s32.totalorder %s287, %s289
      %p296 = scmp.eq.s32.totalorder %s34, 7
      %p297 = por %p295, %p296
      %p298 = scmp.ne.s32.totalorder %s289, %s290
      %p299 = scmp.eq.s32.totalorder %s34, 0
      %p300 = por %p298, %p299
      %p301 = scmp.ne.s32.totalorder %s289, %s290
      %p302 = scmp.eq.s32.totalorder %s35, 7
      %p303 = por %p301, %p302
      %p305 = scmp.ne.s32.totalorder %s290, %s304
      %p306 = scmp.eq.s32.totalorder %s35, 0
      %p307 = por %p305, %p306
      %s308 = ssub.s32 %s36, %s48
      %p309 = scmp.eq.s32.totalorder %s308, 0
      %s311 = sadd.s32 %s310, 1
      %s312 = scalar_select %p309, %s310, %s311
      %p315 = pneg %p309
      %p316 = scmp.eq.s32.totalorder %s29, 7
      %p317 = por %p315, %p316
      %p318 = scmp.ne.s32.totalorder %s310, %s313
      %p319 = scmp.eq.s32.totalorder %s29, 0
      %p320 = por %p318, %p319
      %p321 = scmp.ne.s32.totalorder %s310, %s313
      %p322 = scmp.eq.s32.totalorder %s34, 7
      %p323 = por %p321, %p322
      %p324 = scmp.ne.s32.totalorder %s313, %s314
      %p325 = scmp.eq.s32.totalorder %s34, 0
      %p326 = por %p324, %p325
      %p327 = scmp.ne.s32.totalorder %s313, %s314
      %p328 = scmp.eq.s32.totalorder %s35, 7
      %p329 = por %p327, %p328
      %p331 = scmp.ne.s32.totalorder %s314, %s330
      %p332 = scmp.eq.s32.totalorder %s35, 0
      %p333 = por %p331, %p332
      %p334 = scmp.le.s32.totalorder 1, %s29
      %p335 = scmp.lt.s32.totalorder %s29, 9
      %p336 = pnand %p334, %p335
      %p337 = pneg %p336
      // Predicated region
      $region9: #{tpu_custom_call.1} parent=5 // pred_check
        _
      $region10: #{tpu_custom_call.1} parent=5 // pred_check_branch
        %339 = sbr.rel (%p336) target = $region12
      $region11: #{tpu_custom_call.1} parent=5 // pred_region
        %s340 = ssub.s32 %s29, 1
        // Predicated region
        $region13: #{tpu_custom_call.1} parent=11 // pred_check
          %p341 = pneg %p90
        $region14: #{tpu_custom_call.1} parent=11 // pred_check_branch
          %343 = sbr.rel (%p341) target = $region16
        $region15: #{tpu_custom_call.1} parent=11 // pred_region
          %345 = vsyncadd [#allocation7], 0
          %s347 = sshll.u32 %s1, 4
          %s348 = int_to_ptr.hbm [resolvable:$true] %s347
          %s349 = sshll.u32 [#allocation6], 4
          %s350 = int_to_ptr.vmem [resolvable:$true] %s349
          %352 = dma.hbm_to_vmem [thread:$0]  %s348, 64, %s350, [#allocation7]
        $region16: #{tpu_custom_call.1} parent=11 // pred_fallthru
          _
        // Predicated region
        $region17: #{tpu_custom_call.1} parent=11 // pred_check
          %p353 = pneg %p111
        $region18: #{tpu_custom_call.1} parent=11 // pred_check_branch
          %355 = sbr.rel (%p353) target = $region20
        $region19: #{tpu_custom_call.1} parent=11 // pred_region
          %357 = vsyncadd [#allocation10], 0
          %s359 = sshll.u32 %s2, 4
          %s360 = int_to_ptr.hbm [resolvable:$true] %s359
          %s361 = sshll.u32 [#allocation9], 4
          %s362 = int_to_ptr.vmem [resolvable:$true] %s361
          %364 = dma.hbm_to_vmem [thread:$0]  %s360, 16, %s362, [#allocation10]
        $region20: #{tpu_custom_call.1} parent=11 // pred_fallthru
          _
        // Predicated region
        $region21: #{tpu_custom_call.1} parent=11 // pred_check
          %p365 = pneg %p132
        $region22: #{tpu_custom_call.1} parent=11 // pred_check_branch
          %367 = sbr.rel (%p365) target = $region24
        $region23: #{tpu_custom_call.1} parent=11 // pred_region
          %369 = vsyncadd [#allocation10], 0
          %s370 = sshll.u32 %s3, 4
          %s371 = int_to_ptr.hbm [resolvable:$true] %s370
          %s372 = sshll.u32 [#allocation11], 4
          %s373 = int_to_ptr.vmem [resolvable:$true] %s372
          %378 = dma.hbm_to_vmem [thread:$0]  %s371, 512, %s373, [#allocation10], 64, 64, 4
        $region24: #{tpu_custom_call.1} parent=11 // pred_fallthru
          _
        // Predicated region
        $region25: #{tpu_custom_call.1} parent=11 // pred_check
          %p379 = pneg %p153
        $region26: #{tpu_custom_call.1} parent=11 // pred_check_branch
          %381 = sbr.rel (%p379) target = $region28
        $region27: #{tpu_custom_call.1} parent=11 // pred_region
          %383 = vsyncadd [#allocation13], 0
          %s385 = sshll.u32 %s4, 4
          %s386 = int_to_ptr.hbm [resolvable:$true] %s385
          %s387 = sshll.u32 [#allocation12], 4
          %s388 = int_to_ptr.vmem [resolvable:$true] %s387
          %390 = dma.hbm_to_vmem [thread:$0]  %s386, 16, %s388, [#allocation13]
        $region28: #{tpu_custom_call.1} parent=11 // pred_fallthru
          _
        // Predicated region
        $region29: #{tpu_custom_call.1} parent=11 // pred_check
          %p391 = pneg %p174
        $region30: #{tpu_custom_call.1} parent=11 // pred_check_branch
          %393 = sbr.rel (%p391) target = $region32
        $region31: #{tpu_custom_call.1} parent=11 // pred_region
          %395 = vsyncadd [#allocation13], 0
          %s396 = sshll.u32 %s5, 4
          %s397 = int_to_ptr.hbm [resolvable:$true] %s396
          %s398 = sshll.u32 [#allocation14], 4
          %s399 = int_to_ptr.vmem [resolvable:$true] %s398
          %404 = dma.hbm_to_vmem [thread:$0]  %s397, 8192, %s399, [#allocation13], 512, 512, 32
        $region32: #{tpu_custom_call.1} parent=11 // pred_fallthru
          _
        // Predicated region
        $region33: #{tpu_custom_call.1} parent=11 // pred_check
          %p405 = pneg %p195
        $region34: #{tpu_custom_call.1} parent=11 // pred_check_branch
          %407 = sbr.rel (%p405) target = $region36
        $region35: #{tpu_custom_call.1} parent=11 // pred_region
          %409 = vsyncadd [#allocation16], 0
          %s411 = sshll.u32 %s6, 4
          %s412 = int_to_ptr.hbm [resolvable:$true] %s411
          %s413 = sshll.u32 [#allocation15], 4
          %s414 = int_to_ptr.vmem [resolvable:$true] %s413
          %416 = dma.hbm_to_vmem [thread:$0]  %s412, 128, %s414, [#allocation16]
        $region36: #{tpu_custom_call.1} parent=11 // pred_fallthru
          _
        // Predicated region
        $region37: #{tpu_custom_call.1} parent=11 // pred_check
          %p417 = pneg %p216
        $region38: #{tpu_custom_call.1} parent=11 // pred_check_branch
          %419 = sbr.rel (%p417) target = $region40
        $region39: #{tpu_custom_call.1} parent=11 // pred_region
          %421 = vsyncadd [#allocation16], 0
          %s423 = sshll.u32 %s8, 4
          %s424 = int_to_ptr.hbm [resolvable:$true] %s423
          %s425 = sshll.u32 [#allocation17], 4
          %s426 = int_to_ptr.vmem [resolvable:$true] %s425
          %428 = dma.hbm_to_vmem [thread:$0]  %s424, 64, %s426, [#allocation16]
        $region40: #{tpu_custom_call.1} parent=11 // pred_fallthru
          _
        // Predicated region
        $region41: #{tpu_custom_call.1} parent=11 // pred_check
          %p429 = pneg %p237
        $region42: #{tpu_custom_call.1} parent=11 // pred_check_branch
          %431 = sbr.rel (%p429) target = $region44
        $region43: #{tpu_custom_call.1} parent=11 // pred_region
          %433 = vsyncadd [#allocation19], 0
          %s435 = sshll.u32 %s10, 4
          %s436 = int_to_ptr.hbm [resolvable:$true] %s435
          %s437 = sshll.u32 [#allocation18], 4
          %s438 = int_to_ptr.vmem [resolvable:$true] %s437
          %440 = dma.hbm_to_vmem [thread:$0]  %s436, 32, %s438, [#allocation19]
        $region44: #{tpu_custom_call.1} parent=11 // pred_fallthru
          _
        // Predicated region
        $region45: #{tpu_custom_call.1} parent=11 // pred_check
          %p441 = pneg %p258
        $region46: #{tpu_custom_call.1} parent=11 // pred_check_branch
          %443 = sbr.rel (%p441) target = $region48
        $region47: #{tpu_custom_call.1} parent=11 // pred_region
          _
        $region48: #{tpu_custom_call.1} parent=11 // pred_fallthru
          _
        // Predicated region
        $region49: #{tpu_custom_call.1} parent=11 // pred_check
          %p444 = pneg %p279
        $region50: #{tpu_custom_call.1} parent=11 // pred_check_branch
          %446 = sbr.rel (%p444) target = $region52
        $region51: #{tpu_custom_call.1} parent=11 // pred_region
          %448 = vsyncadd [#allocation19], 0
          %s450 = sshll.u32 %s12, 4
          %s451 = int_to_ptr.hbm [resolvable:$true] %s450
          %s452 = sshll.u32 [#allocation20], 4
          %s453 = int_to_ptr.vmem [resolvable:$true] %s452
          %455 = dma.hbm_to_vmem [thread:$0]  %s451, 16, %s453, [#allocation19]
        $region52: #{tpu_custom_call.1} parent=11 // pred_fallthru
          _
        // Predicated region
        $region53: #{tpu_custom_call.1} parent=11 // pred_check
          %p456 = pneg %p300
        $region54: #{tpu_custom_call.1} parent=11 // pred_check_branch
          %458 = sbr.rel (%p456) target = $region56
        $region55: #{tpu_custom_call.1} parent=11 // pred_region
          %460 = vsyncadd [#allocation22], 0
          %s462 = sshll.u32 %s13, 4
          %s463 = int_to_ptr.hbm [resolvable:$true] %s462
          %s464 = sshll.u32 [#allocation21], 4
          %s465 = int_to_ptr.vmem [resolvable:$true] %s464
          %467 = dma.hbm_to_vmem [thread:$0]  %s463, 16, %s465, [#allocation22]
        $region56: #{tpu_custom_call.1} parent=11 // pred_fallthru
          _
      $region12: #{tpu_custom_call.1} parent=5 // pred_fallthru
        _
      %p468 = scmp.lt.s32.totalorder %s29, 8
      // Predicated region
      $region57: #{tpu_custom_call.1} parent=5 // pred_check
        %p469 = pneg %p468
      $region58: #{tpu_custom_call.1} parent=5 // pred_check_branch
        %471 = sbr.rel (%p469) target = $region60
      $region59: #{tpu_custom_call.1} parent=5 // pred_region
        // Predicated region
        $region61: #{tpu_custom_call.1} parent=59 // pred_check
          %p472 = pneg %p63
        $region62: #{tpu_custom_call.1} parent=59 // pred_check_branch
          %474 = sbr.rel (%p472) target = $region64
        $region63: #{tpu_custom_call.1} parent=59 // pred_region
          %s475 = smul.u32 32, %s37
          %p476 = scmp.lt.s32.totalorder %s36, 1
          %s477 = scalar_select %p476, %s36, 1
          %p478 = scmp.lt.s32.totalorder %s475, 127
          %s479 = scalar_select %p478, %s475, 127
          %s480 = smul.addr %s477, 128
          %s481 = sadd.s32 %s479, %s480
          %s482 = smul.addr %s481, 8
          %s483 = scalar_lea.vmem %s0, %s482
          %s484 = smul.u32 32, %s37
        $region64: #{tpu_custom_call.1} parent=59 // pred_fallthru
          _
      $region60: #{tpu_custom_call.1} parent=5 // pred_fallthru
        _
      %p485 = scmp.le.s32.totalorder 1, %s29
      %p486 = scmp.lt.s32.totalorder %s29, 9
      %p487 = pnand %p485, %p486
      %p488 = pneg %p487
      // Predicated region
      $region65: #{tpu_custom_call.1} parent=5 // pred_check
        _
      $region66: #{tpu_custom_call.1} parent=5 // pred_check_branch
        %490 = sbr.rel (%p487) target = $region68
      $region67: #{tpu_custom_call.1} parent=5 // pred_region
        %s491 = ssub.s32 %s29, 1
        // Predicated region
        $region69: #{tpu_custom_call.1} parent=67 // pred_check
          %p492 = pneg %p90
        $region70: #{tpu_custom_call.1} parent=67 // pred_check_branch
          %494 = sbr.rel (%p492) target = $region72
        $region71: #{tpu_custom_call.1} parent=67 // pred_region
          %496 = dma.done [#allocation7], 64
        $region72: #{tpu_custom_call.1} parent=67 // pred_fallthru
          _
        // Predicated region
        $region73: #{tpu_custom_call.1} parent=67 // pred_check
          %p497 = pneg %p111
        $region74: #{tpu_custom_call.1} parent=67 // pred_check_branch
          %499 = sbr.rel (%p497) target = $region76
        $region75: #{tpu_custom_call.1} parent=67 // pred_region
          %501 = dma.done [#allocation10], 16
        $region76: #{tpu_custom_call.1} parent=67 // pred_fallthru
          _
        // Predicated region
        $region77: #{tpu_custom_call.1} parent=67 // pred_check
          %p502 = pneg %p132
        $region78: #{tpu_custom_call.1} parent=67 // pred_check_branch
          %504 = sbr.rel (%p502) target = $region80
        $region79: #{tpu_custom_call.1} parent=67 // pred_region
          %506 = dma.done [#allocation10], 512
        $region80: #{tpu_custom_call.1} parent=67 // pred_fallthru
          _
        // Predicated region
        $region81: #{tpu_custom_call.1} parent=67 // pred_check
          %p507 = pneg %p153
        $region82: #{tpu_custom_call.1} parent=67 // pred_check_branch
          %509 = sbr.rel (%p507) target = $region84
        $region83: #{tpu_custom_call.1} parent=67 // pred_region
          %511 = dma.done [#allocation13], 16
        $region84: #{tpu_custom_call.1} parent=67 // pred_fallthru
          _
        // Predicated region
        $region85: #{tpu_custom_call.1} parent=67 // pred_check
          %p512 = pneg %p174
        $region86: #{tpu_custom_call.1} parent=67 // pred_check_branch
          %514 = sbr.rel (%p512) target = $region88
        $region87: #{tpu_custom_call.1} parent=67 // pred_region
          %516 = dma.done [#allocation13], 8192
        $region88: #{tpu_custom_call.1} parent=67 // pred_fallthru
          _
        // Predicated region
        $region89: #{tpu_custom_call.1} parent=67 // pred_check
          %p517 = pneg %p195
        $region90: #{tpu_custom_call.1} parent=67 // pred_check_branch
          %519 = sbr.rel (%p517) target = $region92
        $region91: #{tpu_custom_call.1} parent=67 // pred_region
          %521 = dma.done [#allocation16], 128
        $region92: #{tpu_custom_call.1} parent=67 // pred_fallthru
          _
        // Predicated region
        $region93: #{tpu_custom_call.1} parent=67 // pred_check
          %p522 = pneg %p216
        $region94: #{tpu_custom_call.1} parent=67 // pred_check_branch
          %524 = sbr.rel (%p522) target = $region96
        $region95: #{tpu_custom_call.1} parent=67 // pred_region
          %526 = dma.done [#allocation16], 64
        $region96: #{tpu_custom_call.1} parent=67 // pred_fallthru
          _
        // Predicated region
        $region97: #{tpu_custom_call.1} parent=67 // pred_check
          %p527 = pneg %p237
        $region98: #{tpu_custom_call.1} parent=67 // pred_check_branch
          %529 = sbr.rel (%p527) target = $region100
        $region99: #{tpu_custom_call.1} parent=67 // pred_region
          %531 = dma.done [#allocation19], 32
        $region100: #{tpu_custom_call.1} parent=67 // pred_fallthru
          _
        // Predicated region
        $region101: #{tpu_custom_call.1} parent=67 // pred_check
          %p532 = pneg %p279
        $region102: #{tpu_custom_call.1} parent=67 // pred_check_branch
          %534 = sbr.rel (%p532) target = $region104
        $region103: #{tpu_custom_call.1} parent=67 // pred_region
          %536 = dma.done [#allocation19], 16
        $region104: #{tpu_custom_call.1} parent=67 // pred_fallthru
          _
        // Predicated region
        $region105: #{tpu_custom_call.1} parent=67 // pred_check
          %p537 = pneg %p300
        $region106: #{tpu_custom_call.1} parent=67 // pred_check_branch
          %539 = sbr.rel (%p537) target = $region108
        $region107: #{tpu_custom_call.1} parent=67 // pred_region
          %541 = dma.done [#allocation22], 16
        $region108: #{tpu_custom_call.1} parent=67 // pred_fallthru
          _
        %s542 = smul.u32 32, %s39
        %p543 = scmp.lt.s32.totalorder %s38, 1
        %s544 = scalar_select %p543, %s38, 1
        %p545 = scmp.lt.s32.totalorder %s542, 127
        %s546 = scalar_select %p545, %s542, 127
        %s547 = smul.addr %s544, 128
        %s548 = sadd.s32 %s546, %s547
        %s549 = smul.addr %s548, 8
        %s550 = scalar_lea.vmem %s0, %s549
        %p551 = pneg %p69
        %p552 = pneg %p66
        %p553 = pneg %p90
        %p554 = pneg %p87
        %p555 = pneg %p111
        %p556 = pneg %p108
        %p557 = pneg %p132
        %p558 = pneg %p129
        %p559 = pneg %p153
        %p560 = pneg %p150
        %p561 = pneg %p174
        %p562 = pneg %p171
        %p563 = pneg %p195
        %p564 = pneg %p192
        %p565 = pneg %p216
        %p566 = pneg %p213
        %p567 = pneg %p237
        %p568 = pneg %p234
        %p569 = pneg %p258
        %p570 = pneg %p255
        %p571 = pneg %p279
        %p572 = pneg %p276
        %p573 = pneg %p300
        %p574 = pneg %p297
        %p575 = pneg %p326
        %p576 = pneg %p323
        %s577 = sand.u32 %s313, 1
        %s578 = scalar_lea.sflag [#allocation8], %s577
        %s579 = sand.u32 %s313, 1
        %s580 = scalar_lea.vmem [#allocation23], %s579
        %s581 = smul.u32 32, %s39
        %p582 = scmp.lt.s32.totalorder %s38, 1
        %s583 = scalar_select %p582, %s38, 1
        %p584 = scmp.lt.s32.totalorder %s581, 127
        %s585 = scalar_select %p584, %s581, 127
        %s586 = smul.addr %s583, 128
        %s587 = sadd.s32 %s585, %s586
        %s588 = smul.addr %s587, 8
        %s589 = scalar_lea.vmem %s0, %s588
        %s590 = smul.u32 32, %s39
        %p592 = scmp.eq.s32.totalorder %s39, 0
        // Predicated region
        $region109: #{tpu_custom_call.1} parent=67 // pred_check
          %p593 = pneg %p592
        $region110: #{tpu_custom_call.1} parent=67 // pred_check_branch
          %595 = sbr.rel (%p593) target = $region112
        $region111: #{tpu_custom_call.1} parent=67 // pred_region
          // Predicated region
          $region113: #{tpu_custom_call.1} parent=111 // pred_check
            _
          $region114: #{tpu_custom_call.1} parent=111 // pred_check_branch
            %597 = sbr.rel target = $region116
          $region115: #{tpu_custom_call.1} parent=111 // pred_region
            %598 = sst [smem:[#allocation26]] [#allocation25]
            %599 = sst [smem:[#allocation27]] [#allocation24]
          $region116: #{tpu_custom_call.1} parent=111 // pred_fallthru
            _
          %601 = shalt.err (0)
          %s603 = sshll.u32 %s7, 4
          %s604 = int_to_ptr.hbm [resolvable:$true] %s603
          %s605 = sshll.u32 [#allocation3], 4
          %s606 = int_to_ptr.vmem [resolvable:$true] %s605
          %608 = dma.hbm_to_vmem [thread:$0]  %s604, 65536, %s606, [#allocation5]
          %s609 = scalar_lea.sflag [#allocation5], 1
          // Predicated region
          $region117: #{tpu_custom_call.1} parent=111 // pred_check
            _
          $region118: #{tpu_custom_call.1} parent=111 // pred_check_branch
            %611 = sbr.rel target = $region120
          $region119: #{tpu_custom_call.1} parent=111 // pred_region
            %612 = sst [smem:[#allocation26]] [#allocation29]
            %613 = sst [smem:[#allocation27]] [#allocation28]
          $region120: #{tpu_custom_call.1} parent=111 // pred_fallthru
            _
          %615 = shalt.err (0)
          %s617 = sshll.u32 %s9, 4
          %s618 = int_to_ptr.hbm [resolvable:$true] %s617
          %s619 = sshll.u32 [#allocation4], 4
          %s620 = int_to_ptr.vmem [resolvable:$true] %s619
          %622 = dma.hbm_to_vmem [thread:$0]  %s618, 16384, %s620, %s609
          %623 = vst [vmem:[#allocation2] sm:$0xff] -inf
        $region112: #{tpu_custom_call.1} parent=67 // pred_fallthru
          _
        %v624 = vld [vmem:[%s589] sm:$0xff]
        %v625 = vld [vmem:[%s589 + $0x8] sm:$0xff]
        %v626 = vld [vmem:[%s589 + $0x10] sm:$0xff]
        %v627 = vld [vmem:[%s589 + $0x18] sm:$0xff]
        %v628 = vld [vmem:[%s589 + $0x20] sm:$0xff]
        %v629 = vld [vmem:[%s589 + $0x28] sm:$0xff]
        %v630 = vld [vmem:[%s589 + $0x30] sm:$0xff]
        %v631 = vld [vmem:[%s589 + $0x38] sm:$0xff]
        %v632 = vld [vmem:[%s589 + $0x40] sm:$0xff]
        %v633 = vld [vmem:[%s589 + $0x48] sm:$0xff]
        %v634 = vld [vmem:[%s589 + $0x50] sm:$0xff]
        %v635 = vld [vmem:[%s589 + $0x58] sm:$0xff]
        %v636 = vld [vmem:[%s589 + $0x60] sm:$0xff]
        %v637 = vld [vmem:[%s589 + $0x68] sm:$0xff]
        %v638 = vld [vmem:[%s589 + $0x70] sm:$0xff]
        %v639 = vld [vmem:[%s589 + $0x78] sm:$0xff]
        %v640 = vld [vmem:[%s589 + $0x80] sm:$0xff]
        %v641 = vld [vmem:[%s589 + $0x88] sm:$0xff]
        %v642 = vld [vmem:[%s589 + $0x90] sm:$0xff]
        %v643 = vld [vmem:[%s589 + $0x98] sm:$0xff]
        %v644 = vld [vmem:[%s589 + $0xa0] sm:$0xff]
        %v645 = vld [vmem:[%s589 + $0xa8] sm:$0xff]
        %v646 = vld [vmem:[%s589 + $0xb0] sm:$0xff]
        %v647 = vld [vmem:[%s589 + $0xb8] sm:$0xff]
        %v648 = vld [vmem:[%s589 + $0xc0] sm:$0xff]
        %v649 = vld [vmem:[%s589 + $0xc8] sm:$0xff]
        %v650 = vld [vmem:[%s589 + $0xd0] sm:$0xff]
        %v651 = vld [vmem:[%s589 + $0xd8] sm:$0xff]
        %v652 = vld [vmem:[%s589 + $0xe0] sm:$0xff]
        %v653 = vld [vmem:[%s589 + $0xe8] sm:$0xff]
        %v654 = vld [vmem:[%s589 + $0xf0] sm:$0xff]
        %v655 = vld [vmem:[%s589 + $0xf8] sm:$0xff]
        %v656 = vld [vmem:[#allocation6] sm:$0x1]
        %658 = vset.pattern.permute.xlu0 0
        %659 = vperm.xlu0 %658, %v624
        %v660 = vpop.permute.xlu0 %659
        %663 = vset.pattern.permute.xlu0 0
        %664 = vperm.xlu0 %663, %v625
        %v665 = vpop.permute.xlu0 %664
        %668 = vset.pattern.permute.xlu0 0
        %669 = vperm.xlu0 %668, %v626
        %v670 = vpop.permute.xlu0 %669
        %673 = vset.pattern.permute.xlu0 0
        %674 = vperm.xlu0 %673, %v627
        %v675 = vpop.permute.xlu0 %674
        %678 = vset.pattern.permute.xlu0 0
        %679 = vperm.xlu0 %678, %v628
        %v680 = vpop.permute.xlu0 %679
        %683 = vset.pattern.permute.xlu0 0
        %684 = vperm.xlu0 %683, %v629
        %v685 = vpop.permute.xlu0 %684
        %688 = vset.pattern.permute.xlu0 0
        %689 = vperm.xlu0 %688, %v630
        %v690 = vpop.permute.xlu0 %689
        %693 = vset.pattern.permute.xlu0 0
        %694 = vperm.xlu0 %693, %v631
        %v695 = vpop.permute.xlu0 %694
        %698 = vset.pattern.permute.xlu0 0
        %699 = vperm.xlu0 %698, %v632
        %v700 = vpop.permute.xlu0 %699
        %703 = vset.pattern.permute.xlu0 0
        %704 = vperm.xlu0 %703, %v633
        %v705 = vpop.permute.xlu0 %704
        %708 = vset.pattern.permute.xlu0 0
        %709 = vperm.xlu0 %708, %v634
        %v710 = vpop.permute.xlu0 %709
        %713 = vset.pattern.permute.xlu0 0
        %714 = vperm.xlu0 %713, %v635
        %v715 = vpop.permute.xlu0 %714
        %718 = vset.pattern.permute.xlu0 0
        %719 = vperm.xlu0 %718, %v636
        %v720 = vpop.permute.xlu0 %719
        %723 = vset.pattern.permute.xlu0 0
        %724 = vperm.xlu0 %723, %v637
        %v725 = vpop.permute.xlu0 %724
        %728 = vset.pattern.permute.xlu0 0
        %729 = vperm.xlu0 %728, %v638
        %v730 = vpop.permute.xlu0 %729
        %733 = vset.pattern.permute.xlu0 0
        %734 = vperm.xlu0 %733, %v639
        %v735 = vpop.permute.xlu0 %734
        %738 = vset.pattern.permute.xlu0 0
        %739 = vperm.xlu0 %738, %v640
        %v740 = vpop.permute.xlu0 %739
        %743 = vset.pattern.permute.xlu0 0
        %744 = vperm.xlu0 %743, %v641
        %v745 = vpop.permute.xlu0 %744
        %748 = vset.pattern.permute.xlu0 0
        %749 = vperm.xlu0 %748, %v642
        %v750 = vpop.permute.xlu0 %749
        %753 = vset.pattern.permute.xlu0 0
        %754 = vperm.xlu0 %753, %v643
        %v755 = vpop.permute.xlu0 %754
        %758 = vset.pattern.permute.xlu0 0
        %759 = vperm.xlu0 %758, %v644
        %v760 = vpop.permute.xlu0 %759
        %763 = vset.pattern.permute.xlu0 0
        %764 = vperm.xlu0 %763, %v645
        %v765 = vpop.permute.xlu0 %764
        %768 = vset.pattern.permute.xlu0 0
        %769 = vperm.xlu0 %768, %v646
        %v770 = vpop.permute.xlu0 %769
        %773 = vset.pattern.permute.xlu0 0
        %774 = vperm.xlu0 %773, %v647
        %v775 = vpop.permute.xlu0 %774
        %778 = vset.pattern.permute.xlu0 0
        %779 = vperm.xlu0 %778, %v648
        %v780 = vpop.permute.xlu0 %779
        %783 = vset.pattern.permute.xlu0 0
        %784 = vperm.xlu0 %783, %v649
        %v785 = vpop.permute.xlu0 %784
        %788 = vset.pattern.permute.xlu0 0
        %789 = vperm.xlu0 %788, %v650
        %v790 = vpop.permute.xlu0 %789
        %793 = vset.pattern.permute.xlu0 0
        %794 = vperm.xlu0 %793, %v651
        %v795 = vpop.permute.xlu0 %794
        %798 = vset.pattern.permute.xlu0 0
        %799 = vperm.xlu0 %798, %v652
        %v800 = vpop.permute.xlu0 %799
        %803 = vset.pattern.permute.xlu0 0
        %804 = vperm.xlu0 %803, %v653
        %v805 = vpop.permute.xlu0 %804
        %808 = vset.pattern.permute.xlu0 0
        %809 = vperm.xlu0 %808, %v654
        %v810 = vpop.permute.xlu0 %809
        %813 = vset.pattern.permute.xlu0 0
        %814 = vperm.xlu0 %813, %v655
        %v815 = vpop.permute.xlu0 %814
        %v817 = vperm.slane %v656, 0
        %v818 = vmul.f32 %v660, %v817
        %v819 = vmul.f32 %v665, %v817
        %v820 = vmul.f32 %v670, %v817
        %v821 = vmul.f32 %v675, %v817
        %v822 = vmul.f32 %v680, %v817
        %v823 = vmul.f32 %v685, %v817
        %v824 = vmul.f32 %v690, %v817
        %v825 = vmul.f32 %v695, %v817
        %v826 = vmul.f32 %v700, %v817
        %v827 = vmul.f32 %v705, %v817
        %v828 = vmul.f32 %v710, %v817
        %v829 = vmul.f32 %v715, %v817
        %v830 = vmul.f32 %v720, %v817
        %v831 = vmul.f32 %v725, %v817
        %v832 = vmul.f32 %v730, %v817
        %v833 = vmul.f32 %v735, %v817
        %v834 = vmul.f32 %v740, %v817
        %v835 = vmul.f32 %v745, %v817
        %v836 = vmul.f32 %v750, %v817
        %v837 = vmul.f32 %v755, %v817
        %v838 = vmul.f32 %v760, %v817
        %v839 = vmul.f32 %v765, %v817
        %v840 = vmul.f32 %v770, %v817
        %v841 = vmul.f32 %v775, %v817
        %v842 = vmul.f32 %v780, %v817
        %v843 = vmul.f32 %v785, %v817
        %v844 = vmul.f32 %v790, %v817
        %v845 = vmul.f32 %v795, %v817
        %v846 = vmul.f32 %v800, %v817
        %v847 = vmul.f32 %v805, %v817
        %v848 = vmul.f32 %v810, %v817
        %v849 = vmul.f32 %v815, %v817
        %v850 = vld [vmem:[#allocation6 + $0x1] sm:$0x1]
        %851 = vset.pattern.permute.xlu0 1
        %852 = vperm.xlu0 %851, %v624
        %v853 = vpop.permute.xlu0 %852
        %855 = vset.pattern.permute.xlu0 1
        %856 = vperm.xlu0 %855, %v625
        %v857 = vpop.permute.xlu0 %856
        %859 = vset.pattern.permute.xlu0 1
        %860 = vperm.xlu0 %859, %v626
        %v861 = vpop.permute.xlu0 %860
        %863 = vset.pattern.permute.xlu0 1
        %864 = vperm.xlu0 %863, %v627
        %v865 = vpop.permute.xlu0 %864
        %867 = vset.pattern.permute.xlu0 1
        %868 = vperm.xlu0 %867, %v628
        %v869 = vpop.permute.xlu0 %868
        %871 = vset.pattern.permute.xlu0 1
        %872 = vperm.xlu0 %871, %v629
        %v873 = vpop.permute.xlu0 %872
        %875 = vset.pattern.permute.xlu0 1
        %876 = vperm.xlu0 %875, %v630
        %v877 = vpop.permute.xlu0 %876
        %879 = vset.pattern.permute.xlu0 1
        %880 = vperm.xlu0 %879, %v631
        %v881 = vpop.permute.xlu0 %880
        %883 = vset.pattern.permute.xlu0 1
        %884 = vperm.xlu0 %883, %v632
        %v885 = vpop.permute.xlu0 %884
        %887 = vset.pattern.permute.xlu0 1
        %888 = vperm.xlu0 %887, %v633
        %v889 = vpop.permute.xlu0 %888
        %891 = vset.pattern.permute.xlu0 1
        %892 = vperm.xlu0 %891, %v634
        %v893 = vpop.permute.xlu0 %892
        %895 = vset.pattern.permute.xlu0 1
        %896 = vperm.xlu0 %895, %v635
        %v897 = vpop.permute.xlu0 %896
        %899 = vset.pattern.permute.xlu0 1
        %900 = vperm.xlu0 %899, %v636
        %v901 = vpop.permute.xlu0 %900
        %903 = vset.pattern.permute.xlu0 1
        %904 = vperm.xlu0 %903, %v637
        %v905 = vpop.permute.xlu0 %904
        %907 = vset.pattern.permute.xlu0 1
        %908 = vperm.xlu0 %907, %v638
        %v909 = vpop.permute.xlu0 %908
        %911 = vset.pattern.permute.xlu0 1
        %912 = vperm.xlu0 %911, %v639
        %v913 = vpop.permute.xlu0 %912
        %915 = vset.pattern.permute.xlu0 1
        %916 = vperm.xlu0 %915, %v640
        %v917 = vpop.permute.xlu0 %916
        %919 = vset.pattern.permute.xlu0 1
        %920 = vperm.xlu0 %919, %v641
        %v921 = vpop.permute.xlu0 %920
        %923 = vset.pattern.permute.xlu0 1
        %924 = vperm.xlu0 %923, %v642
        %v925 = vpop.permute.xlu0 %924
        %927 = vset.pattern.permute.xlu0 1
        %928 = vperm.xlu0 %927, %v643
        %v929 = vpop.permute.xlu0 %928
        %931 = vset.pattern.permute.xlu0 1
        %932 = vperm.xlu0 %931, %v644
        %v933 = vpop.permute.xlu0 %932
        %935 = vset.pattern.permute.xlu0 1
        %936 = vperm.xlu0 %935, %v645
        %v937 = vpop.permute.xlu0 %936
        %939 = vset.pattern.permute.xlu0 1
        %940 = vperm.xlu0 %939, %v646
        %v941 = vpop.permute.xlu0 %940
        %943 = vset.pattern.permute.xlu0 1
        %944 = vperm.xlu0 %943, %v647
        %v945 = vpop.permute.xlu0 %944
        %947 = vset.pattern.permute.xlu0 1
        %948 = vperm.xlu0 %947, %v648
        %v949 = vpop.permute.xlu0 %948
        %951 = vset.pattern.permute.xlu0 1
        %952 = vperm.xlu0 %951, %v649
        %v953 = vpop.permute.xlu0 %952
        %955 = vset.pattern.permute.xlu0 1
        %956 = vperm.xlu0 %955, %v650
        %v957 = vpop.permute.xlu0 %956
        %959 = vset.pattern.permute.xlu0 1
        %960 = vperm.xlu0 %959, %v651
        %v961 = vpop.permute.xlu0 %960
        %963 = vset.pattern.permute.xlu0 1
        %964 = vperm.xlu0 %963, %v652
        %v965 = vpop.permute.xlu0 %964
        %967 = vset.pattern.permute.xlu0 1
        %968 = vperm.xlu0 %967, %v653
        %v969 = vpop.permute.xlu0 %968
        %971 = vset.pattern.permute.xlu0 1
        %972 = vperm.xlu0 %971, %v654
        %v973 = vpop.permute.xlu0 %972
        %975 = vset.pattern.permute.xlu0 1
        %976 = vperm.xlu0 %975, %v655
        %v977 = vpop.permute.xlu0 %976
        %v979 = vperm.slane %v850, 0
        %v980 = vmul.f32 %v853, %v979
        %v981 = vmul.f32 %v857, %v979
        %v982 = vmul.f32 %v861, %v979
        %v983 = vmul.f32 %v865, %v979
        %v984 = vmul.f32 %v869, %v979
        %v985 = vmul.f32 %v873, %v979
        %v986 = vmul.f32 %v877, %v979
        %v987 = vmul.f32 %v881, %v979
        %v988 = vmul.f32 %v885, %v979
        %v989 = vmul.f32 %v889, %v979
        %v990 = vmul.f32 %v893, %v979
        %v991 = vmul.f32 %v897, %v979
        %v992 = vmul.f32 %v901, %v979
        %v993 = vmul.f32 %v905, %v979
        %v994 = vmul.f32 %v909, %v979
        %v995 = vmul.f32 %v913, %v979
        %v996 = vmul.f32 %v917, %v979
        %v997 = vmul.f32 %v921, %v979
        %v998 = vmul.f32 %v925, %v979
        %v999 = vmul.f32 %v929, %v979
        %v1000 = vmul.f32 %v933, %v979
        %v1001 = vmul.f32 %v937, %v979
        %v1002 = vmul.f32 %v941, %v979
        %v1003 = vmul.f32 %v945, %v979
        %v1004 = vmul.f32 %v949, %v979
        %v1005 = vmul.f32 %v953, %v979
        %v1006 = vmul.f32 %v957, %v979
        %v1007 = vmul.f32 %v961, %v979
        %v1008 = vmul.f32 %v965, %v979
        %v1009 = vmul.f32 %v969, %v979
        %v1010 = vmul.f32 %v973, %v979
        %v1011 = vmul.f32 %v977, %v979
        %v1012 = vadd.f32 %v818, %v980
        %v1013 = vadd.f32 %v819, %v981
        %v1014 = vadd.f32 %v820, %v982
        %v1015 = vadd.f32 %v821, %v983
        %v1016 = vadd.f32 %v822, %v984
        %v1017 = vadd.f32 %v823, %v985
        %v1018 = vadd.f32 %v824, %v986
        %v1019 = vadd.f32 %v825, %v987
        %v1020 = vadd.f32 %v826, %v988
        %v1021 = vadd.f32 %v827, %v989
        %v1022 = vadd.f32 %v828, %v990
        %v1023 = vadd.f32 %v829, %v991
        %v1024 = vadd.f32 %v830, %v992
        %v1025 = vadd.f32 %v831, %v993
        %v1026 = vadd.f32 %v832, %v994
        %v1027 = vadd.f32 %v833, %v995
        %v1028 = vadd.f32 %v834, %v996
        %v1029 = vadd.f32 %v835, %v997
        %v1030 = vadd.f32 %v836, %v998
        %v1031 = vadd.f32 %v837, %v999
        %v1032 = vadd.f32 %v838, %v1000
        %v1033 = vadd.f32 %v839, %v1001
        %v1034 = vadd.f32 %v840, %v1002
        %v1035 = vadd.f32 %v841, %v1003
        %v1036 = vadd.f32 %v842, %v1004
        %v1037 = vadd.f32 %v843, %v1005
        %v1038 = vadd.f32 %v844, %v1006
        %v1039 = vadd.f32 %v845, %v1007
        %v1040 = vadd.f32 %v846, %v1008
        %v1041 = vadd.f32 %v847, %v1009
        %v1042 = vadd.f32 %v848, %v1010
        %v1043 = vadd.f32 %v849, %v1011
        %v1044 = vld [vmem:[#allocation6 + $0x2] sm:$0x1]
        %1045 = vset.pattern.permute.xlu0 2
        %1046 = vperm.xlu0 %1045, %v624
        %v1047 = vpop.permute.xlu0 %1046
        %1049 = vset.pattern.permute.xlu0 2
        %1050 = vperm.xlu0 %1049, %v625
        %v1051 = vpop.permute.xlu0 %1050
        %1053 = vset.pattern.permute.xlu0 2
        %1054 = vperm.xlu0 %1053, %v626
        %v1055 = vpop.permute.xlu0 %1054
        %1057 = vset.pattern.permute.xlu0 2
        %1058 = vperm.xlu0 %1057, %v627
        %v1059 = vpop.permute.xlu0 %1058
        %1061 = vset.pattern.permute.xlu0 2
        %1062 = vperm.xlu0 %1061, %v628
        %v1063 = vpop.permute.xlu0 %1062
        %1065 = vset.pattern.permute.xlu0 2
        %1066 = vperm.xlu0 %1065, %v629
        %v1067 = vpop.permute.xlu0 %1066
        %1069 = vset.pattern.permute.xlu0 2
        %1070 = vperm.xlu0 %1069, %v630
        %v1071 = vpop.permute.xlu0 %1070
        %1073 = vset.pattern.permute.xlu0 2
        %1074 = vperm.xlu0 %1073, %v631
        %v1075 = vpop.permute.xlu0 %1074
        %1077 = vset.pattern.permute.xlu0 2
        %1078 = vperm.xlu0 %1077, %v632
        %v1079 = vpop.permute.xlu0 %1078
        %1081 = vset.pattern.permute.xlu0 2
        %1082 = vperm.xlu0 %1081, %v633
        %v1083 = vpop.permute.xlu0 %1082
        %1085 = vset.pattern.permute.xlu0 2
        %1086 = vperm.xlu0 %1085, %v634
        %v1087 = vpop.permute.xlu0 %1086
        %1089 = vset.pattern.permute.xlu0 2
        %1090 = vperm.xlu0 %1089, %v635
        %v1091 = vpop.permute.xlu0 %1090
        %1093 = vset.pattern.permute.xlu0 2
        %1094 = vperm.xlu0 %1093, %v636
        %v1095 = vpop.permute.xlu0 %1094
        %1097 = vset.pattern.permute.xlu0 2
        %1098 = vperm.xlu0 %1097, %v637
        %v1099 = vpop.permute.xlu0 %1098
        %1101 = vset.pattern.permute.xlu0 2
        %1102 = vperm.xlu0 %1101, %v638
        %v1103 = vpop.permute.xlu0 %1102
        %1105 = vset.pattern.permute.xlu0 2
        %1106 = vperm.xlu0 %1105, %v639
        %v1107 = vpop.permute.xlu0 %1106
        %1109 = vset.pattern.permute.xlu0 2
        %1110 = vperm.xlu0 %1109, %v640
        %v1111 = vpop.permute.xlu0 %1110
        %1113 = vset.pattern.permute.xlu0 2
        %1114 = vperm.xlu0 %1113, %v641
        %v1115 = vpop.permute.xlu0 %1114
        %1117 = vset.pattern.permute.xlu0 2
        %1118 = vperm.xlu0 %1117, %v642
        %v1119 = vpop.permute.xlu0 %1118
        %1121 = vset.pattern.permute.xlu0 2
        %1122 = vperm.xlu0 %1121, %v643
        %v1123 = vpop.permute.xlu0 %1122
        %1125 = vset.pattern.permute.xlu0 2
        %1126 = vperm.xlu0 %1125, %v644
        %v1127 = vpop.permute.xlu0 %1126
        %1129 = vset.pattern.permute.xlu0 2
        %1130 = vperm.xlu0 %1129, %v645
        %v1131 = vpop.permute.xlu0 %1130
        %1133 = vset.pattern.permute.xlu0 2
        %1134 = vperm.xlu0 %1133, %v646
        %v1135 = vpop.permute.xlu0 %1134
        %1137 = vset.pattern.permute.xlu0 2
        %1138 = vperm.xlu0 %1137, %v647
        %v1139 = vpop.permute.xlu0 %1138
        %1141 = vset.pattern.permute.xlu0 2
        %1142 = vperm.xlu0 %1141, %v648
        %v1143 = vpop.permute.xlu0 %1142
        %1145 = vset.pattern.permute.xlu0 2
        %1146 = vperm.xlu0 %1145, %v649
        %v1147 = vpop.permute.xlu0 %1146
        %1149 = vset.pattern.permute.xlu0 2
        %1150 = vperm.xlu0 %1149, %v650
        %v1151 = vpop.permute.xlu0 %1150
        %1153 = vset.pattern.permute.xlu0 2
        %1154 = vperm.xlu0 %1153, %v651
        %v1155 = vpop.permute.xlu0 %1154
        %1157 = vset.pattern.permute.xlu0 2
        %1158 = vperm.xlu0 %1157, %v652
        %v1159 = vpop.permute.xlu0 %1158
        %1161 = vset.pattern.permute.xlu0 2
        %1162 = vperm.xlu0 %1161, %v653
        %v1163 = vpop.permute.xlu0 %1162
        %1165 = vset.pattern.permute.xlu0 2
        %1166 = vperm.xlu0 %1165, %v654
        %v1167 = vpop.permute.xlu0 %1166
        %1169 = vset.pattern.permute.xlu0 2
        %1170 = vperm.xlu0 %1169, %v655
        %v1171 = vpop.permute.xlu0 %1170
        %v1173 = vperm.slane %v1044, 0
        %v1174 = vmul.f32 %v1047, %v1173
        %v1175 = vmul.f32 %v1051, %v1173
        %v1176 = vmul.f32 %v1055, %v1173
        %v1177 = vmul.f32 %v1059, %v1173
        %v1178 = vmul.f32 %v1063, %v1173
        %v1179 = vmul.f32 %v1067, %v1173
        %v1180 = vmul.f32 %v1071, %v1173
        %v1181 = vmul.f32 %v1075, %v1173
        %v1182 = vmul.f32 %v1079, %v1173
        %v1183 = vmul.f32 %v1083, %v1173
        %v1184 = vmul.f32 %v1087, %v1173
        %v1185 = vmul.f32 %v1091, %v1173
        %v1186 = vmul.f32 %v1095, %v1173
        %v1187 = vmul.f32 %v1099, %v1173
        %v1188 = vmul.f32 %v1103, %v1173
        %v1189 = vmul.f32 %v1107, %v1173
        %v1190 = vmul.f32 %v1111, %v1173
        %v1191 = vmul.f32 %v1115, %v1173
        %v1192 = vmul.f32 %v1119, %v1173
        %v1193 = vmul.f32 %v1123, %v1173
        %v1194 = vmul.f32 %v1127, %v1173
        %v1195 = vmul.f32 %v1131, %v1173
        %v1196 = vmul.f32 %v1135, %v1173
        %v1197 = vmul.f32 %v1139, %v1173
        %v1198 = vmul.f32 %v1143, %v1173
        %v1199 = vmul.f32 %v1147, %v1173
        %v1200 = vmul.f32 %v1151, %v1173
        %v1201 = vmul.f32 %v1155, %v1173
        %v1202 = vmul.f32 %v1159, %v1173
        %v1203 = vmul.f32 %v1163, %v1173
        %v1204 = vmul.f32 %v1167, %v1173
        %v1205 = vmul.f32 %v1171, %v1173
        %v1206 = vadd.f32 %v1012, %v1174
        %v1207 = vadd.f32 %v1013, %v1175
        %v1208 = vadd.f32 %v1014, %v1176
        %v1209 = vadd.f32 %v1015, %v1177
        %v1210 = vadd.f32 %v1016, %v1178
        %v1211 = vadd.f32 %v1017, %v1179
        %v1212 = vadd.f32 %v1018, %v1180
        %v1213 = vadd.f32 %v1019, %v1181
        %v1214 = vadd.f32 %v1020, %v1182
        %v1215 = vadd.f32 %v1021, %v1183
        %v1216 = vadd.f32 %v1022, %v1184
        %v1217 = vadd.f32 %v1023, %v1185
        %v1218 = vadd.f32 %v1024, %v1186
        %v1219 = vadd.f32 %v1025, %v1187
        %v1220 = vadd.f32 %v1026, %v1188
        %v1221 = vadd.f32 %v1027, %v1189
        %v1222 = vadd.f32 %v1028, %v1190
        %v1223 = vadd.f32 %v1029, %v1191
        %v1224 = vadd.f32 %v1030, %v1192
        %v1225 = vadd.f32 %v1031, %v1193
        %v1226 = vadd.f32 %v1032, %v1194
        %v1227 = vadd.f32 %v1033, %v1195
        %v1228 = vadd.f32 %v1034, %v1196
        %v1229 = vadd.f32 %v1035, %v1197
        %v1230 = vadd.f32 %v1036, %v1198
        %v1231 = vadd.f32 %v1037, %v1199
        %v1232 = vadd.f32 %v1038, %v1200
        %v1233 = vadd.f32 %v1039, %v1201
        %v1234 = vadd.f32 %v1040, %v1202
        %v1235 = vadd.f32 %v1041, %v1203
        %v1236 = vadd.f32 %v1042, %v1204
        %v1237 = vadd.f32 %v1043, %v1205
        %v1238 = vld [vmem:[#allocation9] sm:$0x1]
        %v1240 = vperm.slane %v1238, 0
        %v1242 = vadd.f32 %v1206, %v1240
        %v1243 = vadd.f32 %v1207, %v1240
        %v1244 = vadd.f32 %v1208, %v1240
        %v1245 = vadd.f32 %v1209, %v1240
        %v1246 = vadd.f32 %v1210, %v1240
        %v1247 = vadd.f32 %v1211, %v1240
        %v1248 = vadd.f32 %v1212, %v1240
        %v1249 = vadd.f32 %v1213, %v1240
        %v1250 = vadd.f32 %v1214, %v1240
        %v1251 = vadd.f32 %v1215, %v1240
        %v1252 = vadd.f32 %v1216, %v1240
        %v1253 = vadd.f32 %v1217, %v1240
        %v1254 = vadd.f32 %v1218, %v1240
        %v1255 = vadd.f32 %v1219, %v1240
        %v1256 = vadd.f32 %v1220, %v1240
        %v1257 = vadd.f32 %v1221, %v1240
        %v1258 = vadd.f32 %v1222, %v1240
        %v1259 = vadd.f32 %v1223, %v1240
        %v1260 = vadd.f32 %v1224, %v1240
        %v1261 = vadd.f32 %v1225, %v1240
        %v1262 = vadd.f32 %v1226, %v1240
        %v1263 = vadd.f32 %v1227, %v1240
        %v1264 = vadd.f32 %v1228, %v1240
        %v1265 = vadd.f32 %v1229, %v1240
        %v1266 = vadd.f32 %v1230, %v1240
        %v1267 = vadd.f32 %v1231, %v1240
        %v1268 = vadd.f32 %v1232, %v1240
        %v1269 = vadd.f32 %v1233, %v1240
        %v1270 = vadd.f32 %v1234, %v1240
        %v1271 = vadd.f32 %v1235, %v1240
        %v1272 = vadd.f32 %v1236, %v1240
        %v1273 = vadd.f32 %v1237, %v1240
        %v1274 = vmax.f32 %v1242, 0.0
        %v1275 = vmax.f32 %v1243, 0.0
        %v1276 = vmax.f32 %v1244, 0.0
        %v1277 = vmax.f32 %v1245, 0.0
        %v1278 = vmax.f32 %v1246, 0.0
        %v1279 = vmax.f32 %v1247, 0.0
        %v1280 = vmax.f32 %v1248, 0.0
        %v1281 = vmax.f32 %v1249, 0.0
        %v1282 = vmax.f32 %v1250, 0.0
        %v1283 = vmax.f32 %v1251, 0.0
        %v1284 = vmax.f32 %v1252, 0.0
        %v1285 = vmax.f32 %v1253, 0.0
        %v1286 = vmax.f32 %v1254, 0.0
        %v1287 = vmax.f32 %v1255, 0.0
        %v1288 = vmax.f32 %v1256, 0.0
        %v1289 = vmax.f32 %v1257, 0.0
        %v1290 = vmax.f32 %v1258, 0.0
        %v1291 = vmax.f32 %v1259, 0.0
        %v1292 = vmax.f32 %v1260, 0.0
        %v1293 = vmax.f32 %v1261, 0.0
        %v1294 = vmax.f32 %v1262, 0.0
        %v1295 = vmax.f32 %v1263, 0.0
        %v1296 = vmax.f32 %v1264, 0.0
        %v1297 = vmax.f32 %v1265, 0.0
        %v1298 = vmax.f32 %v1266, 0.0
        %v1299 = vmax.f32 %v1267, 0.0
        %v1300 = vmax.f32 %v1268, 0.0
        %v1301 = vmax.f32 %v1269, 0.0
        %v1302 = vmax.f32 %v1270, 0.0
        %v1303 = vmax.f32 %v1271, 0.0
        %v1304 = vmax.f32 %v1272, 0.0
        %v1305 = vmax.f32 %v1273, 0.0
        %v1306 = vpack.c.bf16 %v1275, %v1274
        %v1307 = vpack.c.bf16 %v1277, %v1276
        %v1308 = vpack.c.bf16 %v1279, %v1278
        %v1309 = vpack.c.bf16 %v1281, %v1280
        %v1310 = vpack.c.bf16 %v1283, %v1282
        %v1311 = vpack.c.bf16 %v1285, %v1284
        %v1312 = vpack.c.bf16 %v1287, %v1286
        %v1313 = vpack.c.bf16 %v1289, %v1288
        %v1314 = vpack.c.bf16 %v1291, %v1290
        %v1315 = vpack.c.bf16 %v1293, %v1292
        %v1316 = vpack.c.bf16 %v1295, %v1294
        %v1317 = vpack.c.bf16 %v1297, %v1296
        %v1318 = vpack.c.bf16 %v1299, %v1298
        %v1319 = vpack.c.bf16 %v1301, %v1300
        %v1320 = vpack.c.bf16 %v1303, %v1302
        %v1321 = vpack.c.bf16 %v1305, %v1304
        %v1322 = vld [vmem:[#allocation11] sm:$0xf]
        %v1323 = vld [vmem:[#allocation11 + $0x4] sm:$0xf]
        %v1324 = vld [vmem:[#allocation11 + $0x8] sm:$0xf]
        %v1325 = vld [vmem:[#allocation11 + $0xc] sm:$0xf]
        %v1326 = vld [vmem:[#allocation11 + $0x10] sm:$0xf]
        %v1327 = vld [vmem:[#allocation11 + $0x14] sm:$0xf]
        %v1328 = vld [vmem:[#allocation11 + $0x18] sm:$0xf]
        %v1329 = vld [vmem:[#allocation11 + $0x1c] sm:$0xf]
        %v1330 = vld [vmem:[#allocation12] sm:$0x1]
        %v1332 = vperm.slane %v1330, 0
        %v1342 = vunpack.c.l.b16 %v1322
        %v1343 = vunpack.c.l.b16 %v1323
        %v1344 = vunpack.c.l.b16 %v1324
        %v1345 = vunpack.c.l.b16 %v1325
        %v1346 = vunpack.c.l.b16 %v1326
        %v1347 = vunpack.c.l.b16 %v1327
        %v1348 = vunpack.c.l.b16 %v1328
        %v1349 = vunpack.c.l.b16 %v1329
        %v1350 = vpack.c.b16 %v1343, %v1342
        %v1351 = vpack.c.b16 %v1345, %v1344
        %v1352 = vpack.c.b16 %v1347, %v1346
        %v1353 = vpack.c.b16 %v1349, %v1348
        %vm1358 = vcmask 523264
        %v1360 = vsel %vm1358, %v1306, 0
        %v1363 = vsel %vm1358, %v1307, 0
        %v1366 = vsel %vm1358, %v1308, 0
        %v1369 = vsel %vm1358, %v1309, 0
        %v1372 = vsel %vm1358, %v1310, 0
        %v1375 = vsel %vm1358, %v1311, 0
        %v1378 = vsel %vm1358, %v1312, 0
        %v1381 = vsel %vm1358, %v1313, 0
        %v1384 = vsel %vm1358, %v1314, 0
        %v1387 = vsel %vm1358, %v1315, 0
        %v1390 = vsel %vm1358, %v1316, 0
        %v1393 = vsel %vm1358, %v1317, 0
        %v1396 = vsel %vm1358, %v1318, 0
        %v1399 = vsel %vm1358, %v1319, 0
        %v1402 = vsel %vm1358, %v1320, 0
        %v1405 = vsel %vm1358, %v1321, 0
        %1407 = vmatpush.bf16.msra.mxu0 0
        %1408 = vmatpush.bf16.msra.mxu0 0
        %1409 = vmatpush.bf16.msra.mxu0 0
        %1410 = vmatpush.bf16.msra.mxu0 0
        %1411 = vmatpush.bf16.msra.mxu0 %v1353
        %1412 = vmatpush.bf16.msra.mxu0 %v1352
        %1413 = vmatpush.bf16.msra.mxu0 %v1351
        %1414 = vmatpush.bf16.msra.mxu0 %v1350
        %1415 = vmatmul.bf16.gmra.mxu0 %v1360
        %v1416 = vpop.f32.mrf.mxu0
        %v1417 = vadd.f32 %v1332, %v1416
        %v1418 = vpop.f32.mrf.mxu0
        %v1419 = vadd.f32 %v1332, %v1418
        %1420 = vmatmul.bf16.gmra.mxu0 %v1363
        %v1421 = vpop.f32.mrf.mxu0
        %v1422 = vadd.f32 %v1332, %v1421
        %v1423 = vpop.f32.mrf.mxu0
        %v1424 = vadd.f32 %v1332, %v1423
        %1425 = vmatmul.bf16.gmra.mxu0 %v1366
        %v1426 = vpop.f32.mrf.mxu0
        %v1427 = vadd.f32 %v1332, %v1426
        %v1428 = vpop.f32.mrf.mxu0
        %v1429 = vadd.f32 %v1332, %v1428
        %1430 = vmatmul.bf16.gmra.mxu0 %v1369
        %v1431 = vpop.f32.mrf.mxu0
        %v1432 = vadd.f32 %v1332, %v1431
        %v1433 = vpop.f32.mrf.mxu0
        %v1434 = vadd.f32 %v1332, %v1433
        %1435 = vmatmul.bf16.gmra.mxu0 %v1372
        %v1436 = vpop.f32.mrf.mxu0
        %v1437 = vadd.f32 %v1332, %v1436
        %v1438 = vpop.f32.mrf.mxu0
        %v1439 = vadd.f32 %v1332, %v1438
        %1440 = vmatmul.bf16.gmra.mxu0 %v1375
        %v1441 = vpop.f32.mrf.mxu0
        %v1442 = vadd.f32 %v1332, %v1441
        %v1443 = vpop.f32.mrf.mxu0
        %v1444 = vadd.f32 %v1332, %v1443
        %1445 = vmatmul.bf16.gmra.mxu0 %v1378
        %v1446 = vpop.f32.mrf.mxu0
        %v1447 = vadd.f32 %v1332, %v1446
        %v1448 = vpop.f32.mrf.mxu0
        %v1449 = vadd.f32 %v1332, %v1448
        %1450 = vmatmul.bf16.gmra.mxu0 %v1381
        %v1451 = vpop.f32.mrf.mxu0
        %v1452 = vadd.f32 %v1332, %v1451
        %v1453 = vpop.f32.mrf.mxu0
        %v1454 = vadd.f32 %v1332, %v1453
        %1455 = vmatmul.bf16.gmra.mxu0 %v1384
        %v1456 = vpop.f32.mrf.mxu0
        %v1457 = vadd.f32 %v1332, %v1456
        %v1458 = vpop.f32.mrf.mxu0
        %v1459 = vadd.f32 %v1332, %v1458
        %1460 = vmatmul.bf16.gmra.mxu0 %v1387
        %v1461 = vpop.f32.mrf.mxu0
        %v1462 = vadd.f32 %v1332, %v1461
        %v1463 = vpop.f32.mrf.mxu0
        %v1464 = vadd.f32 %v1332, %v1463
        %1465 = vmatmul.bf16.gmra.mxu0 %v1390
        %v1466 = vpop.f32.mrf.mxu0
        %v1467 = vadd.f32 %v1332, %v1466
        %v1468 = vpop.f32.mrf.mxu0
        %v1469 = vadd.f32 %v1332, %v1468
        %1470 = vmatmul.bf16.gmra.mxu0 %v1393
        %v1471 = vpop.f32.mrf.mxu0
        %v1472 = vadd.f32 %v1332, %v1471
        %v1473 = vpop.f32.mrf.mxu0
        %v1474 = vadd.f32 %v1332, %v1473
        %1475 = vmatmul.bf16.gmra.mxu0 %v1396
        %v1476 = vpop.f32.mrf.mxu0
        %v1477 = vadd.f32 %v1332, %v1476
        %v1478 = vpop.f32.mrf.mxu0
        %v1479 = vadd.f32 %v1332, %v1478
        %1480 = vmatmul.bf16.gmra.mxu0 %v1399
        %v1481 = vpop.f32.mrf.mxu0
        %v1482 = vadd.f32 %v1332, %v1481
        %v1483 = vpop.f32.mrf.mxu0
        %v1484 = vadd.f32 %v1332, %v1483
        %1485 = vmatmul.bf16.gmra.mxu0 %v1402
        %v1486 = vpop.f32.mrf.mxu0
        %v1487 = vadd.f32 %v1332, %v1486
        %v1488 = vpop.f32.mrf.mxu0
        %v1489 = vadd.f32 %v1332, %v1488
        %1490 = vmatmul.bf16.gmra.mxu0 %v1405
        %v1491 = vpop.f32.mrf.mxu0
        %v1492 = vadd.f32 %v1332, %v1491
        %v1493 = vpop.f32.mrf.mxu0
        %v1494 = vadd.f32 %v1332, %v1493
        %1495 = vdwg.mxu0
        %v1496 = vmax.f32 %v1417, 0.0
        %v1497 = vmax.f32 %v1419, 0.0
        %v1498 = vmax.f32 %v1422, 0.0
        %v1499 = vmax.f32 %v1424, 0.0
        %v1500 = vmax.f32 %v1427, 0.0
        %v1501 = vmax.f32 %v1429, 0.0
        %v1502 = vmax.f32 %v1432, 0.0
        %v1503 = vmax.f32 %v1434, 0.0
        %v1504 = vmax.f32 %v1437, 0.0
        %v1505 = vmax.f32 %v1439, 0.0
        %v1506 = vmax.f32 %v1442, 0.0
        %v1507 = vmax.f32 %v1444, 0.0
        %v1508 = vmax.f32 %v1447, 0.0
        %v1509 = vmax.f32 %v1449, 0.0
        %v1510 = vmax.f32 %v1452, 0.0
        %v1511 = vmax.f32 %v1454, 0.0
        %v1512 = vmax.f32 %v1457, 0.0
        %v1513 = vmax.f32 %v1459, 0.0
        %v1514 = vmax.f32 %v1462, 0.0
        %v1515 = vmax.f32 %v1464, 0.0
        %v1516 = vmax.f32 %v1467, 0.0
        %v1517 = vmax.f32 %v1469, 0.0
        %v1518 = vmax.f32 %v1472, 0.0
        %v1519 = vmax.f32 %v1474, 0.0
        %v1520 = vmax.f32 %v1477, 0.0
        %v1521 = vmax.f32 %v1479, 0.0
        %v1522 = vmax.f32 %v1482, 0.0
        %v1523 = vmax.f32 %v1484, 0.0
        %v1524 = vmax.f32 %v1487, 0.0
        %v1525 = vmax.f32 %v1489, 0.0
        %v1526 = vmax.f32 %v1492, 0.0
        %v1527 = vmax.f32 %v1494, 0.0
        %v1528 = vpack.c.bf16 %v1497, %v1496
        %v1529 = vpack.c.bf16 %v1499, %v1498
        %v1530 = vpack.c.bf16 %v1501, %v1500
        %v1531 = vpack.c.bf16 %v1503, %v1502
        %v1532 = vpack.c.bf16 %v1505, %v1504
        %v1533 = vpack.c.bf16 %v1507, %v1506
        %v1534 = vpack.c.bf16 %v1509, %v1508
        %v1535 = vpack.c.bf16 %v1511, %v1510
        %v1536 = vpack.c.bf16 %v1513, %v1512
        %v1537 = vpack.c.bf16 %v1515, %v1514
        %v1538 = vpack.c.bf16 %v1517, %v1516
        %v1539 = vpack.c.bf16 %v1519, %v1518
        %v1540 = vpack.c.bf16 %v1521, %v1520
        %v1541 = vpack.c.bf16 %v1523, %v1522
        %v1542 = vpack.c.bf16 %v1525, %v1524
        %v1543 = vpack.c.bf16 %v1527, %v1526
        %v1544 = vld [vmem:[#allocation14] sm:$0xff]
        %v1545 = vld [vmem:[#allocation14 + $0x8] sm:$0xff]
        %v1546 = vld [vmem:[#allocation14 + $0x10] sm:$0xff]
        %v1547 = vld [vmem:[#allocation14 + $0x18] sm:$0xff]
        %v1548 = vld [vmem:[#allocation14 + $0x20] sm:$0xff]
        %v1549 = vld [vmem:[#allocation14 + $0x28] sm:$0xff]
        %v1550 = vld [vmem:[#allocation14 + $0x30] sm:$0xff]
        %v1551 = vld [vmem:[#allocation14 + $0x38] sm:$0xff]
        %v1552 = vld [vmem:[#allocation14 + $0x40] sm:$0xff]
        %v1553 = vld [vmem:[#allocation14 + $0x48] sm:$0xff]
        %v1554 = vld [vmem:[#allocation14 + $0x50] sm:$0xff]
        %v1555 = vld [vmem:[#allocation14 + $0x58] sm:$0xff]
        %v1556 = vld [vmem:[#allocation14 + $0x60] sm:$0xff]
        %v1557 = vld [vmem:[#allocation14 + $0x68] sm:$0xff]
        %v1558 = vld [vmem:[#allocation14 + $0x70] sm:$0xff]
        %v1559 = vld [vmem:[#allocation14 + $0x78] sm:$0xff]
        %v1560 = vld [vmem:[#allocation14 + $0x80] sm:$0xff]
        %v1561 = vld [vmem:[#allocation14 + $0x88] sm:$0xff]
        %v1562 = vld [vmem:[#allocation14 + $0x90] sm:$0xff]
        %v1563 = vld [vmem:[#allocation14 + $0x98] sm:$0xff]
        %v1564 = vld [vmem:[#allocation14 + $0xa0] sm:$0xff]
        %v1565 = vld [vmem:[#allocation14 + $0xa8] sm:$0xff]
        %v1566 = vld [vmem:[#allocation14 + $0xb0] sm:$0xff]
        %v1567 = vld [vmem:[#allocation14 + $0xb8] sm:$0xff]
        %v1568 = vld [vmem:[#allocation14 + $0xc0] sm:$0xff]
        %v1569 = vld [vmem:[#allocation14 + $0xc8] sm:$0xff]
        %v1570 = vld [vmem:[#allocation14 + $0xd0] sm:$0xff]
        %v1571 = vld [vmem:[#allocation14 + $0xd8] sm:$0xff]
        %v1572 = vld [vmem:[#allocation14 + $0xe0] sm:$0xff]
        %v1573 = vld [vmem:[#allocation14 + $0xe8] sm:$0xff]
        %v1574 = vld [vmem:[#allocation14 + $0xf0] sm:$0xff]
        %v1575 = vld [vmem:[#allocation14 + $0xf8] sm:$0xff]
        %v1576 = vld [vmem:[#allocation14 + $0x100] sm:$0xff]
        %v1577 = vld [vmem:[#allocation14 + $0x108] sm:$0xff]
        %v1578 = vld [vmem:[#allocation14 + $0x110] sm:$0xff]
        %v1579 = vld [vmem:[#allocation14 + $0x118] sm:$0xff]
        %v1580 = vld [vmem:[#allocation14 + $0x120] sm:$0xff]
        %v1581 = vld [vmem:[#allocation14 + $0x128] sm:$0xff]
        %v1582 = vld [vmem:[#allocation14 + $0x130] sm:$0xff]
        %v1583 = vld [vmem:[#allocation14 + $0x138] sm:$0xff]
        %v1584 = vld [vmem:[#allocation14 + $0x140] sm:$0xff]
        %v1585 = vld [vmem:[#allocation14 + $0x148] sm:$0xff]
        %v1586 = vld [vmem:[#allocation14 + $0x150] sm:$0xff]
        %v1587 = vld [vmem:[#allocation14 + $0x158] sm:$0xff]
        %v1588 = vld [vmem:[#allocation14 + $0x160] sm:$0xff]
        %v1589 = vld [vmem:[#allocation14 + $0x168] sm:$0xff]
        %v1590 = vld [vmem:[#allocation14 + $0x170] sm:$0xff]
        %v1591 = vld [vmem:[#allocation14 + $0x178] sm:$0xff]
        %v1592 = vld [vmem:[#allocation14 + $0x180] sm:$0xff]
        %v1593 = vld [vmem:[#allocation14 + $0x188] sm:$0xff]
        %v1594 = vld [vmem:[#allocation14 + $0x190] sm:$0xff]
        %v1595 = vld [vmem:[#allocation14 + $0x198] sm:$0xff]
        %v1596 = vld [vmem:[#allocation14 + $0x1a0] sm:$0xff]
        %v1597 = vld [vmem:[#allocation14 + $0x1a8] sm:$0xff]
        %v1598 = vld [vmem:[#allocation14 + $0x1b0] sm:$0xff]
        %v1599 = vld [vmem:[#allocation14 + $0x1b8] sm:$0xff]
        %v1600 = vld [vmem:[#allocation14 + $0x1c0] sm:$0xff]
        %v1601 = vld [vmem:[#allocation14 + $0x1c8] sm:$0xff]
        %v1602 = vld [vmem:[#allocation14 + $0x1d0] sm:$0xff]
        %v1603 = vld [vmem:[#allocation14 + $0x1d8] sm:$0xff]
        %v1604 = vld [vmem:[#allocation14 + $0x1e0] sm:$0xff]
        %v1605 = vld [vmem:[#allocation14 + $0x1e8] sm:$0xff]
        %v1606 = vld [vmem:[#allocation14 + $0x1f0] sm:$0xff]
        %v1607 = vld [vmem:[#allocation14 + $0x1f8] sm:$0xff]
        %v1608 = vld [vmem:[#allocation15] sm:$0xff]
        %v1610 = vperm.slane %v1608, 0
        %v1611 = vperm.slane %v1608, 1
        %v1612 = vperm.slane %v1608, 2
        %v1613 = vperm.slane %v1608, 3
        %v1614 = vperm.slane %v1608, 4
        %v1615 = vperm.slane %v1608, 5
        %v1616 = vperm.slane %v1608, 6
        %v1617 = vperm.slane %v1608, 7
        %v1690 = vunpack.c.l.b16 %v1544
        %v1691 = vunpack.c.h.b16 %v1544
        %v1692 = vunpack.c.l.b16 %v1545
        %v1693 = vunpack.c.h.b16 %v1545
        %v1694 = vunpack.c.l.b16 %v1546
        %v1695 = vunpack.c.h.b16 %v1546
        %v1696 = vunpack.c.l.b16 %v1547
        %v1697 = vunpack.c.h.b16 %v1547
        %v1698 = vunpack.c.l.b16 %v1548
        %v1699 = vunpack.c.h.b16 %v1548
        %v1700 = vunpack.c.l.b16 %v1549
        %v1701 = vunpack.c.h.b16 %v1549
        %v1702 = vunpack.c.l.b16 %v1550
        %v1703 = vunpack.c.h.b16 %v1550
        %v1704 = vunpack.c.l.b16 %v1551
        %v1705 = vunpack.c.h.b16 %v1551
        %v1706 = vunpack.c.l.b16 %v1552
        %v1707 = vunpack.c.h.b16 %v1552
        %v1708 = vunpack.c.l.b16 %v1553
        %v1709 = vunpack.c.h.b16 %v1553
        %v1710 = vunpack.c.l.b16 %v1554
        %v1711 = vunpack.c.h.b16 %v1554
        %v1712 = vunpack.c.l.b16 %v1555
        %v1713 = vunpack.c.h.b16 %v1555
        %v1714 = vunpack.c.l.b16 %v1556
        %v1715 = vunpack.c.h.b16 %v1556
        %v1716 = vunpack.c.l.b16 %v1557
        %v1717 = vunpack.c.h.b16 %v1557
        %v1718 = vunpack.c.l.b16 %v1558
        %v1719 = vunpack.c.h.b16 %v1558
        %v1720 = vunpack.c.l.b16 %v1559
        %v1721 = vunpack.c.h.b16 %v1559
        %v1722 = vunpack.c.l.b16 %v1560
        %v1723 = vunpack.c.h.b16 %v1560
        %v1724 = vunpack.c.l.b16 %v1561
        %v1725 = vunpack.c.h.b16 %v1561
        %v1726 = vunpack.c.l.b16 %v1562
        %v1727 = vunpack.c.h.b16 %v1562
        %v1728 = vunpack.c.l.b16 %v1563
        %v1729 = vunpack.c.h.b16 %v1563
        %v1730 = vunpack.c.l.b16 %v1564
        %v1731 = vunpack.c.h.b16 %v1564
        %v1732 = vunpack.c.l.b16 %v1565
        %v1733 = vunpack.c.h.b16 %v1565
        %v1734 = vunpack.c.l.b16 %v1566
        %v1735 = vunpack.c.h.b16 %v1566
        %v1736 = vunpack.c.l.b16 %v1567
        %v1737 = vunpack.c.h.b16 %v1567
        %v1738 = vunpack.c.l.b16 %v1568
        %v1739 = vunpack.c.h.b16 %v1568
        %v1740 = vunpack.c.l.b16 %v1569
        %v1741 = vunpack.c.h.b16 %v1569
        %v1742 = vunpack.c.l.b16 %v1570
        %v1743 = vunpack.c.h.b16 %v1570
        %v1744 = vunpack.c.l.b16 %v1571
        %v1745 = vunpack.c.h.b16 %v1571
        %v1746 = vunpack.c.l.b16 %v1572
        %v1747 = vunpack.c.h.b16 %v1572
        %v1748 = vunpack.c.l.b16 %v1573
        %v1749 = vunpack.c.h.b16 %v1573
        %v1750 = vunpack.c.l.b16 %v1574
        %v1751 = vunpack.c.h.b16 %v1574
        %v1752 = vunpack.c.l.b16 %v1575
        %v1753 = vunpack.c.h.b16 %v1575
        %v1754 = vunpack.c.l.b16 %v1576
        %v1755 = vunpack.c.h.b16 %v1576
        %v1756 = vunpack.c.l.b16 %v1577
        %v1757 = vunpack.c.h.b16 %v1577
        %v1758 = vunpack.c.l.b16 %v1578
        %v1759 = vunpack.c.h.b16 %v1578
        %v1760 = vunpack.c.l.b16 %v1579
        %v1761 = vunpack.c.h.b16 %v1579
        %v1762 = vunpack.c.l.b16 %v1580
        %v1763 = vunpack.c.h.b16 %v1580
        %v1764 = vunpack.c.l.b16 %v1581
        %v1765 = vunpack.c.h.b16 %v1581
        %v1766 = vunpack.c.l.b16 %v1582
        %v1767 = vunpack.c.h.b16 %v1582
        %v1768 = vunpack.c.l.b16 %v1583
        %v1769 = vunpack.c.h.b16 %v1583
        %v1770 = vunpack.c.l.b16 %v1584
        %v1771 = vunpack.c.h.b16 %v1584
        %v1772 = vunpack.c.l.b16 %v1585
        %v1773 = vunpack.c.h.b16 %v1585
        %v1774 = vunpack.c.l.b16 %v1586
        %v1775 = vunpack.c.h.b16 %v1586
        %v1776 = vunpack.c.l.b16 %v1587
        %v1777 = vunpack.c.h.b16 %v1587
        %v1778 = vunpack.c.l.b16 %v1588
        %v1779 = vunpack.c.h.b16 %v1588
        %v1780 = vunpack.c.l.b16 %v1589
        %v1781 = vunpack.c.h.b16 %v1589
        %v1782 = vunpack.c.l.b16 %v1590
        %v1783 = vunpack.c.h.b16 %v1590
        %v1784 = vunpack.c.l.b16 %v1591
        %v1785 = vunpack.c.h.b16 %v1591
        %v1786 = vunpack.c.l.b16 %v1592
        %v1787 = vunpack.c.h.b16 %v1592
        %v1788 = vunpack.c.l.b16 %v1593
        %v1789 = vunpack.c.h.b16 %v1593
        %v1790 = vunpack.c.l.b16 %v1594
        %v1791 = vunpack.c.h.b16 %v1594
        %v1792 = vunpack.c.l.b16 %v1595
        %v1793 = vunpack.c.h.b16 %v1595
        %v1794 = vunpack.c.l.b16 %v1596
        %v1795 = vunpack.c.h.b16 %v1596
        %v1796 = vunpack.c.l.b16 %v1597
        %v1797 = vunpack.c.h.b16 %v1597
        %v1798 = vunpack.c.l.b16 %v1598
        %v1799 = vunpack.c.h.b16 %v1598
        %v1800 = vunpack.c.l.b16 %v1599
        %v1801 = vunpack.c.h.b16 %v1599
        %v1802 = vunpack.c.l.b16 %v1600
        %v1803 = vunpack.c.h.b16 %v1600
        %v1804 = vunpack.c.l.b16 %v1601
        %v1805 = vunpack.c.h.b16 %v1601
        %v1806 = vunpack.c.l.b16 %v1602
        %v1807 = vunpack.c.h.b16 %v1602
        %v1808 = vunpack.c.l.b16 %v1603
        %v1809 = vunpack.c.h.b16 %v1603
        %v1810 = vunpack.c.l.b16 %v1604
        %v1811 = vunpack.c.h.b16 %v1604
        %v1812 = vunpack.c.l.b16 %v1605
        %v1813 = vunpack.c.h.b16 %v1605
        %v1814 = vunpack.c.l.b16 %v1606
        %v1815 = vunpack.c.h.b16 %v1606
        %v1816 = vunpack.c.l.b16 %v1607
        %v1817 = vunpack.c.h.b16 %v1607
        %v1818 = vpack.c.b16 %v1698, %v1690
        %v1819 = vpack.c.b16 %v1699, %v1691
        %v1820 = vpack.c.b16 %v1700, %v1692
        %v1821 = vpack.c.b16 %v1701, %v1693
        %v1822 = vpack.c.b16 %v1702, %v1694
        %v1823 = vpack.c.b16 %v1703, %v1695
        %v1824 = vpack.c.b16 %v1704, %v1696
        %v1825 = vpack.c.b16 %v1705, %v1697
        %v1826 = vpack.c.b16 %v1714, %v1706
        %v1827 = vpack.c.b16 %v1715, %v1707
        %v1828 = vpack.c.b16 %v1716, %v1708
        %v1829 = vpack.c.b16 %v1717, %v1709
        %v1830 = vpack.c.b16 %v1718, %v1710
        %v1831 = vpack.c.b16 %v1719, %v1711
        %v1832 = vpack.c.b16 %v1720, %v1712
        %v1833 = vpack.c.b16 %v1721, %v1713
        %v1834 = vpack.c.b16 %v1730, %v1722
        %v1835 = vpack.c.b16 %v1731, %v1723
        %v1836 = vpack.c.b16 %v1732, %v1724
        %v1837 = vpack.c.b16 %v1733, %v1725
        %v1838 = vpack.c.b16 %v1734, %v1726
        %v1839 = vpack.c.b16 %v1735, %v1727
        %v1840 = vpack.c.b16 %v1736, %v1728
        %v1841 = vpack.c.b16 %v1737, %v1729
        %v1842 = vpack.c.b16 %v1746, %v1738
        %v1843 = vpack.c.b16 %v1747, %v1739
        %v1844 = vpack.c.b16 %v1748, %v1740
        %v1845 = vpack.c.b16 %v1749, %v1741
        %v1846 = vpack.c.b16 %v1750, %v1742
        %v1847 = vpack.c.b16 %v1751, %v1743
        %v1848 = vpack.c.b16 %v1752, %v1744
        %v1849 = vpack.c.b16 %v1753, %v1745
        %v1850 = vpack.c.b16 %v1762, %v1754
        %v1851 = vpack.c.b16 %v1763, %v1755
        %v1852 = vpack.c.b16 %v1764, %v1756
        %v1853 = vpack.c.b16 %v1765, %v1757
        %v1854 = vpack.c.b16 %v1766, %v1758
        %v1855 = vpack.c.b16 %v1767, %v1759
        %v1856 = vpack.c.b16 %v1768, %v1760
        %v1857 = vpack.c.b16 %v1769, %v1761
        %v1858 = vpack.c.b16 %v1778, %v1770
        %v1859 = vpack.c.b16 %v1779, %v1771
        %v1860 = vpack.c.b16 %v1780, %v1772
        %v1861 = vpack.c.b16 %v1781, %v1773
        %v1862 = vpack.c.b16 %v1782, %v1774
        %v1863 = vpack.c.b16 %v1783, %v1775
        %v1864 = vpack.c.b16 %v1784, %v1776
        %v1865 = vpack.c.b16 %v1785, %v1777
        %v1866 = vpack.c.b16 %v1794, %v1786
        %v1867 = vpack.c.b16 %v1795, %v1787
        %v1868 = vpack.c.b16 %v1796, %v1788
        %v1869 = vpack.c.b16 %v1797, %v1789
        %v1870 = vpack.c.b16 %v1798, %v1790
        %v1871 = vpack.c.b16 %v1799, %v1791
        %v1872 = vpack.c.b16 %v1800, %v1792
        %v1873 = vpack.c.b16 %v1801, %v1793
        %v1874 = vpack.c.b16 %v1810, %v1802
        %v1875 = vpack.c.b16 %v1811, %v1803
        %v1876 = vpack.c.b16 %v1812, %v1804
        %v1877 = vpack.c.b16 %v1813, %v1805
        %v1878 = vpack.c.b16 %v1814, %v1806
        %v1879 = vpack.c.b16 %v1815, %v1807
        %v1880 = vpack.c.b16 %v1816, %v1808
        %v1881 = vpack.c.b16 %v1817, %v1809
        %1946 = vmatpush.bf16.msra.mxu0 %v1874
        %1947 = vmatpush.bf16.msra.mxu0 %v1866
        %1948 = vmatpush.bf16.msra.mxu0 %v1858
        %1949 = vmatpush.bf16.msra.mxu0 %v1850
        %1950 = vmatpush.bf16.msra.mxu0 %v1842
        %1951 = vmatpush.bf16.msra.mxu0 %v1834
        %1952 = vmatpush.bf16.msra.mxu0 %v1826
        %1953 = vmatpush.bf16.msra.mxu0 %v1818
        %1954 = vmatmul.bf16.gmra.mxu0 %v1528
        %v1955 = vpop.f32.mrf.mxu0
        %v1956 = vadd.f32 %v1610, %v1955
        %v1957 = vpop.f32.mrf.mxu0
        %v1958 = vadd.f32 %v1610, %v1957
        %1959 = vmatmul.bf16.gmra.mxu0 %v1529
        %v1960 = vpop.f32.mrf.mxu0
        %v1961 = vadd.f32 %v1610, %v1960
        %v1962 = vpop.f32.mrf.mxu0
        %v1963 = vadd.f32 %v1610, %v1962
        %1964 = vmatmul.bf16.gmra.mxu0 %v1530
        %v1965 = vpop.f32.mrf.mxu0
        %v1966 = vadd.f32 %v1610, %v1965
        %v1967 = vpop.f32.mrf.mxu0
        %v1968 = vadd.f32 %v1610, %v1967
        %1969 = vmatmul.bf16.gmra.mxu0 %v1531
        %v1970 = vpop.f32.mrf.mxu0
        %v1971 = vadd.f32 %v1610, %v1970
        %v1972 = vpop.f32.mrf.mxu0
        %v1973 = vadd.f32 %v1610, %v1972
        %1974 = vmatmul.bf16.gmra.mxu0 %v1532
        %v1975 = vpop.f32.mrf.mxu0
        %v1976 = vadd.f32 %v1610, %v1975
        %v1977 = vpop.f32.mrf.mxu0
        %v1978 = vadd.f32 %v1610, %v1977
        %1979 = vmatmul.bf16.gmra.mxu0 %v1533
        %v1980 = vpop.f32.mrf.mxu0
        %v1981 = vadd.f32 %v1610, %v1980
        %v1982 = vpop.f32.mrf.mxu0
        %v1983 = vadd.f32 %v1610, %v1982
        %1984 = vmatmul.bf16.gmra.mxu0 %v1534
        %v1985 = vpop.f32.mrf.mxu0
        %v1986 = vadd.f32 %v1610, %v1985
        %v1987 = vpop.f32.mrf.mxu0
        %v1988 = vadd.f32 %v1610, %v1987
        %1989 = vmatmul.bf16.gmra.mxu0 %v1535
        %v1990 = vpop.f32.mrf.mxu0
        %v1991 = vadd.f32 %v1610, %v1990
        %v1992 = vpop.f32.mrf.mxu0
        %v1993 = vadd.f32 %v1610, %v1992
        %1994 = vmatmul.bf16.gmra.mxu0 %v1536
        %v1995 = vpop.f32.mrf.mxu0
        %v1996 = vadd.f32 %v1610, %v1995
        %v1997 = vpop.f32.mrf.mxu0
        %v1998 = vadd.f32 %v1610, %v1997
        %1999 = vmatmul.bf16.gmra.mxu0 %v1537
        %v2000 = vpop.f32.mrf.mxu0
        %v2001 = vadd.f32 %v1610, %v2000
        %v2002 = vpop.f32.mrf.mxu0
        %v2003 = vadd.f32 %v1610, %v2002
        %2004 = vmatmul.bf16.gmra.mxu0 %v1538
        %v2005 = vpop.f32.mrf.mxu0
        %v2006 = vadd.f32 %v1610, %v2005
        %v2007 = vpop.f32.mrf.mxu0
        %v2008 = vadd.f32 %v1610, %v2007
        %2009 = vmatmul.bf16.gmra.mxu0 %v1539
        %v2010 = vpop.f32.mrf.mxu0
        %v2011 = vadd.f32 %v1610, %v2010
        %v2012 = vpop.f32.mrf.mxu0
        %v2013 = vadd.f32 %v1610, %v2012
        %2014 = vmatmul.bf16.gmra.mxu0 %v1540
        %v2015 = vpop.f32.mrf.mxu0
        %v2016 = vadd.f32 %v1610, %v2015
        %v2017 = vpop.f32.mrf.mxu0
        %v2018 = vadd.f32 %v1610, %v2017
        %2019 = vmatmul.bf16.gmra.mxu0 %v1541
        %v2020 = vpop.f32.mrf.mxu0
        %v2021 = vadd.f32 %v1610, %v2020
        %v2022 = vpop.f32.mrf.mxu0
        %v2023 = vadd.f32 %v1610, %v2022
        %2024 = vmatmul.bf16.gmra.mxu0 %v1542
        %v2025 = vpop.f32.mrf.mxu0
        %v2026 = vadd.f32 %v1610, %v2025
        %v2027 = vpop.f32.mrf.mxu0
        %v2028 = vadd.f32 %v1610, %v2027
        %2029 = vmatmul.bf16.gmra.mxu0 %v1543
        %v2030 = vpop.f32.mrf.mxu0
        %v2031 = vadd.f32 %v1610, %v2030
        %v2032 = vpop.f32.mrf.mxu0
        %v2033 = vadd.f32 %v1610, %v2032
        %2034 = vdwg.mxu0
        %2035 = vmatpush.bf16.msra.mxu0 %v1875
        %2036 = vmatpush.bf16.msra.mxu0 %v1867
        %2037 = vmatpush.bf16.msra.mxu0 %v1859
        %2038 = vmatpush.bf16.msra.mxu0 %v1851
        %2039 = vmatpush.bf16.msra.mxu0 %v1843
        %2040 = vmatpush.bf16.msra.mxu0 %v1835
        %2041 = vmatpush.bf16.msra.mxu0 %v1827
        %2042 = vmatpush.bf16.msra.mxu0 %v1819
        %2043 = vmatmul.bf16.gmra.mxu0 %v1528
        %v2044 = vpop.f32.mrf.mxu0
        %v2045 = vadd.f32 %v1611, %v2044
        %v2046 = vpop.f32.mrf.mxu0
        %v2047 = vadd.f32 %v1611, %v2046
        %2048 = vmatmul.bf16.gmra.mxu0 %v1529
        %v2049 = vpop.f32.mrf.mxu0
        %v2050 = vadd.f32 %v1611, %v2049
        %v2051 = vpop.f32.mrf.mxu0
        %v2052 = vadd.f32 %v1611, %v2051
        %2053 = vmatmul.bf16.gmra.mxu0 %v1530
        %v2054 = vpop.f32.mrf.mxu0
        %v2055 = vadd.f32 %v1611, %v2054
        %v2056 = vpop.f32.mrf.mxu0
        %v2057 = vadd.f32 %v1611, %v2056
        %2058 = vmatmul.bf16.gmra.mxu0 %v1531
        %v2059 = vpop.f32.mrf.mxu0
        %v2060 = vadd.f32 %v1611, %v2059
        %v2061 = vpop.f32.mrf.mxu0
        %v2062 = vadd.f32 %v1611, %v2061
        %2063 = vmatmul.bf16.gmra.mxu0 %v1532
        %v2064 = vpop.f32.mrf.mxu0
        %v2065 = vadd.f32 %v1611, %v2064
        %v2066 = vpop.f32.mrf.mxu0
        %v2067 = vadd.f32 %v1611, %v2066
        %2068 = vmatmul.bf16.gmra.mxu0 %v1533
        %v2069 = vpop.f32.mrf.mxu0
        %v2070 = vadd.f32 %v1611, %v2069
        %v2071 = vpop.f32.mrf.mxu0
        %v2072 = vadd.f32 %v1611, %v2071
        %2073 = vmatmul.bf16.gmra.mxu0 %v1534
        %v2074 = vpop.f32.mrf.mxu0
        %v2075 = vadd.f32 %v1611, %v2074
        %v2076 = vpop.f32.mrf.mxu0
        %v2077 = vadd.f32 %v1611, %v2076
        %2078 = vmatmul.bf16.gmra.mxu0 %v1535
        %v2079 = vpop.f32.mrf.mxu0
        %v2080 = vadd.f32 %v1611, %v2079
        %v2081 = vpop.f32.mrf.mxu0
        %v2082 = vadd.f32 %v1611, %v2081
        %2083 = vmatmul.bf16.gmra.mxu0 %v1536
        %v2084 = vpop.f32.mrf.mxu0
        %v2085 = vadd.f32 %v1611, %v2084
        %v2086 = vpop.f32.mrf.mxu0
        %v2087 = vadd.f32 %v1611, %v2086
        %2088 = vmatmul.bf16.gmra.mxu0 %v1537
        %v2089 = vpop.f32.mrf.mxu0
        %v2090 = vadd.f32 %v1611, %v2089
        %v2091 = vpop.f32.mrf.mxu0
        %v2092 = vadd.f32 %v1611, %v2091
        %2093 = vmatmul.bf16.gmra.mxu0 %v1538
        %v2094 = vpop.f32.mrf.mxu0
        %v2095 = vadd.f32 %v1611, %v2094
        %v2096 = vpop.f32.mrf.mxu0
        %v2097 = vadd.f32 %v1611, %v2096
        %2098 = vmatmul.bf16.gmra.mxu0 %v1539
        %v2099 = vpop.f32.mrf.mxu0
        %v2100 = vadd.f32 %v1611, %v2099
        %v2101 = vpop.f32.mrf.mxu0
        %v2102 = vadd.f32 %v1611, %v2101
        %2103 = vmatmul.bf16.gmra.mxu0 %v1540
        %v2104 = vpop.f32.mrf.mxu0
        %v2105 = vadd.f32 %v1611, %v2104
        %v2106 = vpop.f32.mrf.mxu0
        %v2107 = vadd.f32 %v1611, %v2106
        %2108 = vmatmul.bf16.gmra.mxu0 %v1541
        %v2109 = vpop.f32.mrf.mxu0
        %v2110 = vadd.f32 %v1611, %v2109
        %v2111 = vpop.f32.mrf.mxu0
        %v2112 = vadd.f32 %v1611, %v2111
        %2113 = vmatmul.bf16.gmra.mxu0 %v1542
        %v2114 = vpop.f32.mrf.mxu0
        %v2115 = vadd.f32 %v1611, %v2114
        %v2116 = vpop.f32.mrf.mxu0
        %v2117 = vadd.f32 %v1611, %v2116
        %2118 = vmatmul.bf16.gmra.mxu0 %v1543
        %v2119 = vpop.f32.mrf.mxu0
        %v2120 = vadd.f32 %v1611, %v2119
        %v2121 = vpop.f32.mrf.mxu0
        %v2122 = vadd.f32 %v1611, %v2121
        %2123 = vdwg.mxu0
        %2124 = vmatpush.bf16.msra.mxu0 %v1876
        %2125 = vmatpush.bf16.msra.mxu0 %v1868
        %2126 = vmatpush.bf16.msra.mxu0 %v1860
        %2127 = vmatpush.bf16.msra.mxu0 %v1852
        %2128 = vmatpush.bf16.msra.mxu0 %v1844
        %2129 = vmatpush.bf16.msra.mxu0 %v1836
        %2130 = vmatpush.bf16.msra.mxu0 %v1828
        %2131 = vmatpush.bf16.msra.mxu0 %v1820
        %2132 = vmatmul.bf16.gmra.mxu0 %v1528
        %v2133 = vpop.f32.mrf.mxu0
        %v2134 = vadd.f32 %v1612, %v2133
        %v2135 = vpop.f32.mrf.mxu0
        %v2136 = vadd.f32 %v1612, %v2135
        %2137 = vmatmul.bf16.gmra.mxu0 %v1529
        %v2138 = vpop.f32.mrf.mxu0
        %v2139 = vadd.f32 %v1612, %v2138
        %v2140 = vpop.f32.mrf.mxu0
        %v2141 = vadd.f32 %v1612, %v2140
        %2142 = vmatmul.bf16.gmra.mxu0 %v1530
        %v2143 = vpop.f32.mrf.mxu0
        %v2144 = vadd.f32 %v1612, %v2143
        %v2145 = vpop.f32.mrf.mxu0
        %v2146 = vadd.f32 %v1612, %v2145
        %2147 = vmatmul.bf16.gmra.mxu0 %v1531
        %v2148 = vpop.f32.mrf.mxu0
        %v2149 = vadd.f32 %v1612, %v2148
        %v2150 = vpop.f32.mrf.mxu0
        %v2151 = vadd.f32 %v1612, %v2150
        %2152 = vmatmul.bf16.gmra.mxu0 %v1532
        %v2153 = vpop.f32.mrf.mxu0
        %v2154 = vadd.f32 %v1612, %v2153
        %v2155 = vpop.f32.mrf.mxu0
        %v2156 = vadd.f32 %v1612, %v2155
        %2157 = vmatmul.bf16.gmra.mxu0 %v1533
        %v2158 = vpop.f32.mrf.mxu0
        %v2159 = vadd.f32 %v1612, %v2158
        %v2160 = vpop.f32.mrf.mxu0
        %v2161 = vadd.f32 %v1612, %v2160
        %2162 = vmatmul.bf16.gmra.mxu0 %v1534
        %v2163 = vpop.f32.mrf.mxu0
        %v2164 = vadd.f32 %v1612, %v2163
        %v2165 = vpop.f32.mrf.mxu0
        %v2166 = vadd.f32 %v1612, %v2165
        %2167 = vmatmul.bf16.gmra.mxu0 %v1535
        %v2168 = vpop.f32.mrf.mxu0
        %v2169 = vadd.f32 %v1612, %v2168
        %v2170 = vpop.f32.mrf.mxu0
        %v2171 = vadd.f32 %v1612, %v2170
        %2172 = vmatmul.bf16.gmra.mxu0 %v1536
        %v2173 = vpop.f32.mrf.mxu0
        %v2174 = vadd.f32 %v1612, %v2173
        %v2175 = vpop.f32.mrf.mxu0
        %v2176 = vadd.f32 %v1612, %v2175
        %2177 = vmatmul.bf16.gmra.mxu0 %v1537
        %v2178 = vpop.f32.mrf.mxu0
        %v2179 = vadd.f32 %v1612, %v2178
        %v2180 = vpop.f32.mrf.mxu0
        %v2181 = vadd.f32 %v1612, %v2180
        %2182 = vmatmul.bf16.gmra.mxu0 %v1538
        %v2183 = vpop.f32.mrf.mxu0
        %v2184 = vadd.f32 %v1612, %v2183
        %v2185 = vpop.f32.mrf.mxu0
        %v2186 = vadd.f32 %v1612, %v2185
        %2187 = vmatmul.bf16.gmra.mxu0 %v1539
        %v2188 = vpop.f32.mrf.mxu0
        %v2189 = vadd.f32 %v1612, %v2188
        %v2190 = vpop.f32.mrf.mxu0
        %v2191 = vadd.f32 %v1612, %v2190
        %2192 = vmatmul.bf16.gmra.mxu0 %v1540
        %v2193 = vpop.f32.mrf.mxu0
        %v2194 = vadd.f32 %v1612, %v2193
        %v2195 = vpop.f32.mrf.mxu0
        %v2196 = vadd.f32 %v1612, %v2195
        %2197 = vmatmul.bf16.gmra.mxu0 %v1541
        %v2198 = vpop.f32.mrf.mxu0
        %v2199 = vadd.f32 %v1612, %v2198
        %v2200 = vpop.f32.mrf.mxu0
        %v2201 = vadd.f32 %v1612, %v2200
        %2202 = vmatmul.bf16.gmra.mxu0 %v1542
        %v2203 = vpop.f32.mrf.mxu0
        %v2204 = vadd.f32 %v1612, %v2203
        %v2205 = vpop.f32.mrf.mxu0
        %v2206 = vadd.f32 %v1612, %v2205
        %2207 = vmatmul.bf16.gmra.mxu0 %v1543
        %v2208 = vpop.f32.mrf.mxu0
        %v2209 = vadd.f32 %v1612, %v2208
        %v2210 = vpop.f32.mrf.mxu0
        %v2211 = vadd.f32 %v1612, %v2210
        %2212 = vdwg.mxu0
        %2213 = vmatpush.bf16.msra.mxu0 %v1877
        %2214 = vmatpush.bf16.msra.mxu0 %v1869
        %2215 = vmatpush.bf16.msra.mxu0 %v1861
        %2216 = vmatpush.bf16.msra.mxu0 %v1853
        %2217 = vmatpush.bf16.msra.mxu0 %v1845
        %2218 = vmatpush.bf16.msra.mxu0 %v1837
        %2219 = vmatpush.bf16.msra.mxu0 %v1829
        %2220 = vmatpush.bf16.msra.mxu0 %v1821
        %2221 = vmatmul.bf16.gmra.mxu0 %v1528
        %v2222 = vpop.f32.mrf.mxu0
        %v2223 = vadd.f32 %v1613, %v2222
        %v2224 = vpop.f32.mrf.mxu0
        %v2225 = vadd.f32 %v1613, %v2224
        %2226 = vmatmul.bf16.gmra.mxu0 %v1529
        %v2227 = vpop.f32.mrf.mxu0
        %v2228 = vadd.f32 %v1613, %v2227
        %v2229 = vpop.f32.mrf.mxu0
        %v2230 = vadd.f32 %v1613, %v2229
        %2231 = vmatmul.bf16.gmra.mxu0 %v1530
        %v2232 = vpop.f32.mrf.mxu0
        %v2233 = vadd.f32 %v1613, %v2232
        %v2234 = vpop.f32.mrf.mxu0
        %v2235 = vadd.f32 %v1613, %v2234
        %2236 = vmatmul.bf16.gmra.mxu0 %v1531
        %v2237 = vpop.f32.mrf.mxu0
        %v2238 = vadd.f32 %v1613, %v2237
        %v2239 = vpop.f32.mrf.mxu0
        %v2240 = vadd.f32 %v1613, %v2239
        %2241 = vmatmul.bf16.gmra.mxu0 %v1532
        %v2242 = vpop.f32.mrf.mxu0
        %v2243 = vadd.f32 %v1613, %v2242
        %v2244 = vpop.f32.mrf.mxu0
        %v2245 = vadd.f32 %v1613, %v2244
        %2246 = vmatmul.bf16.gmra.mxu0 %v1533
        %v2247 = vpop.f32.mrf.mxu0
        %v2248 = vadd.f32 %v1613, %v2247
        %v2249 = vpop.f32.mrf.mxu0
        %v2250 = vadd.f32 %v1613, %v2249
        %2251 = vmatmul.bf16.gmra.mxu0 %v1534
        %v2252 = vpop.f32.mrf.mxu0
        %v2253 = vadd.f32 %v1613, %v2252
        %v2254 = vpop.f32.mrf.mxu0
        %v2255 = vadd.f32 %v1613, %v2254
        %2256 = vmatmul.bf16.gmra.mxu0 %v1535
        %v2257 = vpop.f32.mrf.mxu0
        %v2258 = vadd.f32 %v1613, %v2257
        %v2259 = vpop.f32.mrf.mxu0
        %v2260 = vadd.f32 %v1613, %v2259
        %2261 = vmatmul.bf16.gmra.mxu0 %v1536
        %v2262 = vpop.f32.mrf.mxu0
        %v2263 = vadd.f32 %v1613, %v2262
        %v2264 = vpop.f32.mrf.mxu0
        %v2265 = vadd.f32 %v1613, %v2264
        %2266 = vmatmul.bf16.gmra.mxu0 %v1537
        %v2267 = vpop.f32.mrf.mxu0
        %v2268 = vadd.f32 %v1613, %v2267
        %v2269 = vpop.f32.mrf.mxu0
        %v2270 = vadd.f32 %v1613, %v2269
        %2271 = vmatmul.bf16.gmra.mxu0 %v1538
        %v2272 = vpop.f32.mrf.mxu0
        %v2273 = vadd.f32 %v1613, %v2272
        %v2274 = vpop.f32.mrf.mxu0
        %v2275 = vadd.f32 %v1613, %v2274
        %2276 = vmatmul.bf16.gmra.mxu0 %v1539
        %v2277 = vpop.f32.mrf.mxu0
        %v2278 = vadd.f32 %v1613, %v2277
        %v2279 = vpop.f32.mrf.mxu0
        %v2280 = vadd.f32 %v1613, %v2279
        %2281 = vmatmul.bf16.gmra.mxu0 %v1540
        %v2282 = vpop.f32.mrf.mxu0
        %v2283 = vadd.f32 %v1613, %v2282
        %v2284 = vpop.f32.mrf.mxu0
        %v2285 = vadd.f32 %v1613, %v2284
        %2286 = vmatmul.bf16.gmra.mxu0 %v1541
        %v2287 = vpop.f32.mrf.mxu0
        %v2288 = vadd.f32 %v1613, %v2287
        %v2289 = vpop.f32.mrf.mxu0
        %v2290 = vadd.f32 %v1613, %v2289
        %2291 = vmatmul.bf16.gmra.mxu0 %v1542
        %v2292 = vpop.f32.mrf.mxu0
        %v2293 = vadd.f32 %v1613, %v2292
        %v2294 = vpop.f32.mrf.mxu0
        %v2295 = vadd.f32 %v1613, %v2294
        %2296 = vmatmul.bf16.gmra.mxu0 %v1543
        %v2297 = vpop.f32.mrf.mxu0
        %v2298 = vadd.f32 %v1613, %v2297
        %v2299 = vpop.f32.mrf.mxu0
        %v2300 = vadd.f32 %v1613, %v2299
        %2301 = vdwg.mxu0
        %2302 = vmatpush.bf16.msra.mxu0 %v1878
        %2303 = vmatpush.bf16.msra.mxu0 %v1870
        %2304 = vmatpush.bf16.msra.mxu0 %v1862
        %2305 = vmatpush.bf16.msra.mxu0 %v1854
        %2306 = vmatpush.bf16.msra.mxu0 %v1846
        %2307 = vmatpush.bf16.msra.mxu0 %v1838
        %2308 = vmatpush.bf16.msra.mxu0 %v1830
        %2309 = vmatpush.bf16.msra.mxu0 %v1822
        %2310 = vmatmul.bf16.gmra.mxu0 %v1528
        %v2311 = vpop.f32.mrf.mxu0
        %v2312 = vadd.f32 %v1614, %v2311
        %v2313 = vpop.f32.mrf.mxu0
        %v2314 = vadd.f32 %v1614, %v2313
        %2315 = vmatmul.bf16.gmra.mxu0 %v1529
        %v2316 = vpop.f32.mrf.mxu0
        %v2317 = vadd.f32 %v1614, %v2316
        %v2318 = vpop.f32.mrf.mxu0
        %v2319 = vadd.f32 %v1614, %v2318
        %2320 = vmatmul.bf16.gmra.mxu0 %v1530
        %v2321 = vpop.f32.mrf.mxu0
        %v2322 = vadd.f32 %v1614, %v2321
        %v2323 = vpop.f32.mrf.mxu0
        %v2324 = vadd.f32 %v1614, %v2323
        %2325 = vmatmul.bf16.gmra.mxu0 %v1531
        %v2326 = vpop.f32.mrf.mxu0
        %v2327 = vadd.f32 %v1614, %v2326
        %v2328 = vpop.f32.mrf.mxu0
        %v2329 = vadd.f32 %v1614, %v2328
        %2330 = vmatmul.bf16.gmra.mxu0 %v1532
        %v2331 = vpop.f32.mrf.mxu0
        %v2332 = vadd.f32 %v1614, %v2331
        %v2333 = vpop.f32.mrf.mxu0
        %v2334 = vadd.f32 %v1614, %v2333
        %2335 = vmatmul.bf16.gmra.mxu0 %v1533
        %v2336 = vpop.f32.mrf.mxu0
        %v2337 = vadd.f32 %v1614, %v2336
        %v2338 = vpop.f32.mrf.mxu0
        %v2339 = vadd.f32 %v1614, %v2338
        %2340 = vmatmul.bf16.gmra.mxu0 %v1534
        %v2341 = vpop.f32.mrf.mxu0
        %v2342 = vadd.f32 %v1614, %v2341
        %v2343 = vpop.f32.mrf.mxu0
        %v2344 = vadd.f32 %v1614, %v2343
        %2345 = vmatmul.bf16.gmra.mxu0 %v1535
        %v2346 = vpop.f32.mrf.mxu0
        %v2347 = vadd.f32 %v1614, %v2346
        %v2348 = vpop.f32.mrf.mxu0
        %v2349 = vadd.f32 %v1614, %v2348
        %2350 = vmatmul.bf16.gmra.mxu0 %v1536
        %v2351 = vpop.f32.mrf.mxu0
        %v2352 = vadd.f32 %v1614, %v2351
        %v2353 = vpop.f32.mrf.mxu0
        %v2354 = vadd.f32 %v1614, %v2353
        %2355 = vmatmul.bf16.gmra.mxu0 %v1537
        %v2356 = vpop.f32.mrf.mxu0
        %v2357 = vadd.f32 %v1614, %v2356
        %v2358 = vpop.f32.mrf.mxu0
        %v2359 = vadd.f32 %v1614, %v2358
        %2360 = vmatmul.bf16.gmra.mxu0 %v1538
        %v2361 = vpop.f32.mrf.mxu0
        %v2362 = vadd.f32 %v1614, %v2361
        %v2363 = vpop.f32.mrf.mxu0
        %v2364 = vadd.f32 %v1614, %v2363
        %2365 = vmatmul.bf16.gmra.mxu0 %v1539
        %v2366 = vpop.f32.mrf.mxu0
        %v2367 = vadd.f32 %v1614, %v2366
        %v2368 = vpop.f32.mrf.mxu0
        %v2369 = vadd.f32 %v1614, %v2368
        %2370 = vmatmul.bf16.gmra.mxu0 %v1540
        %v2371 = vpop.f32.mrf.mxu0
        %v2372 = vadd.f32 %v1614, %v2371
        %v2373 = vpop.f32.mrf.mxu0
        %v2374 = vadd.f32 %v1614, %v2373
        %2375 = vmatmul.bf16.gmra.mxu0 %v1541
        %v2376 = vpop.f32.mrf.mxu0
        %v2377 = vadd.f32 %v1614, %v2376
        %v2378 = vpop.f32.mrf.mxu0
        %v2379 = vadd.f32 %v1614, %v2378
        %2380 = vmatmul.bf16.gmra.mxu0 %v1542
        %v2381 = vpop.f32.mrf.mxu0
        %v2382 = vadd.f32 %v1614, %v2381
        %v2383 = vpop.f32.mrf.mxu0
        %v2384 = vadd.f32 %v1614, %v2383
        %2385 = vmatmul.bf16.gmra.mxu0 %v1543
        %v2386 = vpop.f32.mrf.mxu0
        %v2387 = vadd.f32 %v1614, %v2386
        %v2388 = vpop.f32.mrf.mxu0
        %v2389 = vadd.f32 %v1614, %v2388
        %2390 = vdwg.mxu0
        %2391 = vmatpush.bf16.msra.mxu0 %v1879
        %2392 = vmatpush.bf16.msra.mxu0 %v1871
        %2393 = vmatpush.bf16.msra.mxu0 %v1863
        %2394 = vmatpush.bf16.msra.mxu0 %v1855
        %2395 = vmatpush.bf16.msra.mxu0 %v1847
        %2396 = vmatpush.bf16.msra.mxu0 %v1839
        %2397 = vmatpush.bf16.msra.mxu0 %v1831
        %2398 = vmatpush.bf16.msra.mxu0 %v1823
        %2399 = vmatmul.bf16.gmra.mxu0 %v1528
        %v2400 = vpop.f32.mrf.mxu0
        %v2401 = vadd.f32 %v1615, %v2400
        %v2402 = vpop.f32.mrf.mxu0
        %v2403 = vadd.f32 %v1615, %v2402
        %2404 = vmatmul.bf16.gmra.mxu0 %v1529
        %v2405 = vpop.f32.mrf.mxu0
        %v2406 = vadd.f32 %v1615, %v2405
        %v2407 = vpop.f32.mrf.mxu0
        %v2408 = vadd.f32 %v1615, %v2407
        %2409 = vmatmul.bf16.gmra.mxu0 %v1530
        %v2410 = vpop.f32.mrf.mxu0
        %v2411 = vadd.f32 %v1615, %v2410
        %v2412 = vpop.f32.mrf.mxu0
        %v2413 = vadd.f32 %v1615, %v2412
        %2414 = vmatmul.bf16.gmra.mxu0 %v1531
        %v2415 = vpop.f32.mrf.mxu0
        %v2416 = vadd.f32 %v1615, %v2415
        %v2417 = vpop.f32.mrf.mxu0
        %v2418 = vadd.f32 %v1615, %v2417
        %2419 = vmatmul.bf16.gmra.mxu0 %v1532
        %v2420 = vpop.f32.mrf.mxu0
        %v2421 = vadd.f32 %v1615, %v2420
        %v2422 = vpop.f32.mrf.mxu0
        %v2423 = vadd.f32 %v1615, %v2422
        %2424 = vmatmul.bf16.gmra.mxu0 %v1533
        %v2425 = vpop.f32.mrf.mxu0
        %v2426 = vadd.f32 %v1615, %v2425
        %v2427 = vpop.f32.mrf.mxu0
        %v2428 = vadd.f32 %v1615, %v2427
        %2429 = vmatmul.bf16.gmra.mxu0 %v1534
        %v2430 = vpop.f32.mrf.mxu0
        %v2431 = vadd.f32 %v1615, %v2430
        %v2432 = vpop.f32.mrf.mxu0
        %v2433 = vadd.f32 %v1615, %v2432
        %2434 = vmatmul.bf16.gmra.mxu0 %v1535
        %v2435 = vpop.f32.mrf.mxu0
        %v2436 = vadd.f32 %v1615, %v2435
        %v2437 = vpop.f32.mrf.mxu0
        %v2438 = vadd.f32 %v1615, %v2437
        %2439 = vmatmul.bf16.gmra.mxu0 %v1536
        %v2440 = vpop.f32.mrf.mxu0
        %v2441 = vadd.f32 %v1615, %v2440
        %v2442 = vpop.f32.mrf.mxu0
        %v2443 = vadd.f32 %v1615, %v2442
        %2444 = vmatmul.bf16.gmra.mxu0 %v1537
        %v2445 = vpop.f32.mrf.mxu0
        %v2446 = vadd.f32 %v1615, %v2445
        %v2447 = vpop.f32.mrf.mxu0
        %v2448 = vadd.f32 %v1615, %v2447
        %2449 = vmatmul.bf16.gmra.mxu0 %v1538
        %v2450 = vpop.f32.mrf.mxu0
        %v2451 = vadd.f32 %v1615, %v2450
        %v2452 = vpop.f32.mrf.mxu0
        %v2453 = vadd.f32 %v1615, %v2452
        %2454 = vmatmul.bf16.gmra.mxu0 %v1539
        %v2455 = vpop.f32.mrf.mxu0
        %v2456 = vadd.f32 %v1615, %v2455
        %v2457 = vpop.f32.mrf.mxu0
        %v2458 = vadd.f32 %v1615, %v2457
        %2459 = vmatmul.bf16.gmra.mxu0 %v1540
        %v2460 = vpop.f32.mrf.mxu0
        %v2461 = vadd.f32 %v1615, %v2460
        %v2462 = vpop.f32.mrf.mxu0
        %v2463 = vadd.f32 %v1615, %v2462
        %2464 = vmatmul.bf16.gmra.mxu0 %v1541
        %v2465 = vpop.f32.mrf.mxu0
        %v2466 = vadd.f32 %v1615, %v2465
        %v2467 = vpop.f32.mrf.mxu0
        %v2468 = vadd.f32 %v1615, %v2467
        %2469 = vmatmul.bf16.gmra.mxu0 %v1542
        %v2470 = vpop.f32.mrf.mxu0
        %v2471 = vadd.f32 %v1615, %v2470
        %v2472 = vpop.f32.mrf.mxu0
        %v2473 = vadd.f32 %v1615, %v2472
        %2474 = vmatmul.bf16.gmra.mxu0 %v1543
        %v2475 = vpop.f32.mrf.mxu0
        %v2476 = vadd.f32 %v1615, %v2475
        %v2477 = vpop.f32.mrf.mxu0
        %v2478 = vadd.f32 %v1615, %v2477
        %2479 = vdwg.mxu0
        %2480 = vmatpush.bf16.msra.mxu0 %v1880
        %2481 = vmatpush.bf16.msra.mxu0 %v1872
        %2482 = vmatpush.bf16.msra.mxu0 %v1864
        %2483 = vmatpush.bf16.msra.mxu0 %v1856
        %2484 = vmatpush.bf16.msra.mxu0 %v1848
        %2485 = vmatpush.bf16.msra.mxu0 %v1840
        %2486 = vmatpush.bf16.msra.mxu0 %v1832
        %2487 = vmatpush.bf16.msra.mxu0 %v1824
        %2488 = vmatmul.bf16.gmra.mxu0 %v1528
        %v2489 = vpop.f32.mrf.mxu0
        %v2490 = vadd.f32 %v1616, %v2489
        %v2491 = vpop.f32.mrf.mxu0
        %v2492 = vadd.f32 %v1616, %v2491
        %2493 = vmatmul.bf16.gmra.mxu0 %v1529
        %v2494 = vpop.f32.mrf.mxu0
        %v2495 = vadd.f32 %v1616, %v2494
        %v2496 = vpop.f32.mrf.mxu0
        %v2497 = vadd.f32 %v1616, %v2496
        %2498 = vmatmul.bf16.gmra.mxu0 %v1530
        %v2499 = vpop.f32.mrf.mxu0
        %v2500 = vadd.f32 %v1616, %v2499
        %v2501 = vpop.f32.mrf.mxu0
        %v2502 = vadd.f32 %v1616, %v2501
        %2503 = vmatmul.bf16.gmra.mxu0 %v1531
        %v2504 = vpop.f32.mrf.mxu0
        %v2505 = vadd.f32 %v1616, %v2504
        %v2506 = vpop.f32.mrf.mxu0
        %v2507 = vadd.f32 %v1616, %v2506
        %2508 = vmatmul.bf16.gmra.mxu0 %v1532
        %v2509 = vpop.f32.mrf.mxu0
        %v2510 = vadd.f32 %v1616, %v2509
        %v2511 = vpop.f32.mrf.mxu0
        %v2512 = vadd.f32 %v1616, %v2511
        %2513 = vmatmul.bf16.gmra.mxu0 %v1533
        %v2514 = vpop.f32.mrf.mxu0
        %v2515 = vadd.f32 %v1616, %v2514
        %v2516 = vpop.f32.mrf.mxu0
        %v2517 = vadd.f32 %v1616, %v2516
        %2518 = vmatmul.bf16.gmra.mxu0 %v1534
        %v2519 = vpop.f32.mrf.mxu0
        %v2520 = vadd.f32 %v1616, %v2519
        %v2521 = vpop.f32.mrf.mxu0
        %v2522 = vadd.f32 %v1616, %v2521
        %2523 = vmatmul.bf16.gmra.mxu0 %v1535
        %v2524 = vpop.f32.mrf.mxu0
        %v2525 = vadd.f32 %v1616, %v2524
        %v2526 = vpop.f32.mrf.mxu0
        %v2527 = vadd.f32 %v1616, %v2526
        %2528 = vmatmul.bf16.gmra.mxu0 %v1536
        %v2529 = vpop.f32.mrf.mxu0
        %v2530 = vadd.f32 %v1616, %v2529
        %v2531 = vpop.f32.mrf.mxu0
        %v2532 = vadd.f32 %v1616, %v2531
        %2533 = vmatmul.bf16.gmra.mxu0 %v1537
        %v2534 = vpop.f32.mrf.mxu0
        %v2535 = vadd.f32 %v1616, %v2534
        %v2536 = vpop.f32.mrf.mxu0
        %v2537 = vadd.f32 %v1616, %v2536
        %2538 = vmatmul.bf16.gmra.mxu0 %v1538
        %v2539 = vpop.f32.mrf.mxu0
        %v2540 = vadd.f32 %v1616, %v2539
        %v2541 = vpop.f32.mrf.mxu0
        %v2542 = vadd.f32 %v1616, %v2541
        %2543 = vmatmul.bf16.gmra.mxu0 %v1539
        %v2544 = vpop.f32.mrf.mxu0
        %v2545 = vadd.f32 %v1616, %v2544
        %v2546 = vpop.f32.mrf.mxu0
        %v2547 = vadd.f32 %v1616, %v2546
        %2548 = vmatmul.bf16.gmra.mxu0 %v1540
        %v2549 = vpop.f32.mrf.mxu0
        %v2550 = vadd.f32 %v1616, %v2549
        %v2551 = vpop.f32.mrf.mxu0
        %v2552 = vadd.f32 %v1616, %v2551
        %2553 = vmatmul.bf16.gmra.mxu0 %v1541
        %v2554 = vpop.f32.mrf.mxu0
        %v2555 = vadd.f32 %v1616, %v2554
        %v2556 = vpop.f32.mrf.mxu0
        %v2557 = vadd.f32 %v1616, %v2556
        %2558 = vmatmul.bf16.gmra.mxu0 %v1542
        %v2559 = vpop.f32.mrf.mxu0
        %v2560 = vadd.f32 %v1616, %v2559
        %v2561 = vpop.f32.mrf.mxu0
        %v2562 = vadd.f32 %v1616, %v2561
        %2563 = vmatmul.bf16.gmra.mxu0 %v1543
        %v2564 = vpop.f32.mrf.mxu0
        %v2565 = vadd.f32 %v1616, %v2564
        %v2566 = vpop.f32.mrf.mxu0
        %v2567 = vadd.f32 %v1616, %v2566
        %2568 = vdwg.mxu0
        %2569 = vmatpush.bf16.msra.mxu0 %v1881
        %2570 = vmatpush.bf16.msra.mxu0 %v1873
        %2571 = vmatpush.bf16.msra.mxu0 %v1865
        %2572 = vmatpush.bf16.msra.mxu0 %v1857
        %2573 = vmatpush.bf16.msra.mxu0 %v1849
        %2574 = vmatpush.bf16.msra.mxu0 %v1841
        %2575 = vmatpush.bf16.msra.mxu0 %v1833
        %2576 = vmatpush.bf16.msra.mxu0 %v1825
        %2577 = vmatmul.bf16.gmra.mxu0 %v1528
        %v2578 = vpop.f32.mrf.mxu0
        %v2579 = vadd.f32 %v1617, %v2578
        %v2580 = vpop.f32.mrf.mxu0
        %v2581 = vadd.f32 %v1617, %v2580
        %2582 = vmatmul.bf16.gmra.mxu0 %v1529
        %v2583 = vpop.f32.mrf.mxu0
        %v2584 = vadd.f32 %v1617, %v2583
        %v2585 = vpop.f32.mrf.mxu0
        %v2586 = vadd.f32 %v1617, %v2585
        %2587 = vmatmul.bf16.gmra.mxu0 %v1530
        %v2588 = vpop.f32.mrf.mxu0
        %v2589 = vadd.f32 %v1617, %v2588
        %v2590 = vpop.f32.mrf.mxu0
        %v2591 = vadd.f32 %v1617, %v2590
        %2592 = vmatmul.bf16.gmra.mxu0 %v1531
        %v2593 = vpop.f32.mrf.mxu0
        %v2594 = vadd.f32 %v1617, %v2593
        %v2595 = vpop.f32.mrf.mxu0
        %v2596 = vadd.f32 %v1617, %v2595
        %2597 = vmatmul.bf16.gmra.mxu0 %v1532
        %v2598 = vpop.f32.mrf.mxu0
        %v2599 = vadd.f32 %v1617, %v2598
        %v2600 = vpop.f32.mrf.mxu0
        %v2601 = vadd.f32 %v1617, %v2600
        %2602 = vmatmul.bf16.gmra.mxu0 %v1533
        %v2603 = vpop.f32.mrf.mxu0
        %v2604 = vadd.f32 %v1617, %v2603
        %v2605 = vpop.f32.mrf.mxu0
        %v2606 = vadd.f32 %v1617, %v2605
        %2607 = vmatmul.bf16.gmra.mxu0 %v1534
        %v2608 = vpop.f32.mrf.mxu0
        %v2609 = vadd.f32 %v1617, %v2608
        %v2610 = vpop.f32.mrf.mxu0
        %v2611 = vadd.f32 %v1617, %v2610
        %2612 = vmatmul.bf16.gmra.mxu0 %v1535
        %v2613 = vpop.f32.mrf.mxu0
        %v2614 = vadd.f32 %v1617, %v2613
        %v2615 = vpop.f32.mrf.mxu0
        %v2616 = vadd.f32 %v1617, %v2615
        %2617 = vmatmul.bf16.gmra.mxu0 %v1536
        %v2618 = vpop.f32.mrf.mxu0
        %v2619 = vadd.f32 %v1617, %v2618
        %v2620 = vpop.f32.mrf.mxu0
        %v2621 = vadd.f32 %v1617, %v2620
        %2622 = vmatmul.bf16.gmra.mxu0 %v1537
        %v2623 = vpop.f32.mrf.mxu0
        %v2624 = vadd.f32 %v1617, %v2623
        %v2625 = vpop.f32.mrf.mxu0
        %v2626 = vadd.f32 %v1617, %v2625
        %2627 = vmatmul.bf16.gmra.mxu0 %v1538
        %v2628 = vpop.f32.mrf.mxu0
        %v2629 = vadd.f32 %v1617, %v2628
        %v2630 = vpop.f32.mrf.mxu0
        %v2631 = vadd.f32 %v1617, %v2630
        %2632 = vmatmul.bf16.gmra.mxu0 %v1539
        %v2633 = vpop.f32.mrf.mxu0
        %v2634 = vadd.f32 %v1617, %v2633
        %v2635 = vpop.f32.mrf.mxu0
        %v2636 = vadd.f32 %v1617, %v2635
        %2637 = vmatmul.bf16.gmra.mxu0 %v1540
        %v2638 = vpop.f32.mrf.mxu0
        %v2639 = vadd.f32 %v1617, %v2638
        %v2640 = vpop.f32.mrf.mxu0
        %v2641 = vadd.f32 %v1617, %v2640
        %2642 = vmatmul.bf16.gmra.mxu0 %v1541
        %v2643 = vpop.f32.mrf.mxu0
        %v2644 = vadd.f32 %v1617, %v2643
        %v2645 = vpop.f32.mrf.mxu0
        %v2646 = vadd.f32 %v1617, %v2645
        %2647 = vmatmul.bf16.gmra.mxu0 %v1542
        %v2648 = vpop.f32.mrf.mxu0
        %v2649 = vadd.f32 %v1617, %v2648
        %v2650 = vpop.f32.mrf.mxu0
        %v2651 = vadd.f32 %v1617, %v2650
        %2652 = vmatmul.bf16.gmra.mxu0 %v1543
        %v2653 = vpop.f32.mrf.mxu0
        %v2654 = vadd.f32 %v1617, %v2653
        %v2655 = vpop.f32.mrf.mxu0
        %v2656 = vadd.f32 %v1617, %v2655
        %2657 = vdwg.mxu0
        %v2658 = vmax.f32 %v1956, 0.0
        %v2659 = vmax.f32 %v2045, 0.0
        %v2660 = vmax.f32 %v2134, 0.0
        %v2661 = vmax.f32 %v2223, 0.0
        %v2662 = vmax.f32 %v2312, 0.0
        %v2663 = vmax.f32 %v2401, 0.0
        %v2664 = vmax.f32 %v2490, 0.0
        %v2665 = vmax.f32 %v2579, 0.0
        %v2666 = vmax.f32 %v1958, 0.0
        %v2667 = vmax.f32 %v2047, 0.0
        %v2668 = vmax.f32 %v2136, 0.0
        %v2669 = vmax.f32 %v2225, 0.0
        %v2670 = vmax.f32 %v2314, 0.0
        %v2671 = vmax.f32 %v2403, 0.0
        %v2672 = vmax.f32 %v2492, 0.0
        %v2673 = vmax.f32 %v2581, 0.0
        %v2674 = vmax.f32 %v1961, 0.0
        %v2675 = vmax.f32 %v2050, 0.0
        %v2676 = vmax.f32 %v2139, 0.0
        %v2677 = vmax.f32 %v2228, 0.0
        %v2678 = vmax.f32 %v2317, 0.0
        %v2679 = vmax.f32 %v2406, 0.0
        %v2680 = vmax.f32 %v2495, 0.0
        %v2681 = vmax.f32 %v2584, 0.0
        %v2682 = vmax.f32 %v1963, 0.0
        %v2683 = vmax.f32 %v2052, 0.0
        %v2684 = vmax.f32 %v2141, 0.0
        %v2685 = vmax.f32 %v2230, 0.0
        %v2686 = vmax.f32 %v2319, 0.0
        %v2687 = vmax.f32 %v2408, 0.0
        %v2688 = vmax.f32 %v2497, 0.0
        %v2689 = vmax.f32 %v2586, 0.0
        %v2690 = vmax.f32 %v1966, 0.0
        %v2691 = vmax.f32 %v2055, 0.0
        %v2692 = vmax.f32 %v2144, 0.0
        %v2693 = vmax.f32 %v2233, 0.0
        %v2694 = vmax.f32 %v2322, 0.0
        %v2695 = vmax.f32 %v2411, 0.0
        %v2696 = vmax.f32 %v2500, 0.0
        %v2697 = vmax.f32 %v2589, 0.0
        %v2698 = vmax.f32 %v1968, 0.0
        %v2699 = vmax.f32 %v2057, 0.0
        %v2700 = vmax.f32 %v2146, 0.0
        %v2701 = vmax.f32 %v2235, 0.0
        %v2702 = vmax.f32 %v2324, 0.0
        %v2703 = vmax.f32 %v2413, 0.0
        %v2704 = vmax.f32 %v2502, 0.0
        %v2705 = vmax.f32 %v2591, 0.0
        %v2706 = vmax.f32 %v1971, 0.0
        %v2707 = vmax.f32 %v2060, 0.0
        %v2708 = vmax.f32 %v2149, 0.0
        %v2709 = vmax.f32 %v2238, 0.0
        %v2710 = vmax.f32 %v2327, 0.0
        %v2711 = vmax.f32 %v2416, 0.0
        %v2712 = vmax.f32 %v2505, 0.0
        %v2713 = vmax.f32 %v2594, 0.0
        %v2714 = vmax.f32 %v1973, 0.0
        %v2715 = vmax.f32 %v2062, 0.0
        %v2716 = vmax.f32 %v2151, 0.0
        %v2717 = vmax.f32 %v2240, 0.0
        %v2718 = vmax.f32 %v2329, 0.0
        %v2719 = vmax.f32 %v2418, 0.0
        %v2720 = vmax.f32 %v2507, 0.0
        %v2721 = vmax.f32 %v2596, 0.0
        %v2722 = vmax.f32 %v1976, 0.0
        %v2723 = vmax.f32 %v2065, 0.0
        %v2724 = vmax.f32 %v2154, 0.0
        %v2725 = vmax.f32 %v2243, 0.0
        %v2726 = vmax.f32 %v2332, 0.0
        %v2727 = vmax.f32 %v2421, 0.0
        %v2728 = vmax.f32 %v2510, 0.0
        %v2729 = vmax.f32 %v2599, 0.0
        %v2730 = vmax.f32 %v1978, 0.0
        %v2731 = vmax.f32 %v2067, 0.0
        %v2732 = vmax.f32 %v2156, 0.0
        %v2733 = vmax.f32 %v2245, 0.0
        %v2734 = vmax.f32 %v2334, 0.0
        %v2735 = vmax.f32 %v2423, 0.0
        %v2736 = vmax.f32 %v2512, 0.0
        %v2737 = vmax.f32 %v2601, 0.0
        %v2738 = vmax.f32 %v1981, 0.0
        %v2739 = vmax.f32 %v2070, 0.0
        %v2740 = vmax.f32 %v2159, 0.0
        %v2741 = vmax.f32 %v2248, 0.0
        %v2742 = vmax.f32 %v2337, 0.0
        %v2743 = vmax.f32 %v2426, 0.0
        %v2744 = vmax.f32 %v2515, 0.0
        %v2745 = vmax.f32 %v2604, 0.0
        %v2746 = vmax.f32 %v1983, 0.0
        %v2747 = vmax.f32 %v2072, 0.0
        %v2748 = vmax.f32 %v2161, 0.0
        %v2749 = vmax.f32 %v2250, 0.0
        %v2750 = vmax.f32 %v2339, 0.0
        %v2751 = vmax.f32 %v2428, 0.0
        %v2752 = vmax.f32 %v2517, 0.0
        %v2753 = vmax.f32 %v2606, 0.0
        %v2754 = vmax.f32 %v1986, 0.0
        %v2755 = vmax.f32 %v2075, 0.0
        %v2756 = vmax.f32 %v2164, 0.0
        %v2757 = vmax.f32 %v2253, 0.0
        %v2758 = vmax.f32 %v2342, 0.0
        %v2759 = vmax.f32 %v2431, 0.0
        %v2760 = vmax.f32 %v2520, 0.0
        %v2761 = vmax.f32 %v2609, 0.0
        %v2762 = vmax.f32 %v1988, 0.0
        %v2763 = vmax.f32 %v2077, 0.0
        %v2764 = vmax.f32 %v2166, 0.0
        %v2765 = vmax.f32 %v2255, 0.0
        %v2766 = vmax.f32 %v2344, 0.0
        %v2767 = vmax.f32 %v2433, 0.0
        %v2768 = vmax.f32 %v2522, 0.0
        %v2769 = vmax.f32 %v2611, 0.0
        %v2770 = vmax.f32 %v1991, 0.0
        %v2771 = vmax.f32 %v2080, 0.0
        %v2772 = vmax.f32 %v2169, 0.0
        %v2773 = vmax.f32 %v2258, 0.0
        %v2774 = vmax.f32 %v2347, 0.0
        %v2775 = vmax.f32 %v2436, 0.0
        %v2776 = vmax.f32 %v2525, 0.0
        %v2777 = vmax.f32 %v2614, 0.0
        %v2778 = vmax.f32 %v1993, 0.0
        %v2779 = vmax.f32 %v2082, 0.0
        %v2780 = vmax.f32 %v2171, 0.0
        %v2781 = vmax.f32 %v2260, 0.0
        %v2782 = vmax.f32 %v2349, 0.0
        %v2783 = vmax.f32 %v2438, 0.0
        %v2784 = vmax.f32 %v2527, 0.0
        %v2785 = vmax.f32 %v2616, 0.0
        %v2786 = vmax.f32 %v1996, 0.0
        %v2787 = vmax.f32 %v2085, 0.0
        %v2788 = vmax.f32 %v2174, 0.0
        %v2789 = vmax.f32 %v2263, 0.0
        %v2790 = vmax.f32 %v2352, 0.0
        %v2791 = vmax.f32 %v2441, 0.0
        %v2792 = vmax.f32 %v2530, 0.0
        %v2793 = vmax.f32 %v2619, 0.0
        %v2794 = vmax.f32 %v1998, 0.0
        %v2795 = vmax.f32 %v2087, 0.0
        %v2796 = vmax.f32 %v2176, 0.0
        %v2797 = vmax.f32 %v2265, 0.0
        %v2798 = vmax.f32 %v2354, 0.0
        %v2799 = vmax.f32 %v2443, 0.0
        %v2800 = vmax.f32 %v2532, 0.0
        %v2801 = vmax.f32 %v2621, 0.0
        %v2802 = vmax.f32 %v2001, 0.0
        %v2803 = vmax.f32 %v2090, 0.0
        %v2804 = vmax.f32 %v2179, 0.0
        %v2805 = vmax.f32 %v2268, 0.0
        %v2806 = vmax.f32 %v2357, 0.0
        %v2807 = vmax.f32 %v2446, 0.0
        %v2808 = vmax.f32 %v2535, 0.0
        %v2809 = vmax.f32 %v2624, 0.0
        %v2810 = vmax.f32 %v2003, 0.0
        %v2811 = vmax.f32 %v2092, 0.0
        %v2812 = vmax.f32 %v2181, 0.0
        %v2813 = vmax.f32 %v2270, 0.0
        %v2814 = vmax.f32 %v2359, 0.0
        %v2815 = vmax.f32 %v2448, 0.0
        %v2816 = vmax.f32 %v2537, 0.0
        %v2817 = vmax.f32 %v2626, 0.0
        %v2818 = vmax.f32 %v2006, 0.0
        %v2819 = vmax.f32 %v2095, 0.0
        %v2820 = vmax.f32 %v2184, 0.0
        %v2821 = vmax.f32 %v2273, 0.0
        %v2822 = vmax.f32 %v2362, 0.0
        %v2823 = vmax.f32 %v2451, 0.0
        %v2824 = vmax.f32 %v2540, 0.0
        %v2825 = vmax.f32 %v2629, 0.0
        %v2826 = vmax.f32 %v2008, 0.0
        %v2827 = vmax.f32 %v2097, 0.0
        %v2828 = vmax.f32 %v2186, 0.0
        %v2829 = vmax.f32 %v2275, 0.0
        %v2830 = vmax.f32 %v2364, 0.0
        %v2831 = vmax.f32 %v2453, 0.0
        %v2832 = vmax.f32 %v2542, 0.0
        %v2833 = vmax.f32 %v2631, 0.0
        %v2834 = vmax.f32 %v2011, 0.0
        %v2835 = vmax.f32 %v2100, 0.0
        %v2836 = vmax.f32 %v2189, 0.0
        %v2837 = vmax.f32 %v2278, 0.0
        %v2838 = vmax.f32 %v2367, 0.0
        %v2839 = vmax.f32 %v2456, 0.0
        %v2840 = vmax.f32 %v2545, 0.0
        %v2841 = vmax.f32 %v2634, 0.0
        %v2842 = vmax.f32 %v2013, 0.0
        %v2843 = vmax.f32 %v2102, 0.0
        %v2844 = vmax.f32 %v2191, 0.0
        %v2845 = vmax.f32 %v2280, 0.0
        %v2846 = vmax.f32 %v2369, 0.0
        %v2847 = vmax.f32 %v2458, 0.0
        %v2848 = vmax.f32 %v2547, 0.0
        %v2849 = vmax.f32 %v2636, 0.0
        %v2850 = vmax.f32 %v2016, 0.0
        %v2851 = vmax.f32 %v2105, 0.0
        %v2852 = vmax.f32 %v2194, 0.0
        %v2853 = vmax.f32 %v2283, 0.0
        %v2854 = vmax.f32 %v2372, 0.0
        %v2855 = vmax.f32 %v2461, 0.0
        %v2856 = vmax.f32 %v2550, 0.0
        %v2857 = vmax.f32 %v2639, 0.0
        %v2858 = vmax.f32 %v2018, 0.0
        %v2859 = vmax.f32 %v2107, 0.0
        %v2860 = vmax.f32 %v2196, 0.0
        %v2861 = vmax.f32 %v2285, 0.0
        %v2862 = vmax.f32 %v2374, 0.0
        %v2863 = vmax.f32 %v2463, 0.0
        %v2864 = vmax.f32 %v2552, 0.0
        %v2865 = vmax.f32 %v2641, 0.0
        %v2866 = vmax.f32 %v2021, 0.0
        %v2867 = vmax.f32 %v2110, 0.0
        %v2868 = vmax.f32 %v2199, 0.0
        %v2869 = vmax.f32 %v2288, 0.0
        %v2870 = vmax.f32 %v2377, 0.0
        %v2871 = vmax.f32 %v2466, 0.0
        %v2872 = vmax.f32 %v2555, 0.0
        %v2873 = vmax.f32 %v2644, 0.0
        %v2874 = vmax.f32 %v2023, 0.0
        %v2875 = vmax.f32 %v2112, 0.0
        %v2876 = vmax.f32 %v2201, 0.0
        %v2877 = vmax.f32 %v2290, 0.0
        %v2878 = vmax.f32 %v2379, 0.0
        %v2879 = vmax.f32 %v2468, 0.0
        %v2880 = vmax.f32 %v2557, 0.0
        %v2881 = vmax.f32 %v2646, 0.0
        %v2882 = vmax.f32 %v2026, 0.0
        %v2883 = vmax.f32 %v2115, 0.0
        %v2884 = vmax.f32 %v2204, 0.0
        %v2885 = vmax.f32 %v2293, 0.0
        %v2886 = vmax.f32 %v2382, 0.0
        %v2887 = vmax.f32 %v2471, 0.0
        %v2888 = vmax.f32 %v2560, 0.0
        %v2889 = vmax.f32 %v2649, 0.0
        %v2890 = vmax.f32 %v2028, 0.0
        %v2891 = vmax.f32 %v2117, 0.0
        %v2892 = vmax.f32 %v2206, 0.0
        %v2893 = vmax.f32 %v2295, 0.0
        %v2894 = vmax.f32 %v2384, 0.0
        %v2895 = vmax.f32 %v2473, 0.0
        %v2896 = vmax.f32 %v2562, 0.0
        %v2897 = vmax.f32 %v2651, 0.0
        %v2898 = vmax.f32 %v2031, 0.0
        %v2899 = vmax.f32 %v2120, 0.0
        %v2900 = vmax.f32 %v2209, 0.0
        %v2901 = vmax.f32 %v2298, 0.0
        %v2902 = vmax.f32 %v2387, 0.0
        %v2903 = vmax.f32 %v2476, 0.0
        %v2904 = vmax.f32 %v2565, 0.0
        %v2905 = vmax.f32 %v2654, 0.0
        %v2906 = vmax.f32 %v2033, 0.0
        %v2907 = vmax.f32 %v2122, 0.0
        %v2908 = vmax.f32 %v2211, 0.0
        %v2909 = vmax.f32 %v2300, 0.0
        %v2910 = vmax.f32 %v2389, 0.0
        %v2911 = vmax.f32 %v2478, 0.0
        %v2912 = vmax.f32 %v2567, 0.0
        %v2913 = vmax.f32 %v2656, 0.0
        %v2914 = vld [vmem:[#allocation2] sm:$0xff]
        %v2915 = vmax.f32 %v2658, %v2666
        %v2916 = vmax.f32 %v2915, %v2674
        %v2917 = vmax.f32 %v2916, %v2682
        %v2918 = vmax.f32 %v2917, %v2690
        %v2919 = vmax.f32 %v2918, %v2698
        %v2920 = vmax.f32 %v2919, %v2706
        %v2921 = vmax.f32 %v2920, %v2714
        %v2922 = vmax.f32 %v2921, %v2722
        %v2923 = vmax.f32 %v2922, %v2730
        %v2924 = vmax.f32 %v2923, %v2738
        %v2925 = vmax.f32 %v2924, %v2746
        %v2926 = vmax.f32 %v2925, %v2754
        %v2927 = vmax.f32 %v2926, %v2762
        %v2928 = vmax.f32 %v2927, %v2770
        %v2929 = vmax.f32 %v2928, %v2778
        %v2930 = vmax.f32 %v2929, %v2786
        %v2931 = vmax.f32 %v2930, %v2794
        %v2932 = vmax.f32 %v2931, %v2802
        %v2933 = vmax.f32 %v2932, %v2810
        %v2934 = vmax.f32 %v2933, %v2818
        %v2935 = vmax.f32 %v2934, %v2826
        %v2936 = vmax.f32 %v2935, %v2834
        %v2937 = vmax.f32 %v2936, %v2842
        %v2938 = vmax.f32 %v2937, %v2850
        %v2939 = vmax.f32 %v2938, %v2858
        %v2940 = vmax.f32 %v2939, %v2866
        %v2941 = vmax.f32 %v2940, %v2874
        %v2942 = vmax.f32 %v2941, %v2882
        %v2943 = vmax.f32 %v2942, %v2890
        %v2944 = vmax.f32 %v2943, %v2898
        %v2945 = vmax.f32 %v2944, %v2906
        %v2946 = vrot.slane %v2945, 4
        %v2947 = vmax.f32 %v2945, %v2946
        %v2948 = vrot.slane %v2947, 2
        %v2949 = vmax.f32 %v2947, %v2948
        %v2950 = vrot.slane %v2949, 1
        %v2951 = vmax.f32 %v2949, %v2950
        %v2952 = vmax.f32 %v2659, %v2667
        %v2953 = vmax.f32 %v2952, %v2675
        %v2954 = vmax.f32 %v2953, %v2683
        %v2955 = vmax.f32 %v2954, %v2691
        %v2956 = vmax.f32 %v2955, %v2699
        %v2957 = vmax.f32 %v2956, %v2707
        %v2958 = vmax.f32 %v2957, %v2715
        %v2959 = vmax.f32 %v2958, %v2723
        %v2960 = vmax.f32 %v2959, %v2731
        %v2961 = vmax.f32 %v2960, %v2739
        %v2962 = vmax.f32 %v2961, %v2747
        %v2963 = vmax.f32 %v2962, %v2755
        %v2964 = vmax.f32 %v2963, %v2763
        %v2965 = vmax.f32 %v2964, %v2771
        %v2966 = vmax.f32 %v2965, %v2779
        %v2967 = vmax.f32 %v2966, %v2787
        %v2968 = vmax.f32 %v2967, %v2795
        %v2969 = vmax.f32 %v2968, %v2803
        %v2970 = vmax.f32 %v2969, %v2811
        %v2971 = vmax.f32 %v2970, %v2819
        %v2972 = vmax.f32 %v2971, %v2827
        %v2973 = vmax.f32 %v2972, %v2835
        %v2974 = vmax.f32 %v2973, %v2843
        %v2975 = vmax.f32 %v2974, %v2851
        %v2976 = vmax.f32 %v2975, %v2859
        %v2977 = vmax.f32 %v2976, %v2867
        %v2978 = vmax.f32 %v2977, %v2875
        %v2979 = vmax.f32 %v2978, %v2883
        %v2980 = vmax.f32 %v2979, %v2891
        %v2981 = vmax.f32 %v2980, %v2899
        %v2982 = vmax.f32 %v2981, %v2907
        %v2983 = vrot.slane %v2982, 4
        %v2984 = vmax.f32 %v2982, %v2983
        %v2985 = vrot.slane %v2984, 2
        %v2986 = vmax.f32 %v2984, %v2985
        %v2987 = vrot.slane %v2986, 1
        %v2988 = vmax.f32 %v2986, %v2987
        %v2989 = vmax.f32 %v2660, %v2668
        %v2990 = vmax.f32 %v2989, %v2676
        %v2991 = vmax.f32 %v2990, %v2684
        %v2992 = vmax.f32 %v2991, %v2692
        %v2993 = vmax.f32 %v2992, %v2700
        %v2994 = vmax.f32 %v2993, %v2708
        %v2995 = vmax.f32 %v2994, %v2716
        %v2996 = vmax.f32 %v2995, %v2724
        %v2997 = vmax.f32 %v2996, %v2732
        %v2998 = vmax.f32 %v2997, %v2740
        %v2999 = vmax.f32 %v2998, %v2748
        %v3000 = vmax.f32 %v2999, %v2756
        %v3001 = vmax.f32 %v3000, %v2764
        %v3002 = vmax.f32 %v3001, %v2772
        %v3003 = vmax.f32 %v3002, %v2780
        %v3004 = vmax.f32 %v3003, %v2788
        %v3005 = vmax.f32 %v3004, %v2796
        %v3006 = vmax.f32 %v3005, %v2804
        %v3007 = vmax.f32 %v3006, %v2812
        %v3008 = vmax.f32 %v3007, %v2820
        %v3009 = vmax.f32 %v3008, %v2828
        %v3010 = vmax.f32 %v3009, %v2836
        %v3011 = vmax.f32 %v3010, %v2844
        %v3012 = vmax.f32 %v3011, %v2852
        %v3013 = vmax.f32 %v3012, %v2860
        %v3014 = vmax.f32 %v3013, %v2868
        %v3015 = vmax.f32 %v3014, %v2876
        %v3016 = vmax.f32 %v3015, %v2884
        %v3017 = vmax.f32 %v3016, %v2892
        %v3018 = vmax.f32 %v3017, %v2900
        %v3019 = vmax.f32 %v3018, %v2908
        %v3020 = vrot.slane %v3019, 4
        %v3021 = vmax.f32 %v3019, %v3020
        %v3022 = vrot.slane %v3021, 2
        %v3023 = vmax.f32 %v3021, %v3022
        %v3024 = vrot.slane %v3023, 1
        %v3025 = vmax.f32 %v3023, %v3024
        %v3026 = vmax.f32 %v2661, %v2669
        %v3027 = vmax.f32 %v3026, %v2677
        %v3028 = vmax.f32 %v3027, %v2685
        %v3029 = vmax.f32 %v3028, %v2693
        %v3030 = vmax.f32 %v3029, %v2701
        %v3031 = vmax.f32 %v3030, %v2709
        %v3032 = vmax.f32 %v3031, %v2717
        %v3033 = vmax.f32 %v3032, %v2725
        %v3034 = vmax.f32 %v3033, %v2733
        %v3035 = vmax.f32 %v3034, %v2741
        %v3036 = vmax.f32 %v3035, %v2749
        %v3037 = vmax.f32 %v3036, %v2757
        %v3038 = vmax.f32 %v3037, %v2765
        %v3039 = vmax.f32 %v3038, %v2773
        %v3040 = vmax.f32 %v3039, %v2781
        %v3041 = vmax.f32 %v3040, %v2789
        %v3042 = vmax.f32 %v3041, %v2797
        %v3043 = vmax.f32 %v3042, %v2805
        %v3044 = vmax.f32 %v3043, %v2813
        %v3045 = vmax.f32 %v3044, %v2821
        %v3046 = vmax.f32 %v3045, %v2829
        %v3047 = vmax.f32 %v3046, %v2837
        %v3048 = vmax.f32 %v3047, %v2845
        %v3049 = vmax.f32 %v3048, %v2853
        %v3050 = vmax.f32 %v3049, %v2861
        %v3051 = vmax.f32 %v3050, %v2869
        %v3052 = vmax.f32 %v3051, %v2877
        %v3053 = vmax.f32 %v3052, %v2885
        %v3054 = vmax.f32 %v3053, %v2893
        %v3055 = vmax.f32 %v3054, %v2901
        %v3056 = vmax.f32 %v3055, %v2909
        %v3057 = vrot.slane %v3056, 4
        %v3058 = vmax.f32 %v3056, %v3057
        %v3059 = vrot.slane %v3058, 2
        %v3060 = vmax.f32 %v3058, %v3059
        %v3061 = vrot.slane %v3060, 1
        %v3062 = vmax.f32 %v3060, %v3061
        %v3063 = vmax.f32 %v2662, %v2670
        %v3064 = vmax.f32 %v3063, %v2678
        %v3065 = vmax.f32 %v3064, %v2686
        %v3066 = vmax.f32 %v3065, %v2694
        %v3067 = vmax.f32 %v3066, %v2702
        %v3068 = vmax.f32 %v3067, %v2710
        %v3069 = vmax.f32 %v3068, %v2718
        %v3070 = vmax.f32 %v3069, %v2726
        %v3071 = vmax.f32 %v3070, %v2734
        %v3072 = vmax.f32 %v3071, %v2742
        %v3073 = vmax.f32 %v3072, %v2750
        %v3074 = vmax.f32 %v3073, %v2758
        %v3075 = vmax.f32 %v3074, %v2766
        %v3076 = vmax.f32 %v3075, %v2774
        %v3077 = vmax.f32 %v3076, %v2782
        %v3078 = vmax.f32 %v3077, %v2790
        %v3079 = vmax.f32 %v3078, %v2798
        %v3080 = vmax.f32 %v3079, %v2806
        %v3081 = vmax.f32 %v3080, %v2814
        %v3082 = vmax.f32 %v3081, %v2822
        %v3083 = vmax.f32 %v3082, %v2830
        %v3084 = vmax.f32 %v3083, %v2838
        %v3085 = vmax.f32 %v3084, %v2846
        %v3086 = vmax.f32 %v3085, %v2854
        %v3087 = vmax.f32 %v3086, %v2862
        %v3088 = vmax.f32 %v3087, %v2870
        %v3089 = vmax.f32 %v3088, %v2878
        %v3090 = vmax.f32 %v3089, %v2886
        %v3091 = vmax.f32 %v3090, %v2894
        %v3092 = vmax.f32 %v3091, %v2902
        %v3093 = vmax.f32 %v3092, %v2910
        %v3094 = vrot.slane %v3093, 4
        %v3095 = vmax.f32 %v3093, %v3094
        %v3096 = vrot.slane %v3095, 2
        %v3097 = vmax.f32 %v3095, %v3096
        %v3098 = vrot.slane %v3097, 1
        %v3099 = vmax.f32 %v3097, %v3098
        %v3100 = vmax.f32 %v2663, %v2671
        %v3101 = vmax.f32 %v3100, %v2679
        %v3102 = vmax.f32 %v3101, %v2687
        %v3103 = vmax.f32 %v3102, %v2695
        %v3104 = vmax.f32 %v3103, %v2703
        %v3105 = vmax.f32 %v3104, %v2711
        %v3106 = vmax.f32 %v3105, %v2719
        %v3107 = vmax.f32 %v3106, %v2727
        %v3108 = vmax.f32 %v3107, %v2735
        %v3109 = vmax.f32 %v3108, %v2743
        %v3110 = vmax.f32 %v3109, %v2751
        %v3111 = vmax.f32 %v3110, %v2759
        %v3112 = vmax.f32 %v3111, %v2767
        %v3113 = vmax.f32 %v3112, %v2775
        %v3114 = vmax.f32 %v3113, %v2783
        %v3115 = vmax.f32 %v3114, %v2791
        %v3116 = vmax.f32 %v3115, %v2799
        %v3117 = vmax.f32 %v3116, %v2807
        %v3118 = vmax.f32 %v3117, %v2815
        %v3119 = vmax.f32 %v3118, %v2823
        %v3120 = vmax.f32 %v3119, %v2831
        %v3121 = vmax.f32 %v3120, %v2839
        %v3122 = vmax.f32 %v3121, %v2847
        %v3123 = vmax.f32 %v3122, %v2855
        %v3124 = vmax.f32 %v3123, %v2863
        %v3125 = vmax.f32 %v3124, %v2871
        %v3126 = vmax.f32 %v3125, %v2879
        %v3127 = vmax.f32 %v3126, %v2887
        %v3128 = vmax.f32 %v3127, %v2895
        %v3129 = vmax.f32 %v3128, %v2903
        %v3130 = vmax.f32 %v3129, %v2911
        %v3131 = vrot.slane %v3130, 4
        %v3132 = vmax.f32 %v3130, %v3131
        %v3133 = vrot.slane %v3132, 2
        %v3134 = vmax.f32 %v3132, %v3133
        %v3135 = vrot.slane %v3134, 1
        %v3136 = vmax.f32 %v3134, %v3135
        %v3137 = vmax.f32 %v2664, %v2672
        %v3138 = vmax.f32 %v3137, %v2680
        %v3139 = vmax.f32 %v3138, %v2688
        %v3140 = vmax.f32 %v3139, %v2696
        %v3141 = vmax.f32 %v3140, %v2704
        %v3142 = vmax.f32 %v3141, %v2712
        %v3143 = vmax.f32 %v3142, %v2720
        %v3144 = vmax.f32 %v3143, %v2728
        %v3145 = vmax.f32 %v3144, %v2736
        %v3146 = vmax.f32 %v3145, %v2744
        %v3147 = vmax.f32 %v3146, %v2752
        %v3148 = vmax.f32 %v3147, %v2760
        %v3149 = vmax.f32 %v3148, %v2768
        %v3150 = vmax.f32 %v3149, %v2776
        %v3151 = vmax.f32 %v3150, %v2784
        %v3152 = vmax.f32 %v3151, %v2792
        %v3153 = vmax.f32 %v3152, %v2800
        %v3154 = vmax.f32 %v3153, %v2808
        %v3155 = vmax.f32 %v3154, %v2816
        %v3156 = vmax.f32 %v3155, %v2824
        %v3157 = vmax.f32 %v3156, %v2832
        %v3158 = vmax.f32 %v3157, %v2840
        %v3159 = vmax.f32 %v3158, %v2848
        %v3160 = vmax.f32 %v3159, %v2856
        %v3161 = vmax.f32 %v3160, %v2864
        %v3162 = vmax.f32 %v3161, %v2872
        %v3163 = vmax.f32 %v3162, %v2880
        %v3164 = vmax.f32 %v3163, %v2888
        %v3165 = vmax.f32 %v3164, %v2896
        %v3166 = vmax.f32 %v3165, %v2904
        %v3167 = vmax.f32 %v3166, %v2912
        %v3168 = vrot.slane %v3167, 4
        %v3169 = vmax.f32 %v3167, %v3168
        %v3170 = vrot.slane %v3169, 2
        %v3171 = vmax.f32 %v3169, %v3170
        %v3172 = vrot.slane %v3171, 1
        %v3173 = vmax.f32 %v3171, %v3172
        %v3174 = vmax.f32 %v2665, %v2673
        %v3175 = vmax.f32 %v3174, %v2681
        %v3176 = vmax.f32 %v3175, %v2689
        %v3177 = vmax.f32 %v3176, %v2697
        %v3178 = vmax.f32 %v3177, %v2705
        %v3179 = vmax.f32 %v3178, %v2713
        %v3180 = vmax.f32 %v3179, %v2721
        %v3181 = vmax.f32 %v3180, %v2729
        %v3182 = vmax.f32 %v3181, %v2737
        %v3183 = vmax.f32 %v3182, %v2745
        %v3184 = vmax.f32 %v3183, %v2753
        %v3185 = vmax.f32 %v3184, %v2761
        %v3186 = vmax.f32 %v3185, %v2769
        %v3187 = vmax.f32 %v3186, %v2777
        %v3188 = vmax.f32 %v3187, %v2785
        %v3189 = vmax.f32 %v3188, %v2793
        %v3190 = vmax.f32 %v3189, %v2801
        %v3191 = vmax.f32 %v3190, %v2809
        %v3192 = vmax.f32 %v3191, %v2817
        %v3193 = vmax.f32 %v3192, %v2825
        %v3194 = vmax.f32 %v3193, %v2833
        %v3195 = vmax.f32 %v3194, %v2841
        %v3196 = vmax.f32 %v3195, %v2849
        %v3197 = vmax.f32 %v3196, %v2857
        %v3198 = vmax.f32 %v3197, %v2865
        %v3199 = vmax.f32 %v3198, %v2873
        %v3200 = vmax.f32 %v3199, %v2881
        %v3201 = vmax.f32 %v3200, %v2889
        %v3202 = vmax.f32 %v3201, %v2897
        %v3203 = vmax.f32 %v3202, %v2905
        %v3204 = vmax.f32 %v3203, %v2913
        %v3205 = vrot.slane %v3204, 4
        %v3206 = vmax.f32 %v3204, %v3205
        %v3207 = vrot.slane %v3206, 2
        %v3208 = vmax.f32 %v3206, %v3207
        %v3209 = vrot.slane %v3208, 1
        %v3210 = vmax.f32 %v3208, %v3209
        %v3219 = vrot.slane %v2988, 7
        %v3220 = vrot.slane %v3025, 6
        %v3221 = vrot.slane %v3062, 5
        %v3222 = vrot.slane %v3099, 4
        %v3223 = vrot.slane %v3136, 3
        %v3224 = vrot.slane %v3173, 2
        %v3225 = vrot.slane %v3210, 1
        %vm3226 = vcmask 1040384
        %v3227 = vsel %vm3226, %v2951, %v3219
        %vm3228 = vcmask 1042434
        %v3229 = vsel %vm3228, %v3220, %v3221
        %vm3230 = vcmask 1041408
        %v3231 = vsel %vm3230, %v3227, %v3229
        %vm3232 = vcmask 1044484
        %v3233 = vsel %vm3232, %v3222, %v3223
        %vm3234 = vcmask 1046534
        %v3235 = vsel %vm3234, %v3224, %v3225
        %vm3236 = vcmask 1045508
        %v3237 = vsel %vm3236, %v3233, %v3235
        %vm3238 = vcmask 1043456
        %v3239 = vsel %vm3238, %v3231, %v3237
        %v3241 = vmax.f32 %v2914, %v3239
        %3242 = vst [vmem:[#allocation2] sm:$0xff] %v3241
        %p3243 = scmp.eq.s32.totalorder %s39, 3
        // Predicated region
        $region121: #{tpu_custom_call.1} parent=67 // pred_check
          %p3244 = pneg %p3243
        $region122: #{tpu_custom_call.1} parent=67 // pred_check_branch
          %3246 = sbr.rel (%p3244) target = $region124
        $region123: #{tpu_custom_call.1} parent=67 // pred_region
          %s3247 = smul.u32 8, 128
          %s3248 = smul.u32 %s3247, 4
          %s3249 = sshll.u32 %s3248, 4
          %3250 = dma.done [#allocation5], %s3249
          %s3251 = scalar_lea.sflag [#allocation5], 1
          %s3252 = smul.u32 8, 64
          %s3253 = smul.u32 %s3252, 2
          %s3254 = sshll.u32 %s3253, 4
          %3255 = dma.done %s3251, %s3254
          %v3256 = vld [vmem:[#allocation2] sm:$0xff]
          %v3257 = vld [vmem:[#allocation3] sm:$0xff]
          %v3258 = vld [vmem:[#allocation3 + $0x8] sm:$0xff]
          %v3259 = vld [vmem:[#allocation3 + $0x10] sm:$0xff]
          %v3260 = vld [vmem:[#allocation3 + $0x18] sm:$0xff]
          %v3261 = vld [vmem:[#allocation3 + $0x20] sm:$0xff]
          %v3262 = vld [vmem:[#allocation3 + $0x28] sm:$0xff]
          %v3263 = vld [vmem:[#allocation3 + $0x30] sm:$0xff]
          %v3264 = vld [vmem:[#allocation3 + $0x38] sm:$0xff]
          %v3265 = vld [vmem:[#allocation3 + $0x40] sm:$0xff]
          %v3266 = vld [vmem:[#allocation3 + $0x48] sm:$0xff]
          %v3267 = vld [vmem:[#allocation3 + $0x50] sm:$0xff]
          %v3268 = vld [vmem:[#allocation3 + $0x58] sm:$0xff]
          %v3269 = vld [vmem:[#allocation3 + $0x60] sm:$0xff]
          %v3270 = vld [vmem:[#allocation3 + $0x68] sm:$0xff]
          %v3271 = vld [vmem:[#allocation3 + $0x70] sm:$0xff]
          %v3272 = vld [vmem:[#allocation3 + $0x78] sm:$0xff]
          %v3273 = vld [vmem:[#allocation3 + $0x80] sm:$0xff]
          %v3274 = vld [vmem:[#allocation3 + $0x88] sm:$0xff]
          %v3275 = vld [vmem:[#allocation3 + $0x90] sm:$0xff]
          %v3276 = vld [vmem:[#allocation3 + $0x98] sm:$0xff]
          %v3277 = vld [vmem:[#allocation3 + $0xa0] sm:$0xff]
          %v3278 = vld [vmem:[#allocation3 + $0xa8] sm:$0xff]
          %v3279 = vld [vmem:[#allocation3 + $0xb0] sm:$0xff]
          %v3280 = vld [vmem:[#allocation3 + $0xb8] sm:$0xff]
          %v3281 = vld [vmem:[#allocation3 + $0xc0] sm:$0xff]
          %v3282 = vld [vmem:[#allocation3 + $0xc8] sm:$0xff]
          %v3283 = vld [vmem:[#allocation3 + $0xd0] sm:$0xff]
          %v3284 = vld [vmem:[#allocation3 + $0xd8] sm:$0xff]
          %v3285 = vld [vmem:[#allocation3 + $0xe0] sm:$0xff]
          %v3286 = vld [vmem:[#allocation3 + $0xe8] sm:$0xff]
          %v3287 = vld [vmem:[#allocation3 + $0xf0] sm:$0xff]
          %v3288 = vld [vmem:[#allocation3 + $0xf8] sm:$0xff]
          %v3289 = vld [vmem:[#allocation3 + $0x100] sm:$0xff]
          %v3290 = vld [vmem:[#allocation3 + $0x108] sm:$0xff]
          %v3291 = vld [vmem:[#allocation3 + $0x110] sm:$0xff]
          %v3292 = vld [vmem:[#allocation3 + $0x118] sm:$0xff]
          %v3293 = vld [vmem:[#allocation3 + $0x120] sm:$0xff]
          %v3294 = vld [vmem:[#allocation3 + $0x128] sm:$0xff]
          %v3295 = vld [vmem:[#allocation3 + $0x130] sm:$0xff]
          %v3296 = vld [vmem:[#allocation3 + $0x138] sm:$0xff]
          %v3297 = vld [vmem:[#allocation3 + $0x140] sm:$0xff]
          %v3298 = vld [vmem:[#allocation3 + $0x148] sm:$0xff]
          %v3299 = vld [vmem:[#allocation3 + $0x150] sm:$0xff]
          %v3300 = vld [vmem:[#allocation3 + $0x158] sm:$0xff]
          %v3301 = vld [vmem:[#allocation3 + $0x160] sm:$0xff]
          %v3302 = vld [vmem:[#allocation3 + $0x168] sm:$0xff]
          %v3303 = vld [vmem:[#allocation3 + $0x170] sm:$0xff]
          %v3304 = vld [vmem:[#allocation3 + $0x178] sm:$0xff]
          %v3305 = vld [vmem:[#allocation3 + $0x180] sm:$0xff]
          %v3306 = vld [vmem:[#allocation3 + $0x188] sm:$0xff]
          %v3307 = vld [vmem:[#allocation3 + $0x190] sm:$0xff]
          %v3308 = vld [vmem:[#allocation3 + $0x198] sm:$0xff]
          %v3309 = vld [vmem:[#allocation3 + $0x1a0] sm:$0xff]
          %v3310 = vld [vmem:[#allocation3 + $0x1a8] sm:$0xff]
          %v3311 = vld [vmem:[#allocation3 + $0x1b0] sm:$0xff]
          %v3312 = vld [vmem:[#allocation3 + $0x1b8] sm:$0xff]
          %v3313 = vld [vmem:[#allocation3 + $0x1c0] sm:$0xff]
          %v3314 = vld [vmem:[#allocation3 + $0x1c8] sm:$0xff]
          %v3315 = vld [vmem:[#allocation3 + $0x1d0] sm:$0xff]
          %v3316 = vld [vmem:[#allocation3 + $0x1d8] sm:$0xff]
          %v3317 = vld [vmem:[#allocation3 + $0x1e0] sm:$0xff]
          %v3318 = vld [vmem:[#allocation3 + $0x1e8] sm:$0xff]
          %v3319 = vld [vmem:[#allocation3 + $0x1f0] sm:$0xff]
          %v3320 = vld [vmem:[#allocation3 + $0x1f8] sm:$0xff]
          %v3321 = vld [vmem:[#allocation3 + $0x200] sm:$0xff]
          %v3322 = vld [vmem:[#allocation3 + $0x208] sm:$0xff]
          %v3323 = vld [vmem:[#allocation3 + $0x210] sm:$0xff]
          %v3324 = vld [vmem:[#allocation3 + $0x218] sm:$0xff]
          %v3325 = vld [vmem:[#allocation3 + $0x220] sm:$0xff]
          %v3326 = vld [vmem:[#allocation3 + $0x228] sm:$0xff]
          %v3327 = vld [vmem:[#allocation3 + $0x230] sm:$0xff]
          %v3328 = vld [vmem:[#allocation3 + $0x238] sm:$0xff]
          %v3329 = vld [vmem:[#allocation3 + $0x240] sm:$0xff]
          %v3330 = vld [vmem:[#allocation3 + $0x248] sm:$0xff]
          %v3331 = vld [vmem:[#allocation3 + $0x250] sm:$0xff]
          %v3332 = vld [vmem:[#allocation3 + $0x258] sm:$0xff]
          %v3333 = vld [vmem:[#allocation3 + $0x260] sm:$0xff]
          %v3334 = vld [vmem:[#allocation3 + $0x268] sm:$0xff]
          %v3335 = vld [vmem:[#allocation3 + $0x270] sm:$0xff]
          %v3336 = vld [vmem:[#allocation3 + $0x278] sm:$0xff]
          %v3337 = vld [vmem:[#allocation3 + $0x280] sm:$0xff]
          %v3338 = vld [vmem:[#allocation3 + $0x288] sm:$0xff]
          %v3339 = vld [vmem:[#allocation3 + $0x290] sm:$0xff]
          %v3340 = vld [vmem:[#allocation3 + $0x298] sm:$0xff]
          %v3341 = vld [vmem:[#allocation3 + $0x2a0] sm:$0xff]
          %v3342 = vld [vmem:[#allocation3 + $0x2a8] sm:$0xff]
          %v3343 = vld [vmem:[#allocation3 + $0x2b0] sm:$0xff]
          %v3344 = vld [vmem:[#allocation3 + $0x2b8] sm:$0xff]
          %v3345 = vld [vmem:[#allocation3 + $0x2c0] sm:$0xff]
          %v3346 = vld [vmem:[#allocation3 + $0x2c8] sm:$0xff]
          %v3347 = vld [vmem:[#allocation3 + $0x2d0] sm:$0xff]
          %v3348 = vld [vmem:[#allocation3 + $0x2d8] sm:$0xff]
          %v3349 = vld [vmem:[#allocation3 + $0x2e0] sm:$0xff]
          %v3350 = vld [vmem:[#allocation3 + $0x2e8] sm:$0xff]
          %v3351 = vld [vmem:[#allocation3 + $0x2f0] sm:$0xff]
          %v3352 = vld [vmem:[#allocation3 + $0x2f8] sm:$0xff]
          %v3353 = vld [vmem:[#allocation3 + $0x300] sm:$0xff]
          %v3354 = vld [vmem:[#allocation3 + $0x308] sm:$0xff]
          %v3355 = vld [vmem:[#allocation3 + $0x310] sm:$0xff]
          %v3356 = vld [vmem:[#allocation3 + $0x318] sm:$0xff]
          %v3357 = vld [vmem:[#allocation3 + $0x320] sm:$0xff]
          %v3358 = vld [vmem:[#allocation3 + $0x328] sm:$0xff]
          %v3359 = vld [vmem:[#allocation3 + $0x330] sm:$0xff]
          %v3360 = vld [vmem:[#allocation3 + $0x338] sm:$0xff]
          %v3361 = vld [vmem:[#allocation3 + $0x340] sm:$0xff]
          %v3362 = vld [vmem:[#allocation3 + $0x348] sm:$0xff]
          %v3363 = vld [vmem:[#allocation3 + $0x350] sm:$0xff]
          %v3364 = vld [vmem:[#allocation3 + $0x358] sm:$0xff]
          %v3365 = vld [vmem:[#allocation3 + $0x360] sm:$0xff]
          %v3366 = vld [vmem:[#allocation3 + $0x368] sm:$0xff]
          %v3367 = vld [vmem:[#allocation3 + $0x370] sm:$0xff]
          %v3368 = vld [vmem:[#allocation3 + $0x378] sm:$0xff]
          %v3369 = vld [vmem:[#allocation3 + $0x380] sm:$0xff]
          %v3370 = vld [vmem:[#allocation3 + $0x388] sm:$0xff]
          %v3371 = vld [vmem:[#allocation3 + $0x390] sm:$0xff]
          %v3372 = vld [vmem:[#allocation3 + $0x398] sm:$0xff]
          %v3373 = vld [vmem:[#allocation3 + $0x3a0] sm:$0xff]
          %v3374 = vld [vmem:[#allocation3 + $0x3a8] sm:$0xff]
          %v3375 = vld [vmem:[#allocation3 + $0x3b0] sm:$0xff]
          %v3376 = vld [vmem:[#allocation3 + $0x3b8] sm:$0xff]
          %v3377 = vld [vmem:[#allocation3 + $0x3c0] sm:$0xff]
          %v3378 = vld [vmem:[#allocation3 + $0x3c8] sm:$0xff]
          %v3379 = vld [vmem:[#allocation3 + $0x3d0] sm:$0xff]
          %v3380 = vld [vmem:[#allocation3 + $0x3d8] sm:$0xff]
          %v3381 = vld [vmem:[#allocation3 + $0x3e0] sm:$0xff]
          %v3382 = vld [vmem:[#allocation3 + $0x3e8] sm:$0xff]
          %v3383 = vld [vmem:[#allocation3 + $0x3f0] sm:$0xff]
          %v3384 = vld [vmem:[#allocation3 + $0x3f8] sm:$0xff]
          %v3385 = vld [vmem:[#allocation3 + $0x400] sm:$0xff]
          %v3386 = vld [vmem:[#allocation3 + $0x408] sm:$0xff]
          %v3387 = vld [vmem:[#allocation3 + $0x410] sm:$0xff]
          %v3388 = vld [vmem:[#allocation3 + $0x418] sm:$0xff]
          %v3389 = vld [vmem:[#allocation3 + $0x420] sm:$0xff]
          %v3390 = vld [vmem:[#allocation3 + $0x428] sm:$0xff]
          %v3391 = vld [vmem:[#allocation3 + $0x430] sm:$0xff]
          %v3392 = vld [vmem:[#allocation3 + $0x438] sm:$0xff]
          %v3393 = vld [vmem:[#allocation3 + $0x440] sm:$0xff]
          %v3394 = vld [vmem:[#allocation3 + $0x448] sm:$0xff]
          %v3395 = vld [vmem:[#allocation3 + $0x450] sm:$0xff]
          %v3396 = vld [vmem:[#allocation3 + $0x458] sm:$0xff]
          %v3397 = vld [vmem:[#allocation3 + $0x460] sm:$0xff]
          %v3398 = vld [vmem:[#allocation3 + $0x468] sm:$0xff]
          %v3399 = vld [vmem:[#allocation3 + $0x470] sm:$0xff]
          %v3400 = vld [vmem:[#allocation3 + $0x478] sm:$0xff]
          %v3401 = vld [vmem:[#allocation3 + $0x480] sm:$0xff]
          %v3402 = vld [vmem:[#allocation3 + $0x488] sm:$0xff]
          %v3403 = vld [vmem:[#allocation3 + $0x490] sm:$0xff]
          %v3404 = vld [vmem:[#allocation3 + $0x498] sm:$0xff]
          %v3405 = vld [vmem:[#allocation3 + $0x4a0] sm:$0xff]
          %v3406 = vld [vmem:[#allocation3 + $0x4a8] sm:$0xff]
          %v3407 = vld [vmem:[#allocation3 + $0x4b0] sm:$0xff]
          %v3408 = vld [vmem:[#allocation3 + $0x4b8] sm:$0xff]
          %v3409 = vld [vmem:[#allocation3 + $0x4c0] sm:$0xff]
          %v3410 = vld [vmem:[#allocation3 + $0x4c8] sm:$0xff]
          %v3411 = vld [vmem:[#allocation3 + $0x4d0] sm:$0xff]
          %v3412 = vld [vmem:[#allocation3 + $0x4d8] sm:$0xff]
          %v3413 = vld [vmem:[#allocation3 + $0x4e0] sm:$0xff]
          %v3414 = vld [vmem:[#allocation3 + $0x4e8] sm:$0xff]
          %v3415 = vld [vmem:[#allocation3 + $0x4f0] sm:$0xff]
          %v3416 = vld [vmem:[#allocation3 + $0x4f8] sm:$0xff]
          %v3417 = vld [vmem:[#allocation3 + $0x500] sm:$0xff]
          %v3418 = vld [vmem:[#allocation3 + $0x508] sm:$0xff]
          %v3419 = vld [vmem:[#allocation3 + $0x510] sm:$0xff]
          %v3420 = vld [vmem:[#allocation3 + $0x518] sm:$0xff]
          %v3421 = vld [vmem:[#allocation3 + $0x520] sm:$0xff]
          %v3422 = vld [vmem:[#allocation3 + $0x528] sm:$0xff]
          %v3423 = vld [vmem:[#allocation3 + $0x530] sm:$0xff]
          %v3424 = vld [vmem:[#allocation3 + $0x538] sm:$0xff]
          %v3425 = vld [vmem:[#allocation3 + $0x540] sm:$0xff]
          %v3426 = vld [vmem:[#allocation3 + $0x548] sm:$0xff]
          %v3427 = vld [vmem:[#allocation3 + $0x550] sm:$0xff]
          %v3428 = vld [vmem:[#allocation3 + $0x558] sm:$0xff]
          %v3429 = vld [vmem:[#allocation3 + $0x560] sm:$0xff]
          %v3430 = vld [vmem:[#allocation3 + $0x568] sm:$0xff]
          %v3431 = vld [vmem:[#allocation3 + $0x570] sm:$0xff]
          %v3432 = vld [vmem:[#allocation3 + $0x578] sm:$0xff]
          %v3433 = vld [vmem:[#allocation3 + $0x580] sm:$0xff]
          %v3434 = vld [vmem:[#allocation3 + $0x588] sm:$0xff]
          %v3435 = vld [vmem:[#allocation3 + $0x590] sm:$0xff]
          %v3436 = vld [vmem:[#allocation3 + $0x598] sm:$0xff]
          %v3437 = vld [vmem:[#allocation3 + $0x5a0] sm:$0xff]
          %v3438 = vld [vmem:[#allocation3 + $0x5a8] sm:$0xff]
          %v3439 = vld [vmem:[#allocation3 + $0x5b0] sm:$0xff]
          %v3440 = vld [vmem:[#allocation3 + $0x5b8] sm:$0xff]
          %v3441 = vld [vmem:[#allocation3 + $0x5c0] sm:$0xff]
          %v3442 = vld [vmem:[#allocation3 + $0x5c8] sm:$0xff]
          %v3443 = vld [vmem:[#allocation3 + $0x5d0] sm:$0xff]
          %v3444 = vld [vmem:[#allocation3 + $0x5d8] sm:$0xff]
          %v3445 = vld [vmem:[#allocation3 + $0x5e0] sm:$0xff]
          %v3446 = vld [vmem:[#allocation3 + $0x5e8] sm:$0xff]
          %v3447 = vld [vmem:[#allocation3 + $0x5f0] sm:$0xff]
          %v3448 = vld [vmem:[#allocation3 + $0x5f8] sm:$0xff]
          %v3449 = vld [vmem:[#allocation3 + $0x600] sm:$0xff]
          %v3450 = vld [vmem:[#allocation3 + $0x608] sm:$0xff]
          %v3451 = vld [vmem:[#allocation3 + $0x610] sm:$0xff]
          %v3452 = vld [vmem:[#allocation3 + $0x618] sm:$0xff]
          %v3453 = vld [vmem:[#allocation3 + $0x620] sm:$0xff]
          %v3454 = vld [vmem:[#allocation3 + $0x628] sm:$0xff]
          %v3455 = vld [vmem:[#allocation3 + $0x630] sm:$0xff]
          %v3456 = vld [vmem:[#allocation3 + $0x638] sm:$0xff]
          %v3457 = vld [vmem:[#allocation3 + $0x640] sm:$0xff]
          %v3458 = vld [vmem:[#allocation3 + $0x648] sm:$0xff]
          %v3459 = vld [vmem:[#allocation3 + $0x650] sm:$0xff]
          %v3460 = vld [vmem:[#allocation3 + $0x658] sm:$0xff]
          %v3461 = vld [vmem:[#allocation3 + $0x660] sm:$0xff]
          %v3462 = vld [vmem:[#allocation3 + $0x668] sm:$0xff]
          %v3463 = vld [vmem:[#allocation3 + $0x670] sm:$0xff]
          %v3464 = vld [vmem:[#allocation3 + $0x678] sm:$0xff]
          %v3465 = vld [vmem:[#allocation3 + $0x680] sm:$0xff]
          %v3466 = vld [vmem:[#allocation3 + $0x688] sm:$0xff]
          %v3467 = vld [vmem:[#allocation3 + $0x690] sm:$0xff]
          %v3468 = vld [vmem:[#allocation3 + $0x698] sm:$0xff]
          %v3469 = vld [vmem:[#allocation3 + $0x6a0] sm:$0xff]
          %v3470 = vld [vmem:[#allocation3 + $0x6a8] sm:$0xff]
          %v3471 = vld [vmem:[#allocation3 + $0x6b0] sm:$0xff]
          %v3472 = vld [vmem:[#allocation3 + $0x6b8] sm:$0xff]
          %v3473 = vld [vmem:[#allocation3 + $0x6c0] sm:$0xff]
          %v3474 = vld [vmem:[#allocation3 + $0x6c8] sm:$0xff]
          %v3475 = vld [vmem:[#allocation3 + $0x6d0] sm:$0xff]
          %v3476 = vld [vmem:[#allocation3 + $0x6d8] sm:$0xff]
          %v3477 = vld [vmem:[#allocation3 + $0x6e0] sm:$0xff]
          %v3478 = vld [vmem:[#allocation3 + $0x6e8] sm:$0xff]
          %v3479 = vld [vmem:[#allocation3 + $0x6f0] sm:$0xff]
          %v3480 = vld [vmem:[#allocation3 + $0x6f8] sm:$0xff]
          %v3481 = vld [vmem:[#allocation3 + $0x700] sm:$0xff]
          %v3482 = vld [vmem:[#allocation3 + $0x708] sm:$0xff]
          %v3483 = vld [vmem:[#allocation3 + $0x710] sm:$0xff]
          %v3484 = vld [vmem:[#allocation3 + $0x718] sm:$0xff]
          %v3485 = vld [vmem:[#allocation3 + $0x720] sm:$0xff]
          %v3486 = vld [vmem:[#allocation3 + $0x728] sm:$0xff]
          %v3487 = vld [vmem:[#allocation3 + $0x730] sm:$0xff]
          %v3488 = vld [vmem:[#allocation3 + $0x738] sm:$0xff]
          %v3489 = vld [vmem:[#allocation3 + $0x740] sm:$0xff]
          %v3490 = vld [vmem:[#allocation3 + $0x748] sm:$0xff]
          %v3491 = vld [vmem:[#allocation3 + $0x750] sm:$0xff]
          %v3492 = vld [vmem:[#allocation3 + $0x758] sm:$0xff]
          %v3493 = vld [vmem:[#allocation3 + $0x760] sm:$0xff]
          %v3494 = vld [vmem:[#allocation3 + $0x768] sm:$0xff]
          %v3495 = vld [vmem:[#allocation3 + $0x770] sm:$0xff]
          %v3496 = vld [vmem:[#allocation3 + $0x778] sm:$0xff]
          %v3497 = vld [vmem:[#allocation3 + $0x780] sm:$0xff]
          %v3498 = vld [vmem:[#allocation3 + $0x788] sm:$0xff]
          %v3499 = vld [vmem:[#allocation3 + $0x790] sm:$0xff]
          %v3500 = vld [vmem:[#allocation3 + $0x798] sm:$0xff]
          %v3501 = vld [vmem:[#allocation3 + $0x7a0] sm:$0xff]
          %v3502 = vld [vmem:[#allocation3 + $0x7a8] sm:$0xff]
          %v3503 = vld [vmem:[#allocation3 + $0x7b0] sm:$0xff]
          %v3504 = vld [vmem:[#allocation3 + $0x7b8] sm:$0xff]
          %v3505 = vld [vmem:[#allocation3 + $0x7c0] sm:$0xff]
          %v3506 = vld [vmem:[#allocation3 + $0x7c8] sm:$0xff]
          %v3507 = vld [vmem:[#allocation3 + $0x7d0] sm:$0xff]
          %v3508 = vld [vmem:[#allocation3 + $0x7d8] sm:$0xff]
          %v3509 = vld [vmem:[#allocation3 + $0x7e0] sm:$0xff]
          %v3510 = vld [vmem:[#allocation3 + $0x7e8] sm:$0xff]
          %v3511 = vld [vmem:[#allocation3 + $0x7f0] sm:$0xff]
          %v3512 = vld [vmem:[#allocation3 + $0x7f8] sm:$0xff]
          %v3513 = vld [vmem:[#allocation3 + $0x800] sm:$0xff]
          %v3514 = vld [vmem:[#allocation3 + $0x808] sm:$0xff]
          %v3515 = vld [vmem:[#allocation3 + $0x810] sm:$0xff]
          %v3516 = vld [vmem:[#allocation3 + $0x818] sm:$0xff]
          %v3517 = vld [vmem:[#allocation3 + $0x820] sm:$0xff]
          %v3518 = vld [vmem:[#allocation3 + $0x828] sm:$0xff]
          %v3519 = vld [vmem:[#allocation3 + $0x830] sm:$0xff]
          %v3520 = vld [vmem:[#allocation3 + $0x838] sm:$0xff]
          %v3521 = vld [vmem:[#allocation3 + $0x840] sm:$0xff]
          %v3522 = vld [vmem:[#allocation3 + $0x848] sm:$0xff]
          %v3523 = vld [vmem:[#allocation3 + $0x850] sm:$0xff]
          %v3524 = vld [vmem:[#allocation3 + $0x858] sm:$0xff]
          %v3525 = vld [vmem:[#allocation3 + $0x860] sm:$0xff]
          %v3526 = vld [vmem:[#allocation3 + $0x868] sm:$0xff]
          %v3527 = vld [vmem:[#allocation3 + $0x870] sm:$0xff]
          %v3528 = vld [vmem:[#allocation3 + $0x878] sm:$0xff]
          %v3529 = vld [vmem:[#allocation3 + $0x880] sm:$0xff]
          %v3530 = vld [vmem:[#allocation3 + $0x888] sm:$0xff]
          %v3531 = vld [vmem:[#allocation3 + $0x890] sm:$0xff]
          %v3532 = vld [vmem:[#allocation3 + $0x898] sm:$0xff]
          %v3533 = vld [vmem:[#allocation3 + $0x8a0] sm:$0xff]
          %v3534 = vld [vmem:[#allocation3 + $0x8a8] sm:$0xff]
          %v3535 = vld [vmem:[#allocation3 + $0x8b0] sm:$0xff]
          %v3536 = vld [vmem:[#allocation3 + $0x8b8] sm:$0xff]
          %v3537 = vld [vmem:[#allocation3 + $0x8c0] sm:$0xff]
          %v3538 = vld [vmem:[#allocation3 + $0x8c8] sm:$0xff]
          %v3539 = vld [vmem:[#allocation3 + $0x8d0] sm:$0xff]
          %v3540 = vld [vmem:[#allocation3 + $0x8d8] sm:$0xff]
          %v3541 = vld [vmem:[#allocation3 + $0x8e0] sm:$0xff]
          %v3542 = vld [vmem:[#allocation3 + $0x8e8] sm:$0xff]
          %v3543 = vld [vmem:[#allocation3 + $0x8f0] sm:$0xff]
          %v3544 = vld [vmem:[#allocation3 + $0x8f8] sm:$0xff]
          %v3545 = vld [vmem:[#allocation3 + $0x900] sm:$0xff]
          %v3546 = vld [vmem:[#allocation3 + $0x908] sm:$0xff]
          %v3547 = vld [vmem:[#allocation3 + $0x910] sm:$0xff]
          %v3548 = vld [vmem:[#allocation3 + $0x918] sm:$0xff]
          %v3549 = vld [vmem:[#allocation3 + $0x920] sm:$0xff]
          %v3550 = vld [vmem:[#allocation3 + $0x928] sm:$0xff]
          %v3551 = vld [vmem:[#allocation3 + $0x930] sm:$0xff]
          %v3552 = vld [vmem:[#allocation3 + $0x938] sm:$0xff]
          %v3553 = vld [vmem:[#allocation3 + $0x940] sm:$0xff]
          %v3554 = vld [vmem:[#allocation3 + $0x948] sm:$0xff]
          %v3555 = vld [vmem:[#allocation3 + $0x950] sm:$0xff]
          %v3556 = vld [vmem:[#allocation3 + $0x958] sm:$0xff]
          %v3557 = vld [vmem:[#allocation3 + $0x960] sm:$0xff]
          %v3558 = vld [vmem:[#allocation3 + $0x968] sm:$0xff]
          %v3559 = vld [vmem:[#allocation3 + $0x970] sm:$0xff]
          %v3560 = vld [vmem:[#allocation3 + $0x978] sm:$0xff]
          %v3561 = vld [vmem:[#allocation3 + $0x980] sm:$0xff]
          %v3562 = vld [vmem:[#allocation3 + $0x988] sm:$0xff]
          %v3563 = vld [vmem:[#allocation3 + $0x990] sm:$0xff]
          %v3564 = vld [vmem:[#allocation3 + $0x998] sm:$0xff]
          %v3565 = vld [vmem:[#allocation3 + $0x9a0] sm:$0xff]
          %v3566 = vld [vmem:[#allocation3 + $0x9a8] sm:$0xff]
          %v3567 = vld [vmem:[#allocation3 + $0x9b0] sm:$0xff]
          %v3568 = vld [vmem:[#allocation3 + $0x9b8] sm:$0xff]
          %v3569 = vld [vmem:[#allocation3 + $0x9c0] sm:$0xff]
          %v3570 = vld [vmem:[#allocation3 + $0x9c8] sm:$0xff]
          %v3571 = vld [vmem:[#allocation3 + $0x9d0] sm:$0xff]
          %v3572 = vld [vmem:[#allocation3 + $0x9d8] sm:$0xff]
          %v3573 = vld [vmem:[#allocation3 + $0x9e0] sm:$0xff]
          %v3574 = vld [vmem:[#allocation3 + $0x9e8] sm:$0xff]
          %v3575 = vld [vmem:[#allocation3 + $0x9f0] sm:$0xff]
          %v3576 = vld [vmem:[#allocation3 + $0x9f8] sm:$0xff]
          %v3577 = vld [vmem:[#allocation3 + $0xa00] sm:$0xff]
          %v3578 = vld [vmem:[#allocation3 + $0xa08] sm:$0xff]
          %v3579 = vld [vmem:[#allocation3 + $0xa10] sm:$0xff]
          %v3580 = vld [vmem:[#allocation3 + $0xa18] sm:$0xff]
          %v3581 = vld [vmem:[#allocation3 + $0xa20] sm:$0xff]
          %v3582 = vld [vmem:[#allocation3 + $0xa28] sm:$0xff]
          %v3583 = vld [vmem:[#allocation3 + $0xa30] sm:$0xff]
          %v3584 = vld [vmem:[#allocation3 + $0xa38] sm:$0xff]
          %v3585 = vld [vmem:[#allocation3 + $0xa40] sm:$0xff]
          %v3586 = vld [vmem:[#allocation3 + $0xa48] sm:$0xff]
          %v3587 = vld [vmem:[#allocation3 + $0xa50] sm:$0xff]
          %v3588 = vld [vmem:[#allocation3 + $0xa58] sm:$0xff]
          %v3589 = vld [vmem:[#allocation3 + $0xa60] sm:$0xff]
          %v3590 = vld [vmem:[#allocation3 + $0xa68] sm:$0xff]
          %v3591 = vld [vmem:[#allocation3 + $0xa70] sm:$0xff]
          %v3592 = vld [vmem:[#allocation3 + $0xa78] sm:$0xff]
          %v3593 = vld [vmem:[#allocation3 + $0xa80] sm:$0xff]
          %v3594 = vld [vmem:[#allocation3 + $0xa88] sm:$0xff]
          %v3595 = vld [vmem:[#allocation3 + $0xa90] sm:$0xff]
          %v3596 = vld [vmem:[#allocation3 + $0xa98] sm:$0xff]
          %v3597 = vld [vmem:[#allocation3 + $0xaa0] sm:$0xff]
          %v3598 = vld [vmem:[#allocation3 + $0xaa8] sm:$0xff]
          %v3599 = vld [vmem:[#allocation3 + $0xab0] sm:$0xff]
          %v3600 = vld [vmem:[#allocation3 + $0xab8] sm:$0xff]
          %v3601 = vld [vmem:[#allocation3 + $0xac0] sm:$0xff]
          %v3602 = vld [vmem:[#allocation3 + $0xac8] sm:$0xff]
          %v3603 = vld [vmem:[#allocation3 + $0xad0] sm:$0xff]
          %v3604 = vld [vmem:[#allocation3 + $0xad8] sm:$0xff]
          %v3605 = vld [vmem:[#allocation3 + $0xae0] sm:$0xff]
          %v3606 = vld [vmem:[#allocation3 + $0xae8] sm:$0xff]
          %v3607 = vld [vmem:[#allocation3 + $0xaf0] sm:$0xff]
          %v3608 = vld [vmem:[#allocation3 + $0xaf8] sm:$0xff]
          %v3609 = vld [vmem:[#allocation3 + $0xb00] sm:$0xff]
          %v3610 = vld [vmem:[#allocation3 + $0xb08] sm:$0xff]
          %v3611 = vld [vmem:[#allocation3 + $0xb10] sm:$0xff]
          %v3612 = vld [vmem:[#allocation3 + $0xb18] sm:$0xff]
          %v3613 = vld [vmem:[#allocation3 + $0xb20] sm:$0xff]
          %v3614 = vld [vmem:[#allocation3 + $0xb28] sm:$0xff]
          %v3615 = vld [vmem:[#allocation3 + $0xb30] sm:$0xff]
          %v3616 = vld [vmem:[#allocation3 + $0xb38] sm:$0xff]
          %v3617 = vld [vmem:[#allocation3 + $0xb40] sm:$0xff]
          %v3618 = vld [vmem:[#allocation3 + $0xb48] sm:$0xff]
          %v3619 = vld [vmem:[#allocation3 + $0xb50] sm:$0xff]
          %v3620 = vld [vmem:[#allocation3 + $0xb58] sm:$0xff]
          %v3621 = vld [vmem:[#allocation3 + $0xb60] sm:$0xff]
          %v3622 = vld [vmem:[#allocation3 + $0xb68] sm:$0xff]
          %v3623 = vld [vmem:[#allocation3 + $0xb70] sm:$0xff]
          %v3624 = vld [vmem:[#allocation3 + $0xb78] sm:$0xff]
          %v3625 = vld [vmem:[#allocation3 + $0xb80] sm:$0xff]
          %v3626 = vld [vmem:[#allocation3 + $0xb88] sm:$0xff]
          %v3627 = vld [vmem:[#allocation3 + $0xb90] sm:$0xff]
          %v3628 = vld [vmem:[#allocation3 + $0xb98] sm:$0xff]
          %v3629 = vld [vmem:[#allocation3 + $0xba0] sm:$0xff]
          %v3630 = vld [vmem:[#allocation3 + $0xba8] sm:$0xff]
          %v3631 = vld [vmem:[#allocation3 + $0xbb0] sm:$0xff]
          %v3632 = vld [vmem:[#allocation3 + $0xbb8] sm:$0xff]
          %v3633 = vld [vmem:[#allocation3 + $0xbc0] sm:$0xff]
          %v3634 = vld [vmem:[#allocation3 + $0xbc8] sm:$0xff]
          %v3635 = vld [vmem:[#allocation3 + $0xbd0] sm:$0xff]
          %v3636 = vld [vmem:[#allocation3 + $0xbd8] sm:$0xff]
          %v3637 = vld [vmem:[#allocation3 + $0xbe0] sm:$0xff]
          %v3638 = vld [vmem:[#allocation3 + $0xbe8] sm:$0xff]
          %v3639 = vld [vmem:[#allocation3 + $0xbf0] sm:$0xff]
          %v3640 = vld [vmem:[#allocation3 + $0xbf8] sm:$0xff]
          %v3641 = vld [vmem:[#allocation3 + $0xc00] sm:$0xff]
          %v3642 = vld [vmem:[#allocation3 + $0xc08] sm:$0xff]
          %v3643 = vld [vmem:[#allocation3 + $0xc10] sm:$0xff]
          %v3644 = vld [vmem:[#allocation3 + $0xc18] sm:$0xff]
          %v3645 = vld [vmem:[#allocation3 + $0xc20] sm:$0xff]
          %v3646 = vld [vmem:[#allocation3 + $0xc28] sm:$0xff]
          %v3647 = vld [vmem:[#allocation3 + $0xc30] sm:$0xff]
          %v3648 = vld [vmem:[#allocation3 + $0xc38] sm:$0xff]
          %v3649 = vld [vmem:[#allocation3 + $0xc40] sm:$0xff]
          %v3650 = vld [vmem:[#allocation3 + $0xc48] sm:$0xff]
          %v3651 = vld [vmem:[#allocation3 + $0xc50] sm:$0xff]
          %v3652 = vld [vmem:[#allocation3 + $0xc58] sm:$0xff]
          %v3653 = vld [vmem:[#allocation3 + $0xc60] sm:$0xff]
          %v3654 = vld [vmem:[#allocation3 + $0xc68] sm:$0xff]
          %v3655 = vld [vmem:[#allocation3 + $0xc70] sm:$0xff]
          %v3656 = vld [vmem:[#allocation3 + $0xc78] sm:$0xff]
          %v3657 = vld [vmem:[#allocation3 + $0xc80] sm:$0xff]
          %v3658 = vld [vmem:[#allocation3 + $0xc88] sm:$0xff]
          %v3659 = vld [vmem:[#allocation3 + $0xc90] sm:$0xff]
          %v3660 = vld [vmem:[#allocation3 + $0xc98] sm:$0xff]
          %v3661 = vld [vmem:[#allocation3 + $0xca0] sm:$0xff]
          %v3662 = vld [vmem:[#allocation3 + $0xca8] sm:$0xff]
          %v3663 = vld [vmem:[#allocation3 + $0xcb0] sm:$0xff]
          %v3664 = vld [vmem:[#allocation3 + $0xcb8] sm:$0xff]
          %v3665 = vld [vmem:[#allocation3 + $0xcc0] sm:$0xff]
          %v3666 = vld [vmem:[#allocation3 + $0xcc8] sm:$0xff]
          %v3667 = vld [vmem:[#allocation3 + $0xcd0] sm:$0xff]
          %v3668 = vld [vmem:[#allocation3 + $0xcd8] sm:$0xff]
          %v3669 = vld [vmem:[#allocation3 + $0xce0] sm:$0xff]
          %v3670 = vld [vmem:[#allocation3 + $0xce8] sm:$0xff]
          %v3671 = vld [vmem:[#allocation3 + $0xcf0] sm:$0xff]
          %v3672 = vld [vmem:[#allocation3 + $0xcf8] sm:$0xff]
          %v3673 = vld [vmem:[#allocation3 + $0xd00] sm:$0xff]
          %v3674 = vld [vmem:[#allocation3 + $0xd08] sm:$0xff]
          %v3675 = vld [vmem:[#allocation3 + $0xd10] sm:$0xff]
          %v3676 = vld [vmem:[#allocation3 + $0xd18] sm:$0xff]
          %v3677 = vld [vmem:[#allocation3 + $0xd20] sm:$0xff]
          %v3678 = vld [vmem:[#allocation3 + $0xd28] sm:$0xff]
          %v3679 = vld [vmem:[#allocation3 + $0xd30] sm:$0xff]
          %v3680 = vld [vmem:[#allocation3 + $0xd38] sm:$0xff]
          %v3681 = vld [vmem:[#allocation3 + $0xd40] sm:$0xff]
          %v3682 = vld [vmem:[#allocation3 + $0xd48] sm:$0xff]
          %v3683 = vld [vmem:[#allocation3 + $0xd50] sm:$0xff]
          %v3684 = vld [vmem:[#allocation3 + $0xd58] sm:$0xff]
          %v3685 = vld [vmem:[#allocation3 + $0xd60] sm:$0xff]
          %v3686 = vld [vmem:[#allocation3 + $0xd68] sm:$0xff]
          %v3687 = vld [vmem:[#allocation3 + $0xd70] sm:$0xff]
          %v3688 = vld [vmem:[#allocation3 + $0xd78] sm:$0xff]
          %v3689 = vld [vmem:[#allocation3 + $0xd80] sm:$0xff]
          %v3690 = vld [vmem:[#allocation3 + $0xd88] sm:$0xff]
          %v3691 = vld [vmem:[#allocation3 + $0xd90] sm:$0xff]
          %v3692 = vld [vmem:[#allocation3 + $0xd98] sm:$0xff]
          %v3693 = vld [vmem:[#allocation3 + $0xda0] sm:$0xff]
          %v3694 = vld [vmem:[#allocation3 + $0xda8] sm:$0xff]
          %v3695 = vld [vmem:[#allocation3 + $0xdb0] sm:$0xff]
          %v3696 = vld [vmem:[#allocation3 + $0xdb8] sm:$0xff]
          %v3697 = vld [vmem:[#allocation3 + $0xdc0] sm:$0xff]
          %v3698 = vld [vmem:[#allocation3 + $0xdc8] sm:$0xff]
          %v3699 = vld [vmem:[#allocation3 + $0xdd0] sm:$0xff]
          %v3700 = vld [vmem:[#allocation3 + $0xdd8] sm:$0xff]
          %v3701 = vld [vmem:[#allocation3 + $0xde0] sm:$0xff]
          %v3702 = vld [vmem:[#allocation3 + $0xde8] sm:$0xff]
          %v3703 = vld [vmem:[#allocation3 + $0xdf0] sm:$0xff]
          %v3704 = vld [vmem:[#allocation3 + $0xdf8] sm:$0xff]
          %v3705 = vld [vmem:[#allocation3 + $0xe00] sm:$0xff]
          %v3706 = vld [vmem:[#allocation3 + $0xe08] sm:$0xff]
          %v3707 = vld [vmem:[#allocation3 + $0xe10] sm:$0xff]
          %v3708 = vld [vmem:[#allocation3 + $0xe18] sm:$0xff]
          %v3709 = vld [vmem:[#allocation3 + $0xe20] sm:$0xff]
          %v3710 = vld [vmem:[#allocation3 + $0xe28] sm:$0xff]
          %v3711 = vld [vmem:[#allocation3 + $0xe30] sm:$0xff]
          %v3712 = vld [vmem:[#allocation3 + $0xe38] sm:$0xff]
          %v3713 = vld [vmem:[#allocation3 + $0xe40] sm:$0xff]
          %v3714 = vld [vmem:[#allocation3 + $0xe48] sm:$0xff]
          %v3715 = vld [vmem:[#allocation3 + $0xe50] sm:$0xff]
          %v3716 = vld [vmem:[#allocation3 + $0xe58] sm:$0xff]
          %v3717 = vld [vmem:[#allocation3 + $0xe60] sm:$0xff]
          %v3718 = vld [vmem:[#allocation3 + $0xe68] sm:$0xff]
          %v3719 = vld [vmem:[#allocation3 + $0xe70] sm:$0xff]
          %v3720 = vld [vmem:[#allocation3 + $0xe78] sm:$0xff]
          %v3721 = vld [vmem:[#allocation3 + $0xe80] sm:$0xff]
          %v3722 = vld [vmem:[#allocation3 + $0xe88] sm:$0xff]
          %v3723 = vld [vmem:[#allocation3 + $0xe90] sm:$0xff]
          %v3724 = vld [vmem:[#allocation3 + $0xe98] sm:$0xff]
          %v3725 = vld [vmem:[#allocation3 + $0xea0] sm:$0xff]
          %v3726 = vld [vmem:[#allocation3 + $0xea8] sm:$0xff]
          %v3727 = vld [vmem:[#allocation3 + $0xeb0] sm:$0xff]
          %v3728 = vld [vmem:[#allocation3 + $0xeb8] sm:$0xff]
          %v3729 = vld [vmem:[#allocation3 + $0xec0] sm:$0xff]
          %v3730 = vld [vmem:[#allocation3 + $0xec8] sm:$0xff]
          %v3731 = vld [vmem:[#allocation3 + $0xed0] sm:$0xff]
          %v3732 = vld [vmem:[#allocation3 + $0xed8] sm:$0xff]
          %v3733 = vld [vmem:[#allocation3 + $0xee0] sm:$0xff]
          %v3734 = vld [vmem:[#allocation3 + $0xee8] sm:$0xff]
          %v3735 = vld [vmem:[#allocation3 + $0xef0] sm:$0xff]
          %v3736 = vld [vmem:[#allocation3 + $0xef8] sm:$0xff]
          %v3737 = vld [vmem:[#allocation3 + $0xf00] sm:$0xff]
          %v3738 = vld [vmem:[#allocation3 + $0xf08] sm:$0xff]
          %v3739 = vld [vmem:[#allocation3 + $0xf10] sm:$0xff]
          %v3740 = vld [vmem:[#allocation3 + $0xf18] sm:$0xff]
          %v3741 = vld [vmem:[#allocation3 + $0xf20] sm:$0xff]
          %v3742 = vld [vmem:[#allocation3 + $0xf28] sm:$0xff]
          %v3743 = vld [vmem:[#allocation3 + $0xf30] sm:$0xff]
          %v3744 = vld [vmem:[#allocation3 + $0xf38] sm:$0xff]
          %v3745 = vld [vmem:[#allocation3 + $0xf40] sm:$0xff]
          %v3746 = vld [vmem:[#allocation3 + $0xf48] sm:$0xff]
          %v3747 = vld [vmem:[#allocation3 + $0xf50] sm:$0xff]
          %v3748 = vld [vmem:[#allocation3 + $0xf58] sm:$0xff]
          %v3749 = vld [vmem:[#allocation3 + $0xf60] sm:$0xff]
          %v3750 = vld [vmem:[#allocation3 + $0xf68] sm:$0xff]
          %v3751 = vld [vmem:[#allocation3 + $0xf70] sm:$0xff]
          %v3752 = vld [vmem:[#allocation3 + $0xf78] sm:$0xff]
          %v3753 = vld [vmem:[#allocation3 + $0xf80] sm:$0xff]
          %v3754 = vld [vmem:[#allocation3 + $0xf88] sm:$0xff]
          %v3755 = vld [vmem:[#allocation3 + $0xf90] sm:$0xff]
          %v3756 = vld [vmem:[#allocation3 + $0xf98] sm:$0xff]
          %v3757 = vld [vmem:[#allocation3 + $0xfa0] sm:$0xff]
          %v3758 = vld [vmem:[#allocation3 + $0xfa8] sm:$0xff]
          %v3759 = vld [vmem:[#allocation3 + $0xfb0] sm:$0xff]
          %v3760 = vld [vmem:[#allocation3 + $0xfb8] sm:$0xff]
          %v3761 = vld [vmem:[#allocation3 + $0xfc0] sm:$0xff]
          %v3762 = vld [vmem:[#allocation3 + $0xfc8] sm:$0xff]
          %v3763 = vld [vmem:[#allocation3 + $0xfd0] sm:$0xff]
          %v3764 = vld [vmem:[#allocation3 + $0xfd8] sm:$0xff]
          %v3765 = vld [vmem:[#allocation3 + $0xfe0] sm:$0xff]
          %v3766 = vld [vmem:[#allocation3 + $0xfe8] sm:$0xff]
          %v3767 = vld [vmem:[#allocation3 + $0xff0] sm:$0xff]
          %v3768 = vld [vmem:[#allocation3 + $0xff8] sm:$0xff]
          %v3769 = vld [vmem:[#allocation17] sm:$0xf]
          %v3771 = vperm.slane %v3256, 0
          %v3772 = vperm.slane %v3256, 1
          %v3773 = vperm.slane %v3256, 2
          %v3774 = vperm.slane %v3256, 3
          %v3775 = vperm.slane %v3256, 4
          %v3776 = vperm.slane %v3256, 5
          %v3777 = vperm.slane %v3256, 6
          %v3778 = vperm.slane %v3256, 7
          %v3788 = vperm.slane %v3769, 0
          %v3789 = vperm.slane %v3769, 1
          %v3790 = vperm.slane %v3769, 2
          %v3791 = vperm.slane %v3769, 3
          %3796 = vmatpush.msra.mxu0 %v3317
          %3797 = vmatpush.msra.mxu0 %v3313
          %3798 = vmatpush.msra.mxu0 %v3309
          %3799 = vmatpush.msra.mxu0 %v3305
          %3800 = vmatpush.msra.mxu0 %v3301
          %3801 = vmatpush.msra.mxu0 %v3297
          %3802 = vmatpush.msra.mxu0 %v3293
          %3803 = vmatpush.msra.mxu0 %v3289
          %3804 = vmatpush.msra.mxu0 %v3285
          %3805 = vmatpush.msra.mxu0 %v3281
          %3806 = vmatpush.msra.mxu0 %v3277
          %3807 = vmatpush.msra.mxu0 %v3273
          %3808 = vmatpush.msra.mxu0 %v3269
          %3809 = vmatpush.msra.mxu0 %v3265
          %3810 = vmatpush.msra.mxu0 %v3261
          %3811 = vmatpush.msra.mxu0 %v3257
          %3812 = vmatmul.f32.gmra.mxu0 %v3771
          %v3813 = vpop.f32.mrf.mxu0
          %v3814 = vadd.f32 %v3788, %v3813
          %3815 = vdwg.mxu0
          %3816 = vmatpush.msra.mxu0 %v3381
          %3817 = vmatpush.msra.mxu0 %v3377
          %3818 = vmatpush.msra.mxu0 %v3373
          %3819 = vmatpush.msra.mxu0 %v3369
          %3820 = vmatpush.msra.mxu0 %v3365
          %3821 = vmatpush.msra.mxu0 %v3361
          %3822 = vmatpush.msra.mxu0 %v3357
          %3823 = vmatpush.msra.mxu0 %v3353
          %3824 = vmatpush.msra.mxu0 %v3349
          %3825 = vmatpush.msra.mxu0 %v3345
          %3826 = vmatpush.msra.mxu0 %v3341
          %3827 = vmatpush.msra.mxu0 %v3337
          %3828 = vmatpush.msra.mxu0 %v3333
          %3829 = vmatpush.msra.mxu0 %v3329
          %3830 = vmatpush.msra.mxu0 %v3325
          %3831 = vmatpush.msra.mxu0 %v3321
          %3832 = vmatmul.f32.gmra.mxu0 %v3772
          %v3833 = vpop.f32.mrf.mxu0
          %v3834 = vadd.f32 %v3814, %v3833
          %3835 = vdwg.mxu0
          %3836 = vmatpush.msra.mxu0 %v3445
          %3837 = vmatpush.msra.mxu0 %v3441
          %3838 = vmatpush.msra.mxu0 %v3437
          %3839 = vmatpush.msra.mxu0 %v3433
          %3840 = vmatpush.msra.mxu0 %v3429
          %3841 = vmatpush.msra.mxu0 %v3425
          %3842 = vmatpush.msra.mxu0 %v3421
          %3843 = vmatpush.msra.mxu0 %v3417
          %3844 = vmatpush.msra.mxu0 %v3413
          %3845 = vmatpush.msra.mxu0 %v3409
          %3846 = vmatpush.msra.mxu0 %v3405
          %3847 = vmatpush.msra.mxu0 %v3401
          %3848 = vmatpush.msra.mxu0 %v3397
          %3849 = vmatpush.msra.mxu0 %v3393
          %3850 = vmatpush.msra.mxu0 %v3389
          %3851 = vmatpush.msra.mxu0 %v3385
          %3852 = vmatmul.f32.gmra.mxu0 %v3773
          %v3853 = vpop.f32.mrf.mxu0
          %v3854 = vadd.f32 %v3834, %v3853
          %3855 = vdwg.mxu0
          %3856 = vmatpush.msra.mxu0 %v3509
          %3857 = vmatpush.msra.mxu0 %v3505
          %3858 = vmatpush.msra.mxu0 %v3501
          %3859 = vmatpush.msra.mxu0 %v3497
          %3860 = vmatpush.msra.mxu0 %v3493
          %3861 = vmatpush.msra.mxu0 %v3489
          %3862 = vmatpush.msra.mxu0 %v3485
          %3863 = vmatpush.msra.mxu0 %v3481
          %3864 = vmatpush.msra.mxu0 %v3477
          %3865 = vmatpush.msra.mxu0 %v3473
          %3866 = vmatpush.msra.mxu0 %v3469
          %3867 = vmatpush.msra.mxu0 %v3465
          %3868 = vmatpush.msra.mxu0 %v3461
          %3869 = vmatpush.msra.mxu0 %v3457
          %3870 = vmatpush.msra.mxu0 %v3453
          %3871 = vmatpush.msra.mxu0 %v3449
          %3872 = vmatmul.f32.gmra.mxu0 %v3774
          %v3873 = vpop.f32.mrf.mxu0
          %v3874 = vadd.f32 %v3854, %v3873
          %3875 = vdwg.mxu0
          %3876 = vmatpush.msra.mxu0 %v3573
          %3877 = vmatpush.msra.mxu0 %v3569
          %3878 = vmatpush.msra.mxu0 %v3565
          %3879 = vmatpush.msra.mxu0 %v3561
          %3880 = vmatpush.msra.mxu0 %v3557
          %3881 = vmatpush.msra.mxu0 %v3553
          %3882 = vmatpush.msra.mxu0 %v3549
          %3883 = vmatpush.msra.mxu0 %v3545
          %3884 = vmatpush.msra.mxu0 %v3541
          %3885 = vmatpush.msra.mxu0 %v3537
          %3886 = vmatpush.msra.mxu0 %v3533
          %3887 = vmatpush.msra.mxu0 %v3529
          %3888 = vmatpush.msra.mxu0 %v3525
          %3889 = vmatpush.msra.mxu0 %v3521
          %3890 = vmatpush.msra.mxu0 %v3517
          %3891 = vmatpush.msra.mxu0 %v3513
          %3892 = vmatmul.f32.gmra.mxu0 %v3775
          %v3893 = vpop.f32.mrf.mxu0
          %v3894 = vadd.f32 %v3874, %v3893
          %3895 = vdwg.mxu0
          %3896 = vmatpush.msra.mxu0 %v3637
          %3897 = vmatpush.msra.mxu0 %v3633
          %3898 = vmatpush.msra.mxu0 %v3629
          %3899 = vmatpush.msra.mxu0 %v3625
          %3900 = vmatpush.msra.mxu0 %v3621
          %3901 = vmatpush.msra.mxu0 %v3617
          %3902 = vmatpush.msra.mxu0 %v3613
          %3903 = vmatpush.msra.mxu0 %v3609
          %3904 = vmatpush.msra.mxu0 %v3605
          %3905 = vmatpush.msra.mxu0 %v3601
          %3906 = vmatpush.msra.mxu0 %v3597
          %3907 = vmatpush.msra.mxu0 %v3593
          %3908 = vmatpush.msra.mxu0 %v3589
          %3909 = vmatpush.msra.mxu0 %v3585
          %3910 = vmatpush.msra.mxu0 %v3581
          %3911 = vmatpush.msra.mxu0 %v3577
          %3912 = vmatmul.f32.gmra.mxu0 %v3776
          %v3913 = vpop.f32.mrf.mxu0
          %v3914 = vadd.f32 %v3894, %v3913
          %3915 = vdwg.mxu0
          %3916 = vmatpush.msra.mxu0 %v3701
          %3917 = vmatpush.msra.mxu0 %v3697
          %3918 = vmatpush.msra.mxu0 %v3693
          %3919 = vmatpush.msra.mxu0 %v3689
          %3920 = vmatpush.msra.mxu0 %v3685
          %3921 = vmatpush.msra.mxu0 %v3681
          %3922 = vmatpush.msra.mxu0 %v3677
          %3923 = vmatpush.msra.mxu0 %v3673
          %3924 = vmatpush.msra.mxu0 %v3669
          %3925 = vmatpush.msra.mxu0 %v3665
          %3926 = vmatpush.msra.mxu0 %v3661
          %3927 = vmatpush.msra.mxu0 %v3657
          %3928 = vmatpush.msra.mxu0 %v3653
          %3929 = vmatpush.msra.mxu0 %v3649
          %3930 = vmatpush.msra.mxu0 %v3645
          %3931 = vmatpush.msra.mxu0 %v3641
          %3932 = vmatmul.f32.gmra.mxu0 %v3777
          %v3933 = vpop.f32.mrf.mxu0
          %v3934 = vadd.f32 %v3914, %v3933
          %3935 = vdwg.mxu0
          %3936 = vmatpush.msra.mxu0 %v3765
          %3937 = vmatpush.msra.mxu0 %v3761
          %3938 = vmatpush.msra.mxu0 %v3757
          %3939 = vmatpush.msra.mxu0 %v3753
          %3940 = vmatpush.msra.mxu0 %v3749
          %3941 = vmatpush.msra.mxu0 %v3745
          %3942 = vmatpush.msra.mxu0 %v3741
          %3943 = vmatpush.msra.mxu0 %v3737
          %3944 = vmatpush.msra.mxu0 %v3733
          %3945 = vmatpush.msra.mxu0 %v3729
          %3946 = vmatpush.msra.mxu0 %v3725
          %3947 = vmatpush.msra.mxu0 %v3721
          %3948 = vmatpush.msra.mxu0 %v3717
          %3949 = vmatpush.msra.mxu0 %v3713
          %3950 = vmatpush.msra.mxu0 %v3709
          %3951 = vmatpush.msra.mxu0 %v3705
          %3952 = vmatmul.f32.gmra.mxu0 %v3778
          %v3953 = vpop.f32.mrf.mxu0
          %v3954 = vadd.f32 %v3934, %v3953
          %3955 = vdwg.mxu0
          %3956 = vmatpush.msra.mxu0 %v3318
          %3957 = vmatpush.msra.mxu0 %v3314
          %3958 = vmatpush.msra.mxu0 %v3310
          %3959 = vmatpush.msra.mxu0 %v3306
          %3960 = vmatpush.msra.mxu0 %v3302
          %3961 = vmatpush.msra.mxu0 %v3298
          %3962 = vmatpush.msra.mxu0 %v3294
          %3963 = vmatpush.msra.mxu0 %v3290
          %3964 = vmatpush.msra.mxu0 %v3286
          %3965 = vmatpush.msra.mxu0 %v3282
          %3966 = vmatpush.msra.mxu0 %v3278
          %3967 = vmatpush.msra.mxu0 %v3274
          %3968 = vmatpush.msra.mxu0 %v3270
          %3969 = vmatpush.msra.mxu0 %v3266
          %3970 = vmatpush.msra.mxu0 %v3262
          %3971 = vmatpush.msra.mxu0 %v3258
          %3972 = vmatmul.f32.gmra.mxu0 %v3771
          %v3973 = vpop.f32.mrf.mxu0
          %v3974 = vadd.f32 %v3789, %v3973
          %3975 = vdwg.mxu0
          %3976 = vmatpush.msra.mxu0 %v3382
          %3977 = vmatpush.msra.mxu0 %v3378
          %3978 = vmatpush.msra.mxu0 %v3374
          %3979 = vmatpush.msra.mxu0 %v3370
          %3980 = vmatpush.msra.mxu0 %v3366
          %3981 = vmatpush.msra.mxu0 %v3362
          %3982 = vmatpush.msra.mxu0 %v3358
          %3983 = vmatpush.msra.mxu0 %v3354
          %3984 = vmatpush.msra.mxu0 %v3350
          %3985 = vmatpush.msra.mxu0 %v3346
          %3986 = vmatpush.msra.mxu0 %v3342
          %3987 = vmatpush.msra.mxu0 %v3338
          %3988 = vmatpush.msra.mxu0 %v3334
          %3989 = vmatpush.msra.mxu0 %v3330
          %3990 = vmatpush.msra.mxu0 %v3326
          %3991 = vmatpush.msra.mxu0 %v3322
          %3992 = vmatmul.f32.gmra.mxu0 %v3772
          %v3993 = vpop.f32.mrf.mxu0
          %v3994 = vadd.f32 %v3974, %v3993
          %3995 = vdwg.mxu0
          %3996 = vmatpush.msra.mxu0 %v3446
          %3997 = vmatpush.msra.mxu0 %v3442
          %3998 = vmatpush.msra.mxu0 %v3438
          %3999 = vmatpush.msra.mxu0 %v3434
          %4000 = vmatpush.msra.mxu0 %v3430
          %4001 = vmatpush.msra.mxu0 %v3426
          %4002 = vmatpush.msra.mxu0 %v3422
          %4003 = vmatpush.msra.mxu0 %v3418
          %4004 = vmatpush.msra.mxu0 %v3414
          %4005 = vmatpush.msra.mxu0 %v3410
          %4006 = vmatpush.msra.mxu0 %v3406
          %4007 = vmatpush.msra.mxu0 %v3402
          %4008 = vmatpush.msra.mxu0 %v3398
          %4009 = vmatpush.msra.mxu0 %v3394
          %4010 = vmatpush.msra.mxu0 %v3390
          %4011 = vmatpush.msra.mxu0 %v3386
          %4012 = vmatmul.f32.gmra.mxu0 %v3773
          %v4013 = vpop.f32.mrf.mxu0
          %v4014 = vadd.f32 %v3994, %v4013
          %4015 = vdwg.mxu0
          %4016 = vmatpush.msra.mxu0 %v3510
          %4017 = vmatpush.msra.mxu0 %v3506
          %4018 = vmatpush.msra.mxu0 %v3502
          %4019 = vmatpush.msra.mxu0 %v3498
          %4020 = vmatpush.msra.mxu0 %v3494
          %4021 = vmatpush.msra.mxu0 %v3490
          %4022 = vmatpush.msra.mxu0 %v3486
          %4023 = vmatpush.msra.mxu0 %v3482
          %4024 = vmatpush.msra.mxu0 %v3478
          %4025 = vmatpush.msra.mxu0 %v3474
          %4026 = vmatpush.msra.mxu0 %v3470
          %4027 = vmatpush.msra.mxu0 %v3466
          %4028 = vmatpush.msra.mxu0 %v3462
          %4029 = vmatpush.msra.mxu0 %v3458
          %4030 = vmatpush.msra.mxu0 %v3454
          %4031 = vmatpush.msra.mxu0 %v3450
          %4032 = vmatmul.f32.gmra.mxu0 %v3774
          %v4033 = vpop.f32.mrf.mxu0
          %v4034 = vadd.f32 %v4014, %v4033
          %4035 = vdwg.mxu0
          %4036 = vmatpush.msra.mxu0 %v3574
          %4037 = vmatpush.msra.mxu0 %v3570
          %4038 = vmatpush.msra.mxu0 %v3566
          %4039 = vmatpush.msra.mxu0 %v3562
          %4040 = vmatpush.msra.mxu0 %v3558
          %4041 = vmatpush.msra.mxu0 %v3554
          %4042 = vmatpush.msra.mxu0 %v3550
          %4043 = vmatpush.msra.mxu0 %v3546
          %4044 = vmatpush.msra.mxu0 %v3542
          %4045 = vmatpush.msra.mxu0 %v3538
          %4046 = vmatpush.msra.mxu0 %v3534
          %4047 = vmatpush.msra.mxu0 %v3530
          %4048 = vmatpush.msra.mxu0 %v3526
          %4049 = vmatpush.msra.mxu0 %v3522
          %4050 = vmatpush.msra.mxu0 %v3518
          %4051 = vmatpush.msra.mxu0 %v3514
          %4052 = vmatmul.f32.gmra.mxu0 %v3775
          %v4053 = vpop.f32.mrf.mxu0
          %v4054 = vadd.f32 %v4034, %v4053
          %4055 = vdwg.mxu0
          %4056 = vmatpush.msra.mxu0 %v3638
          %4057 = vmatpush.msra.mxu0 %v3634
          %4058 = vmatpush.msra.mxu0 %v3630
          %4059 = vmatpush.msra.mxu0 %v3626
          %4060 = vmatpush.msra.mxu0 %v3622
          %4061 = vmatpush.msra.mxu0 %v3618
          %4062 = vmatpush.msra.mxu0 %v3614
          %4063 = vmatpush.msra.mxu0 %v3610
          %4064 = vmatpush.msra.mxu0 %v3606
          %4065 = vmatpush.msra.mxu0 %v3602
          %4066 = vmatpush.msra.mxu0 %v3598
          %4067 = vmatpush.msra.mxu0 %v3594
          %4068 = vmatpush.msra.mxu0 %v3590
          %4069 = vmatpush.msra.mxu0 %v3586
          %4070 = vmatpush.msra.mxu0 %v3582
          %4071 = vmatpush.msra.mxu0 %v3578
          %4072 = vmatmul.f32.gmra.mxu0 %v3776
          %v4073 = vpop.f32.mrf.mxu0
          %v4074 = vadd.f32 %v4054, %v4073
          %4075 = vdwg.mxu0
          %4076 = vmatpush.msra.mxu0 %v3702
          %4077 = vmatpush.msra.mxu0 %v3698
          %4078 = vmatpush.msra.mxu0 %v3694
          %4079 = vmatpush.msra.mxu0 %v3690
          %4080 = vmatpush.msra.mxu0 %v3686
          %4081 = vmatpush.msra.mxu0 %v3682
          %4082 = vmatpush.msra.mxu0 %v3678
          %4083 = vmatpush.msra.mxu0 %v3674
          %4084 = vmatpush.msra.mxu0 %v3670
          %4085 = vmatpush.msra.mxu0 %v3666
          %4086 = vmatpush.msra.mxu0 %v3662
          %4087 = vmatpush.msra.mxu0 %v3658
          %4088 = vmatpush.msra.mxu0 %v3654
          %4089 = vmatpush.msra.mxu0 %v3650
          %4090 = vmatpush.msra.mxu0 %v3646
          %4091 = vmatpush.msra.mxu0 %v3642
          %4092 = vmatmul.f32.gmra.mxu0 %v3777
          %v4093 = vpop.f32.mrf.mxu0
          %v4094 = vadd.f32 %v4074, %v4093
          %4095 = vdwg.mxu0
          %4096 = vmatpush.msra.mxu0 %v3766
          %4097 = vmatpush.msra.mxu0 %v3762
          %4098 = vmatpush.msra.mxu0 %v3758
          %4099 = vmatpush.msra.mxu0 %v3754
          %4100 = vmatpush.msra.mxu0 %v3750
          %4101 = vmatpush.msra.mxu0 %v3746
          %4102 = vmatpush.msra.mxu0 %v3742
          %4103 = vmatpush.msra.mxu0 %v3738
          %4104 = vmatpush.msra.mxu0 %v3734
          %4105 = vmatpush.msra.mxu0 %v3730
          %4106 = vmatpush.msra.mxu0 %v3726
          %4107 = vmatpush.msra.mxu0 %v3722
          %4108 = vmatpush.msra.mxu0 %v3718
          %4109 = vmatpush.msra.mxu0 %v3714
          %4110 = vmatpush.msra.mxu0 %v3710
          %4111 = vmatpush.msra.mxu0 %v3706
          %4112 = vmatmul.f32.gmra.mxu0 %v3778
          %v4113 = vpop.f32.mrf.mxu0
          %v4114 = vadd.f32 %v4094, %v4113
          %4115 = vdwg.mxu0
          %4116 = vmatpush.msra.mxu0 %v3319
          %4117 = vmatpush.msra.mxu0 %v3315
          %4118 = vmatpush.msra.mxu0 %v3311
          %4119 = vmatpush.msra.mxu0 %v3307
          %4120 = vmatpush.msra.mxu0 %v3303
          %4121 = vmatpush.msra.mxu0 %v3299
          %4122 = vmatpush.msra.mxu0 %v3295
          %4123 = vmatpush.msra.mxu0 %v3291
          %4124 = vmatpush.msra.mxu0 %v3287
          %4125 = vmatpush.msra.mxu0 %v3283
          %4126 = vmatpush.msra.mxu0 %v3279
          %4127 = vmatpush.msra.mxu0 %v3275
          %4128 = vmatpush.msra.mxu0 %v3271
          %4129 = vmatpush.msra.mxu0 %v3267
          %4130 = vmatpush.msra.mxu0 %v3263
          %4131 = vmatpush.msra.mxu0 %v3259
          %4132 = vmatmul.f32.gmra.mxu0 %v3771
          %v4133 = vpop.f32.mrf.mxu0
          %v4134 = vadd.f32 %v3790, %v4133
          %4135 = vdwg.mxu0
          %4136 = vmatpush.msra.mxu0 %v3383
          %4137 = vmatpush.msra.mxu0 %v3379
          %4138 = vmatpush.msra.mxu0 %v3375
          %4139 = vmatpush.msra.mxu0 %v3371
          %4140 = vmatpush.msra.mxu0 %v3367
          %4141 = vmatpush.msra.mxu0 %v3363
          %4142 = vmatpush.msra.mxu0 %v3359
          %4143 = vmatpush.msra.mxu0 %v3355
          %4144 = vmatpush.msra.mxu0 %v3351
          %4145 = vmatpush.msra.mxu0 %v3347
          %4146 = vmatpush.msra.mxu0 %v3343
          %4147 = vmatpush.msra.mxu0 %v3339
          %4148 = vmatpush.msra.mxu0 %v3335
          %4149 = vmatpush.msra.mxu0 %v3331
          %4150 = vmatpush.msra.mxu0 %v3327
          %4151 = vmatpush.msra.mxu0 %v3323
          %4152 = vmatmul.f32.gmra.mxu0 %v3772
          %v4153 = vpop.f32.mrf.mxu0
          %v4154 = vadd.f32 %v4134, %v4153
          %4155 = vdwg.mxu0
          %4156 = vmatpush.msra.mxu0 %v3447
          %4157 = vmatpush.msra.mxu0 %v3443
          %4158 = vmatpush.msra.mxu0 %v3439
          %4159 = vmatpush.msra.mxu0 %v3435
          %4160 = vmatpush.msra.mxu0 %v3431
          %4161 = vmatpush.msra.mxu0 %v3427
          %4162 = vmatpush.msra.mxu0 %v3423
          %4163 = vmatpush.msra.mxu0 %v3419
          %4164 = vmatpush.msra.mxu0 %v3415
          %4165 = vmatpush.msra.mxu0 %v3411
          %4166 = vmatpush.msra.mxu0 %v3407
          %4167 = vmatpush.msra.mxu0 %v3403
          %4168 = vmatpush.msra.mxu0 %v3399
          %4169 = vmatpush.msra.mxu0 %v3395
          %4170 = vmatpush.msra.mxu0 %v3391
          %4171 = vmatpush.msra.mxu0 %v3387
          %4172 = vmatmul.f32.gmra.mxu0 %v3773
          %v4173 = vpop.f32.mrf.mxu0
          %v4174 = vadd.f32 %v4154, %v4173
          %4175 = vdwg.mxu0
          %4176 = vmatpush.msra.mxu0 %v3511
          %4177 = vmatpush.msra.mxu0 %v3507
          %4178 = vmatpush.msra.mxu0 %v3503
          %4179 = vmatpush.msra.mxu0 %v3499
          %4180 = vmatpush.msra.mxu0 %v3495
          %4181 = vmatpush.msra.mxu0 %v3491
          %4182 = vmatpush.msra.mxu0 %v3487
          %4183 = vmatpush.msra.mxu0 %v3483
          %4184 = vmatpush.msra.mxu0 %v3479
          %4185 = vmatpush.msra.mxu0 %v3475
          %4186 = vmatpush.msra.mxu0 %v3471
          %4187 = vmatpush.msra.mxu0 %v3467
          %4188 = vmatpush.msra.mxu0 %v3463
          %4189 = vmatpush.msra.mxu0 %v3459
          %4190 = vmatpush.msra.mxu0 %v3455
          %4191 = vmatpush.msra.mxu0 %v3451
          %4192 = vmatmul.f32.gmra.mxu0 %v3774
          %v4193 = vpop.f32.mrf.mxu0
          %v4194 = vadd.f32 %v4174, %v4193
          %4195 = vdwg.mxu0
          %4196 = vmatpush.msra.mxu0 %v3575
          %4197 = vmatpush.msra.mxu0 %v3571
          %4198 = vmatpush.msra.mxu0 %v3567
          %4199 = vmatpush.msra.mxu0 %v3563
          %4200 = vmatpush.msra.mxu0 %v3559
          %4201 = vmatpush.msra.mxu0 %v3555
          %4202 = vmatpush.msra.mxu0 %v3551
          %4203 = vmatpush.msra.mxu0 %v3547
          %4204 = vmatpush.msra.mxu0 %v3543
          %4205 = vmatpush.msra.mxu0 %v3539
          %4206 = vmatpush.msra.mxu0 %v3535
          %4207 = vmatpush.msra.mxu0 %v3531
          %4208 = vmatpush.msra.mxu0 %v3527
          %4209 = vmatpush.msra.mxu0 %v3523
          %4210 = vmatpush.msra.mxu0 %v3519
          %4211 = vmatpush.msra.mxu0 %v3515
          %4212 = vmatmul.f32.gmra.mxu0 %v3775
          %v4213 = vpop.f32.mrf.mxu0
          %v4214 = vadd.f32 %v4194, %v4213
          %4215 = vdwg.mxu0
          %4216 = vmatpush.msra.mxu0 %v3639
          %4217 = vmatpush.msra.mxu0 %v3635
          %4218 = vmatpush.msra.mxu0 %v3631
          %4219 = vmatpush.msra.mxu0 %v3627
          %4220 = vmatpush.msra.mxu0 %v3623
          %4221 = vmatpush.msra.mxu0 %v3619
          %4222 = vmatpush.msra.mxu0 %v3615
          %4223 = vmatpush.msra.mxu0 %v3611
          %4224 = vmatpush.msra.mxu0 %v3607
          %4225 = vmatpush.msra.mxu0 %v3603
          %4226 = vmatpush.msra.mxu0 %v3599
          %4227 = vmatpush.msra.mxu0 %v3595
          %4228 = vmatpush.msra.mxu0 %v3591
          %4229 = vmatpush.msra.mxu0 %v3587
          %4230 = vmatpush.msra.mxu0 %v3583
          %4231 = vmatpush.msra.mxu0 %v3579
          %4232 = vmatmul.f32.gmra.mxu0 %v3776
          %v4233 = vpop.f32.mrf.mxu0
          %v4234 = vadd.f32 %v4214, %v4233
          %4235 = vdwg.mxu0
          %4236 = vmatpush.msra.mxu0 %v3703
          %4237 = vmatpush.msra.mxu0 %v3699
          %4238 = vmatpush.msra.mxu0 %v3695
          %4239 = vmatpush.msra.mxu0 %v3691
          %4240 = vmatpush.msra.mxu0 %v3687
          %4241 = vmatpush.msra.mxu0 %v3683
          %4242 = vmatpush.msra.mxu0 %v3679
          %4243 = vmatpush.msra.mxu0 %v3675
          %4244 = vmatpush.msra.mxu0 %v3671
          %4245 = vmatpush.msra.mxu0 %v3667
          %4246 = vmatpush.msra.mxu0 %v3663
          %4247 = vmatpush.msra.mxu0 %v3659
          %4248 = vmatpush.msra.mxu0 %v3655
          %4249 = vmatpush.msra.mxu0 %v3651
          %4250 = vmatpush.msra.mxu0 %v3647
          %4251 = vmatpush.msra.mxu0 %v3643
          %4252 = vmatmul.f32.gmra.mxu0 %v3777
          %v4253 = vpop.f32.mrf.mxu0
          %v4254 = vadd.f32 %v4234, %v4253
          %4255 = vdwg.mxu0
          %4256 = vmatpush.msra.mxu0 %v3767
          %4257 = vmatpush.msra.mxu0 %v3763
          %4258 = vmatpush.msra.mxu0 %v3759
          %4259 = vmatpush.msra.mxu0 %v3755
          %4260 = vmatpush.msra.mxu0 %v3751
          %4261 = vmatpush.msra.mxu0 %v3747
          %4262 = vmatpush.msra.mxu0 %v3743
          %4263 = vmatpush.msra.mxu0 %v3739
          %4264 = vmatpush.msra.mxu0 %v3735
          %4265 = vmatpush.msra.mxu0 %v3731
          %4266 = vmatpush.msra.mxu0 %v3727
          %4267 = vmatpush.msra.mxu0 %v3723
          %4268 = vmatpush.msra.mxu0 %v3719
          %4269 = vmatpush.msra.mxu0 %v3715
          %4270 = vmatpush.msra.mxu0 %v3711
          %4271 = vmatpush.msra.mxu0 %v3707
          %4272 = vmatmul.f32.gmra.mxu0 %v3778
          %v4273 = vpop.f32.mrf.mxu0
          %v4274 = vadd.f32 %v4254, %v4273
          %4275 = vdwg.mxu0
          %4276 = vmatpush.msra.mxu0 %v3320
          %4277 = vmatpush.msra.mxu0 %v3316
          %4278 = vmatpush.msra.mxu0 %v3312
          %4279 = vmatpush.msra.mxu0 %v3308
          %4280 = vmatpush.msra.mxu0 %v3304
          %4281 = vmatpush.msra.mxu0 %v3300
          %4282 = vmatpush.msra.mxu0 %v3296
          %4283 = vmatpush.msra.mxu0 %v3292
          %4284 = vmatpush.msra.mxu0 %v3288
          %4285 = vmatpush.msra.mxu0 %v3284
          %4286 = vmatpush.msra.mxu0 %v3280
          %4287 = vmatpush.msra.mxu0 %v3276
          %4288 = vmatpush.msra.mxu0 %v3272
          %4289 = vmatpush.msra.mxu0 %v3268
          %4290 = vmatpush.msra.mxu0 %v3264
          %4291 = vmatpush.msra.mxu0 %v3260
          %4292 = vmatmul.f32.gmra.mxu0 %v3771
          %v4293 = vpop.f32.mrf.mxu0
          %v4294 = vadd.f32 %v3791, %v4293
          %4295 = vdwg.mxu0
          %4296 = vmatpush.msra.mxu0 %v3384
          %4297 = vmatpush.msra.mxu0 %v3380
          %4298 = vmatpush.msra.mxu0 %v3376
          %4299 = vmatpush.msra.mxu0 %v3372
          %4300 = vmatpush.msra.mxu0 %v3368
          %4301 = vmatpush.msra.mxu0 %v3364
          %4302 = vmatpush.msra.mxu0 %v3360
          %4303 = vmatpush.msra.mxu0 %v3356
          %4304 = vmatpush.msra.mxu0 %v3352
          %4305 = vmatpush.msra.mxu0 %v3348
          %4306 = vmatpush.msra.mxu0 %v3344
          %4307 = vmatpush.msra.mxu0 %v3340
          %4308 = vmatpush.msra.mxu0 %v3336
          %4309 = vmatpush.msra.mxu0 %v3332
          %4310 = vmatpush.msra.mxu0 %v3328
          %4311 = vmatpush.msra.mxu0 %v3324
          %4312 = vmatmul.f32.gmra.mxu0 %v3772
          %v4313 = vpop.f32.mrf.mxu0
          %v4314 = vadd.f32 %v4294, %v4313
          %4315 = vdwg.mxu0
          %4316 = vmatpush.msra.mxu0 %v3448
          %4317 = vmatpush.msra.mxu0 %v3444
          %4318 = vmatpush.msra.mxu0 %v3440
          %4319 = vmatpush.msra.mxu0 %v3436
          %4320 = vmatpush.msra.mxu0 %v3432
          %4321 = vmatpush.msra.mxu0 %v3428
          %4322 = vmatpush.msra.mxu0 %v3424
          %4323 = vmatpush.msra.mxu0 %v3420
          %4324 = vmatpush.msra.mxu0 %v3416
          %4325 = vmatpush.msra.mxu0 %v3412
          %4326 = vmatpush.msra.mxu0 %v3408
          %4327 = vmatpush.msra.mxu0 %v3404
          %4328 = vmatpush.msra.mxu0 %v3400
          %4329 = vmatpush.msra.mxu0 %v3396
          %4330 = vmatpush.msra.mxu0 %v3392
          %4331 = vmatpush.msra.mxu0 %v3388
          %4332 = vmatmul.f32.gmra.mxu0 %v3773
          %v4333 = vpop.f32.mrf.mxu0
          %v4334 = vadd.f32 %v4314, %v4333
          %4335 = vdwg.mxu0
          %4336 = vmatpush.msra.mxu0 %v3512
          %4337 = vmatpush.msra.mxu0 %v3508
          %4338 = vmatpush.msra.mxu0 %v3504
          %4339 = vmatpush.msra.mxu0 %v3500
          %4340 = vmatpush.msra.mxu0 %v3496
          %4341 = vmatpush.msra.mxu0 %v3492
          %4342 = vmatpush.msra.mxu0 %v3488
          %4343 = vmatpush.msra.mxu0 %v3484
          %4344 = vmatpush.msra.mxu0 %v3480
          %4345 = vmatpush.msra.mxu0 %v3476
          %4346 = vmatpush.msra.mxu0 %v3472
          %4347 = vmatpush.msra.mxu0 %v3468
          %4348 = vmatpush.msra.mxu0 %v3464
          %4349 = vmatpush.msra.mxu0 %v3460
          %4350 = vmatpush.msra.mxu0 %v3456
          %4351 = vmatpush.msra.mxu0 %v3452
          %4352 = vmatmul.f32.gmra.mxu0 %v3774
          %v4353 = vpop.f32.mrf.mxu0
          %v4354 = vadd.f32 %v4334, %v4353
          %4355 = vdwg.mxu0
          %4356 = vmatpush.msra.mxu0 %v3576
          %4357 = vmatpush.msra.mxu0 %v3572
          %4358 = vmatpush.msra.mxu0 %v3568
          %4359 = vmatpush.msra.mxu0 %v3564
          %4360 = vmatpush.msra.mxu0 %v3560
          %4361 = vmatpush.msra.mxu0 %v3556
          %4362 = vmatpush.msra.mxu0 %v3552
          %4363 = vmatpush.msra.mxu0 %v3548
          %4364 = vmatpush.msra.mxu0 %v3544
          %4365 = vmatpush.msra.mxu0 %v3540
          %4366 = vmatpush.msra.mxu0 %v3536
          %4367 = vmatpush.msra.mxu0 %v3532
          %4368 = vmatpush.msra.mxu0 %v3528
          %4369 = vmatpush.msra.mxu0 %v3524
          %4370 = vmatpush.msra.mxu0 %v3520
          %4371 = vmatpush.msra.mxu0 %v3516
          %4372 = vmatmul.f32.gmra.mxu0 %v3775
          %v4373 = vpop.f32.mrf.mxu0
          %v4374 = vadd.f32 %v4354, %v4373
          %4375 = vdwg.mxu0
          %4376 = vmatpush.msra.mxu0 %v3640
          %4377 = vmatpush.msra.mxu0 %v3636
          %4378 = vmatpush.msra.mxu0 %v3632
          %4379 = vmatpush.msra.mxu0 %v3628
          %4380 = vmatpush.msra.mxu0 %v3624
          %4381 = vmatpush.msra.mxu0 %v3620
          %4382 = vmatpush.msra.mxu0 %v3616
          %4383 = vmatpush.msra.mxu0 %v3612
          %4384 = vmatpush.msra.mxu0 %v3608
          %4385 = vmatpush.msra.mxu0 %v3604
          %4386 = vmatpush.msra.mxu0 %v3600
          %4387 = vmatpush.msra.mxu0 %v3596
          %4388 = vmatpush.msra.mxu0 %v3592
          %4389 = vmatpush.msra.mxu0 %v3588
          %4390 = vmatpush.msra.mxu0 %v3584
          %4391 = vmatpush.msra.mxu0 %v3580
          %4392 = vmatmul.f32.gmra.mxu0 %v3776
          %v4393 = vpop.f32.mrf.mxu0
          %v4394 = vadd.f32 %v4374, %v4393
          %4395 = vdwg.mxu0
          %4396 = vmatpush.msra.mxu0 %v3704
          %4397 = vmatpush.msra.mxu0 %v3700
          %4398 = vmatpush.msra.mxu0 %v3696
          %4399 = vmatpush.msra.mxu0 %v3692
          %4400 = vmatpush.msra.mxu0 %v3688
          %4401 = vmatpush.msra.mxu0 %v3684
          %4402 = vmatpush.msra.mxu0 %v3680
          %4403 = vmatpush.msra.mxu0 %v3676
          %4404 = vmatpush.msra.mxu0 %v3672
          %4405 = vmatpush.msra.mxu0 %v3668
          %4406 = vmatpush.msra.mxu0 %v3664
          %4407 = vmatpush.msra.mxu0 %v3660
          %4408 = vmatpush.msra.mxu0 %v3656
          %4409 = vmatpush.msra.mxu0 %v3652
          %4410 = vmatpush.msra.mxu0 %v3648
          %4411 = vmatpush.msra.mxu0 %v3644
          %4412 = vmatmul.f32.gmra.mxu0 %v3777
          %v4413 = vpop.f32.mrf.mxu0
          %v4414 = vadd.f32 %v4394, %v4413
          %4415 = vdwg.mxu0
          %4416 = vmatpush.msra.mxu0 %v3768
          %4417 = vmatpush.msra.mxu0 %v3764
          %4418 = vmatpush.msra.mxu0 %v3760
          %4419 = vmatpush.msra.mxu0 %v3756
          %4420 = vmatpush.msra.mxu0 %v3752
          %4421 = vmatpush.msra.mxu0 %v3748
          %4422 = vmatpush.msra.mxu0 %v3744
          %4423 = vmatpush.msra.mxu0 %v3740
          %4424 = vmatpush.msra.mxu0 %v3736
          %4425 = vmatpush.msra.mxu0 %v3732
          %4426 = vmatpush.msra.mxu0 %v3728
          %4427 = vmatpush.msra.mxu0 %v3724
          %4428 = vmatpush.msra.mxu0 %v3720
          %4429 = vmatpush.msra.mxu0 %v3716
          %4430 = vmatpush.msra.mxu0 %v3712
          %4431 = vmatpush.msra.mxu0 %v3708
          %4432 = vmatmul.f32.gmra.mxu0 %v3778
          %v4433 = vpop.f32.mrf.mxu0
          %v4434 = vadd.f32 %v4414, %v4433
          %4435 = vdwg.mxu0
          %v4436 = vmax.f32 %v3954, 0.0
          %v4437 = vmax.f32 %v4114, 0.0
          %v4438 = vmax.f32 %v4274, 0.0
          %v4439 = vmax.f32 %v4434, 0.0
          %v4440 = vld [vmem:[#allocation4] sm:$0xff]
          %v4441 = vld [vmem:[#allocation4 + $0x8] sm:$0xff]
          %v4442 = vld [vmem:[#allocation4 + $0x10] sm:$0xff]
          %v4443 = vld [vmem:[#allocation4 + $0x18] sm:$0xff]
          %v4444 = vld [vmem:[#allocation4 + $0x20] sm:$0xff]
          %v4445 = vld [vmem:[#allocation4 + $0x28] sm:$0xff]
          %v4446 = vld [vmem:[#allocation4 + $0x30] sm:$0xff]
          %v4447 = vld [vmem:[#allocation4 + $0x38] sm:$0xff]
          %v4448 = vld [vmem:[#allocation4 + $0x40] sm:$0xff]
          %v4449 = vld [vmem:[#allocation4 + $0x48] sm:$0xff]
          %v4450 = vld [vmem:[#allocation4 + $0x50] sm:$0xff]
          %v4451 = vld [vmem:[#allocation4 + $0x58] sm:$0xff]
          %v4452 = vld [vmem:[#allocation4 + $0x60] sm:$0xff]
          %v4453 = vld [vmem:[#allocation4 + $0x68] sm:$0xff]
          %v4454 = vld [vmem:[#allocation4 + $0x70] sm:$0xff]
          %v4455 = vld [vmem:[#allocation4 + $0x78] sm:$0xff]
          %v4456 = vld [vmem:[#allocation4 + $0x80] sm:$0xff]
          %v4457 = vld [vmem:[#allocation4 + $0x88] sm:$0xff]
          %v4458 = vld [vmem:[#allocation4 + $0x90] sm:$0xff]
          %v4459 = vld [vmem:[#allocation4 + $0x98] sm:$0xff]
          %v4460 = vld [vmem:[#allocation4 + $0xa0] sm:$0xff]
          %v4461 = vld [vmem:[#allocation4 + $0xa8] sm:$0xff]
          %v4462 = vld [vmem:[#allocation4 + $0xb0] sm:$0xff]
          %v4463 = vld [vmem:[#allocation4 + $0xb8] sm:$0xff]
          %v4464 = vld [vmem:[#allocation4 + $0xc0] sm:$0xff]
          %v4465 = vld [vmem:[#allocation4 + $0xc8] sm:$0xff]
          %v4466 = vld [vmem:[#allocation4 + $0xd0] sm:$0xff]
          %v4467 = vld [vmem:[#allocation4 + $0xd8] sm:$0xff]
          %v4468 = vld [vmem:[#allocation4 + $0xe0] sm:$0xff]
          %v4469 = vld [vmem:[#allocation4 + $0xe8] sm:$0xff]
          %v4470 = vld [vmem:[#allocation4 + $0xf0] sm:$0xff]
          %v4471 = vld [vmem:[#allocation4 + $0xf8] sm:$0xff]
          %v4472 = vld [vmem:[#allocation4 + $0x100] sm:$0xff]
          %v4473 = vld [vmem:[#allocation4 + $0x108] sm:$0xff]
          %v4474 = vld [vmem:[#allocation4 + $0x110] sm:$0xff]
          %v4475 = vld [vmem:[#allocation4 + $0x118] sm:$0xff]
          %v4476 = vld [vmem:[#allocation4 + $0x120] sm:$0xff]
          %v4477 = vld [vmem:[#allocation4 + $0x128] sm:$0xff]
          %v4478 = vld [vmem:[#allocation4 + $0x130] sm:$0xff]
          %v4479 = vld [vmem:[#allocation4 + $0x138] sm:$0xff]
          %v4480 = vld [vmem:[#allocation4 + $0x140] sm:$0xff]
          %v4481 = vld [vmem:[#allocation4 + $0x148] sm:$0xff]
          %v4482 = vld [vmem:[#allocation4 + $0x150] sm:$0xff]
          %v4483 = vld [vmem:[#allocation4 + $0x158] sm:$0xff]
          %v4484 = vld [vmem:[#allocation4 + $0x160] sm:$0xff]
          %v4485 = vld [vmem:[#allocation4 + $0x168] sm:$0xff]
          %v4486 = vld [vmem:[#allocation4 + $0x170] sm:$0xff]
          %v4487 = vld [vmem:[#allocation4 + $0x178] sm:$0xff]
          %v4488 = vld [vmem:[#allocation4 + $0x180] sm:$0xff]
          %v4489 = vld [vmem:[#allocation4 + $0x188] sm:$0xff]
          %v4490 = vld [vmem:[#allocation4 + $0x190] sm:$0xff]
          %v4491 = vld [vmem:[#allocation4 + $0x198] sm:$0xff]
          %v4492 = vld [vmem:[#allocation4 + $0x1a0] sm:$0xff]
          %v4493 = vld [vmem:[#allocation4 + $0x1a8] sm:$0xff]
          %v4494 = vld [vmem:[#allocation4 + $0x1b0] sm:$0xff]
          %v4495 = vld [vmem:[#allocation4 + $0x1b8] sm:$0xff]
          %v4496 = vld [vmem:[#allocation4 + $0x1c0] sm:$0xff]
          %v4497 = vld [vmem:[#allocation4 + $0x1c8] sm:$0xff]
          %v4498 = vld [vmem:[#allocation4 + $0x1d0] sm:$0xff]
          %v4499 = vld [vmem:[#allocation4 + $0x1d8] sm:$0xff]
          %v4500 = vld [vmem:[#allocation4 + $0x1e0] sm:$0xff]
          %v4501 = vld [vmem:[#allocation4 + $0x1e8] sm:$0xff]
          %v4502 = vld [vmem:[#allocation4 + $0x1f0] sm:$0xff]
          %v4503 = vld [vmem:[#allocation4 + $0x1f8] sm:$0xff]
          %v4504 = vld [vmem:[#allocation4 + $0x200] sm:$0xff]
          %v4505 = vld [vmem:[#allocation4 + $0x208] sm:$0xff]
          %v4506 = vld [vmem:[#allocation4 + $0x210] sm:$0xff]
          %v4507 = vld [vmem:[#allocation4 + $0x218] sm:$0xff]
          %v4508 = vld [vmem:[#allocation4 + $0x220] sm:$0xff]
          %v4509 = vld [vmem:[#allocation4 + $0x228] sm:$0xff]
          %v4510 = vld [vmem:[#allocation4 + $0x230] sm:$0xff]
          %v4511 = vld [vmem:[#allocation4 + $0x238] sm:$0xff]
          %v4512 = vld [vmem:[#allocation4 + $0x240] sm:$0xff]
          %v4513 = vld [vmem:[#allocation4 + $0x248] sm:$0xff]
          %v4514 = vld [vmem:[#allocation4 + $0x250] sm:$0xff]
          %v4515 = vld [vmem:[#allocation4 + $0x258] sm:$0xff]
          %v4516 = vld [vmem:[#allocation4 + $0x260] sm:$0xff]
          %v4517 = vld [vmem:[#allocation4 + $0x268] sm:$0xff]
          %v4518 = vld [vmem:[#allocation4 + $0x270] sm:$0xff]
          %v4519 = vld [vmem:[#allocation4 + $0x278] sm:$0xff]
          %v4520 = vld [vmem:[#allocation4 + $0x280] sm:$0xff]
          %v4521 = vld [vmem:[#allocation4 + $0x288] sm:$0xff]
          %v4522 = vld [vmem:[#allocation4 + $0x290] sm:$0xff]
          %v4523 = vld [vmem:[#allocation4 + $0x298] sm:$0xff]
          %v4524 = vld [vmem:[#allocation4 + $0x2a0] sm:$0xff]
          %v4525 = vld [vmem:[#allocation4 + $0x2a8] sm:$0xff]
          %v4526 = vld [vmem:[#allocation4 + $0x2b0] sm:$0xff]
          %v4527 = vld [vmem:[#allocation4 + $0x2b8] sm:$0xff]
          %v4528 = vld [vmem:[#allocation4 + $0x2c0] sm:$0xff]
          %v4529 = vld [vmem:[#allocation4 + $0x2c8] sm:$0xff]
          %v4530 = vld [vmem:[#allocation4 + $0x2d0] sm:$0xff]
          %v4531 = vld [vmem:[#allocation4 + $0x2d8] sm:$0xff]
          %v4532 = vld [vmem:[#allocation4 + $0x2e0] sm:$0xff]
          %v4533 = vld [vmem:[#allocation4 + $0x2e8] sm:$0xff]
          %v4534 = vld [vmem:[#allocation4 + $0x2f0] sm:$0xff]
          %v4535 = vld [vmem:[#allocation4 + $0x2f8] sm:$0xff]
          %v4536 = vld [vmem:[#allocation4 + $0x300] sm:$0xff]
          %v4537 = vld [vmem:[#allocation4 + $0x308] sm:$0xff]
          %v4538 = vld [vmem:[#allocation4 + $0x310] sm:$0xff]
          %v4539 = vld [vmem:[#allocation4 + $0x318] sm:$0xff]
          %v4540 = vld [vmem:[#allocation4 + $0x320] sm:$0xff]
          %v4541 = vld [vmem:[#allocation4 + $0x328] sm:$0xff]
          %v4542 = vld [vmem:[#allocation4 + $0x330] sm:$0xff]
          %v4543 = vld [vmem:[#allocation4 + $0x338] sm:$0xff]
          %v4544 = vld [vmem:[#allocation4 + $0x340] sm:$0xff]
          %v4545 = vld [vmem:[#allocation4 + $0x348] sm:$0xff]
          %v4546 = vld [vmem:[#allocation4 + $0x350] sm:$0xff]
          %v4547 = vld [vmem:[#allocation4 + $0x358] sm:$0xff]
          %v4548 = vld [vmem:[#allocation4 + $0x360] sm:$0xff]
          %v4549 = vld [vmem:[#allocation4 + $0x368] sm:$0xff]
          %v4550 = vld [vmem:[#allocation4 + $0x370] sm:$0xff]
          %v4551 = vld [vmem:[#allocation4 + $0x378] sm:$0xff]
          %v4552 = vld [vmem:[#allocation4 + $0x380] sm:$0xff]
          %v4553 = vld [vmem:[#allocation4 + $0x388] sm:$0xff]
          %v4554 = vld [vmem:[#allocation4 + $0x390] sm:$0xff]
          %v4555 = vld [vmem:[#allocation4 + $0x398] sm:$0xff]
          %v4556 = vld [vmem:[#allocation4 + $0x3a0] sm:$0xff]
          %v4557 = vld [vmem:[#allocation4 + $0x3a8] sm:$0xff]
          %v4558 = vld [vmem:[#allocation4 + $0x3b0] sm:$0xff]
          %v4559 = vld [vmem:[#allocation4 + $0x3b8] sm:$0xff]
          %v4560 = vld [vmem:[#allocation4 + $0x3c0] sm:$0xff]
          %v4561 = vld [vmem:[#allocation4 + $0x3c8] sm:$0xff]
          %v4562 = vld [vmem:[#allocation4 + $0x3d0] sm:$0xff]
          %v4563 = vld [vmem:[#allocation4 + $0x3d8] sm:$0xff]
          %v4564 = vld [vmem:[#allocation4 + $0x3e0] sm:$0xff]
          %v4565 = vld [vmem:[#allocation4 + $0x3e8] sm:$0xff]
          %v4566 = vld [vmem:[#allocation4 + $0x3f0] sm:$0xff]
          %v4567 = vld [vmem:[#allocation4 + $0x3f8] sm:$0xff]
          %v4568 = vld [vmem:[#allocation18] sm:$0x3]
          %v4570 = vperm.slane %v4568, 0
          %v4571 = vperm.slane %v4568, 1
          %4574 = vmatpush.msra.mxu0 %v4470
          %4575 = vmatpush.msra.mxu0 %v4468
          %4576 = vmatpush.msra.mxu0 %v4466
          %4577 = vmatpush.msra.mxu0 %v4464
          %4578 = vmatpush.msra.mxu0 %v4462
          %4579 = vmatpush.msra.mxu0 %v4460
          %4580 = vmatpush.msra.mxu0 %v4458
          %4581 = vmatpush.msra.mxu0 %v4456
          %4582 = vmatpush.msra.mxu0 %v4454
          %4583 = vmatpush.msra.mxu0 %v4452
          %4584 = vmatpush.msra.mxu0 %v4450
          %4585 = vmatpush.msra.mxu0 %v4448
          %4586 = vmatpush.msra.mxu0 %v4446
          %4587 = vmatpush.msra.mxu0 %v4444
          %4588 = vmatpush.msra.mxu0 %v4442
          %4589 = vmatpush.msra.mxu0 %v4440
          %4590 = vmatmul.f32.gmra.mxu0 %v4436
          %v4591 = vpop.f32.mrf.mxu0
          %v4592 = vadd.f32 %v4570, %v4591
          %4593 = vdwg.mxu0
          %4594 = vmatpush.msra.mxu0 %v4502
          %4595 = vmatpush.msra.mxu0 %v4500
          %4596 = vmatpush.msra.mxu0 %v4498
          %4597 = vmatpush.msra.mxu0 %v4496
          %4598 = vmatpush.msra.mxu0 %v4494
          %4599 = vmatpush.msra.mxu0 %v4492
          %4600 = vmatpush.msra.mxu0 %v4490
          %4601 = vmatpush.msra.mxu0 %v4488
          %4602 = vmatpush.msra.mxu0 %v4486
          %4603 = vmatpush.msra.mxu0 %v4484
          %4604 = vmatpush.msra.mxu0 %v4482
          %4605 = vmatpush.msra.mxu0 %v4480
          %4606 = vmatpush.msra.mxu0 %v4478
          %4607 = vmatpush.msra.mxu0 %v4476
          %4608 = vmatpush.msra.mxu0 %v4474
          %4609 = vmatpush.msra.mxu0 %v4472
          %4610 = vmatmul.f32.gmra.mxu0 %v4437
          %v4611 = vpop.f32.mrf.mxu0
          %v4612 = vadd.f32 %v4592, %v4611
          %4613 = vdwg.mxu0
          %4614 = vmatpush.msra.mxu0 %v4534
          %4615 = vmatpush.msra.mxu0 %v4532
          %4616 = vmatpush.msra.mxu0 %v4530
          %4617 = vmatpush.msra.mxu0 %v4528
          %4618 = vmatpush.msra.mxu0 %v4526
          %4619 = vmatpush.msra.mxu0 %v4524
          %4620 = vmatpush.msra.mxu0 %v4522
          %4621 = vmatpush.msra.mxu0 %v4520
          %4622 = vmatpush.msra.mxu0 %v4518
          %4623 = vmatpush.msra.mxu0 %v4516
          %4624 = vmatpush.msra.mxu0 %v4514
          %4625 = vmatpush.msra.mxu0 %v4512
          %4626 = vmatpush.msra.mxu0 %v4510
          %4627 = vmatpush.msra.mxu0 %v4508
          %4628 = vmatpush.msra.mxu0 %v4506
          %4629 = vmatpush.msra.mxu0 %v4504
          %4630 = vmatmul.f32.gmra.mxu0 %v4438
          %v4631 = vpop.f32.mrf.mxu0
          %v4632 = vadd.f32 %v4612, %v4631
          %4633 = vdwg.mxu0
          %4634 = vmatpush.msra.mxu0 %v4566
          %4635 = vmatpush.msra.mxu0 %v4564
          %4636 = vmatpush.msra.mxu0 %v4562
          %4637 = vmatpush.msra.mxu0 %v4560
          %4638 = vmatpush.msra.mxu0 %v4558
          %4639 = vmatpush.msra.mxu0 %v4556
          %4640 = vmatpush.msra.mxu0 %v4554
          %4641 = vmatpush.msra.mxu0 %v4552
          %4642 = vmatpush.msra.mxu0 %v4550
          %4643 = vmatpush.msra.mxu0 %v4548
          %4644 = vmatpush.msra.mxu0 %v4546
          %4645 = vmatpush.msra.mxu0 %v4544
          %4646 = vmatpush.msra.mxu0 %v4542
          %4647 = vmatpush.msra.mxu0 %v4540
          %4648 = vmatpush.msra.mxu0 %v4538
          %4649 = vmatpush.msra.mxu0 %v4536
          %4650 = vmatmul.f32.gmra.mxu0 %v4439
          %v4651 = vpop.f32.mrf.mxu0
          %v4652 = vadd.f32 %v4632, %v4651
          %4653 = vdwg.mxu0
          %4654 = vmatpush.msra.mxu0 %v4471
          %4655 = vmatpush.msra.mxu0 %v4469
          %4656 = vmatpush.msra.mxu0 %v4467
          %4657 = vmatpush.msra.mxu0 %v4465
          %4658 = vmatpush.msra.mxu0 %v4463
          %4659 = vmatpush.msra.mxu0 %v4461
          %4660 = vmatpush.msra.mxu0 %v4459
          %4661 = vmatpush.msra.mxu0 %v4457
          %4662 = vmatpush.msra.mxu0 %v4455
          %4663 = vmatpush.msra.mxu0 %v4453
          %4664 = vmatpush.msra.mxu0 %v4451
          %4665 = vmatpush.msra.mxu0 %v4449
          %4666 = vmatpush.msra.mxu0 %v4447
          %4667 = vmatpush.msra.mxu0 %v4445
          %4668 = vmatpush.msra.mxu0 %v4443
          %4669 = vmatpush.msra.mxu0 %v4441
          %4670 = vmatmul.f32.gmra.mxu0 %v4436
          %v4671 = vpop.f32.mrf.mxu0
          %v4672 = vadd.f32 %v4571, %v4671
          %4673 = vdwg.mxu0
          %4674 = vmatpush.msra.mxu0 %v4503
          %4675 = vmatpush.msra.mxu0 %v4501
          %4676 = vmatpush.msra.mxu0 %v4499
          %4677 = vmatpush.msra.mxu0 %v4497
          %4678 = vmatpush.msra.mxu0 %v4495
          %4679 = vmatpush.msra.mxu0 %v4493
          %4680 = vmatpush.msra.mxu0 %v4491
          %4681 = vmatpush.msra.mxu0 %v4489
          %4682 = vmatpush.msra.mxu0 %v4487
          %4683 = vmatpush.msra.mxu0 %v4485
          %4684 = vmatpush.msra.mxu0 %v4483
          %4685 = vmatpush.msra.mxu0 %v4481
          %4686 = vmatpush.msra.mxu0 %v4479
          %4687 = vmatpush.msra.mxu0 %v4477
          %4688 = vmatpush.msra.mxu0 %v4475
          %4689 = vmatpush.msra.mxu0 %v4473
          %4690 = vmatmul.f32.gmra.mxu0 %v4437
          %v4691 = vpop.f32.mrf.mxu0
          %v4692 = vadd.f32 %v4672, %v4691
          %4693 = vdwg.mxu0
          %4694 = vmatpush.msra.mxu0 %v4535
          %4695 = vmatpush.msra.mxu0 %v4533
          %4696 = vmatpush.msra.mxu0 %v4531
          %4697 = vmatpush.msra.mxu0 %v4529
          %4698 = vmatpush.msra.mxu0 %v4527
          %4699 = vmatpush.msra.mxu0 %v4525
          %4700 = vmatpush.msra.mxu0 %v4523
          %4701 = vmatpush.msra.mxu0 %v4521
          %4702 = vmatpush.msra.mxu0 %v4519
          %4703 = vmatpush.msra.mxu0 %v4517
          %4704 = vmatpush.msra.mxu0 %v4515
          %4705 = vmatpush.msra.mxu0 %v4513
          %4706 = vmatpush.msra.mxu0 %v4511
          %4707 = vmatpush.msra.mxu0 %v4509
          %4708 = vmatpush.msra.mxu0 %v4507
          %4709 = vmatpush.msra.mxu0 %v4505
          %4710 = vmatmul.f32.gmra.mxu0 %v4438
          %v4711 = vpop.f32.mrf.mxu0
          %v4712 = vadd.f32 %v4692, %v4711
          %4713 = vdwg.mxu0
          %4714 = vmatpush.msra.mxu0 %v4567
          %4715 = vmatpush.msra.mxu0 %v4565
          %4716 = vmatpush.msra.mxu0 %v4563
          %4717 = vmatpush.msra.mxu0 %v4561
          %4718 = vmatpush.msra.mxu0 %v4559
          %4719 = vmatpush.msra.mxu0 %v4557
          %4720 = vmatpush.msra.mxu0 %v4555
          %4721 = vmatpush.msra.mxu0 %v4553
          %4722 = vmatpush.msra.mxu0 %v4551
          %4723 = vmatpush.msra.mxu0 %v4549
          %4724 = vmatpush.msra.mxu0 %v4547
          %4725 = vmatpush.msra.mxu0 %v4545
          %4726 = vmatpush.msra.mxu0 %v4543
          %4727 = vmatpush.msra.mxu0 %v4541
          %4728 = vmatpush.msra.mxu0 %v4539
          %4729 = vmatpush.msra.mxu0 %v4537
          %4730 = vmatmul.f32.gmra.mxu0 %v4439
          %v4731 = vpop.f32.mrf.mxu0
          %v4732 = vadd.f32 %v4712, %v4731
          %4733 = vdwg.mxu0
          %v4734 = vmax.f32 %v4652, 0.0
          %v4735 = vmax.f32 %v4732, 0.0
          %v4736 = vld [vmem:[%s11] sm:$0xff]
          %v4737 = vld [vmem:[%s11 + $0x8] sm:$0xff]
          %v4738 = vld [vmem:[%s11 + $0x10] sm:$0xff]
          %v4739 = vld [vmem:[%s11 + $0x18] sm:$0xff]
          %v4740 = vld [vmem:[%s11 + $0x20] sm:$0xff]
          %v4741 = vld [vmem:[%s11 + $0x28] sm:$0xff]
          %v4742 = vld [vmem:[%s11 + $0x30] sm:$0xff]
          %v4743 = vld [vmem:[%s11 + $0x38] sm:$0xff]
          %v4744 = vld [vmem:[%s11 + $0x40] sm:$0xff]
          %v4745 = vld [vmem:[%s11 + $0x48] sm:$0xff]
          %v4746 = vld [vmem:[%s11 + $0x50] sm:$0xff]
          %v4747 = vld [vmem:[%s11 + $0x58] sm:$0xff]
          %v4748 = vld [vmem:[%s11 + $0x60] sm:$0xff]
          %v4749 = vld [vmem:[%s11 + $0x68] sm:$0xff]
          %v4750 = vld [vmem:[%s11 + $0x70] sm:$0xff]
          %v4751 = vld [vmem:[%s11 + $0x78] sm:$0xff]
          %v4752 = vld [vmem:[%s11 + $0x80] sm:$0xff]
          %v4753 = vld [vmem:[%s11 + $0x88] sm:$0xff]
          %v4754 = vld [vmem:[%s11 + $0x90] sm:$0xff]
          %v4755 = vld [vmem:[%s11 + $0x98] sm:$0xff]
          %v4756 = vld [vmem:[%s11 + $0xa0] sm:$0xff]
          %v4757 = vld [vmem:[%s11 + $0xa8] sm:$0xff]
          %v4758 = vld [vmem:[%s11 + $0xb0] sm:$0xff]
          %v4759 = vld [vmem:[%s11 + $0xb8] sm:$0xff]
          %v4760 = vld [vmem:[%s11 + $0xc0] sm:$0xff]
          %v4761 = vld [vmem:[%s11 + $0xc8] sm:$0xff]
          %v4762 = vld [vmem:[%s11 + $0xd0] sm:$0xff]
          %v4763 = vld [vmem:[%s11 + $0xd8] sm:$0xff]
          %v4764 = vld [vmem:[%s11 + $0xe0] sm:$0xff]
          %v4765 = vld [vmem:[%s11 + $0xe8] sm:$0xff]
          %v4766 = vld [vmem:[%s11 + $0xf0] sm:$0xff]
          %v4767 = vld [vmem:[%s11 + $0xf8] sm:$0xff]
          %v4768 = vld [vmem:[#allocation20] sm:$0x1]
          %4769 = vmatpush.msra.mxu0 %v4751
          %4770 = vmatpush.msra.mxu0 %v4750
          %4771 = vmatpush.msra.mxu0 %v4749
          %4772 = vmatpush.msra.mxu0 %v4748
          %4773 = vmatpush.msra.mxu0 %v4747
          %4774 = vmatpush.msra.mxu0 %v4746
          %4775 = vmatpush.msra.mxu0 %v4745
          %4776 = vmatpush.msra.mxu0 %v4744
          %4777 = vmatpush.msra.mxu0 %v4743
          %4778 = vmatpush.msra.mxu0 %v4742
          %4779 = vmatpush.msra.mxu0 %v4741
          %4780 = vmatpush.msra.mxu0 %v4740
          %4781 = vmatpush.msra.mxu0 %v4739
          %4782 = vmatpush.msra.mxu0 %v4738
          %4783 = vmatpush.msra.mxu0 %v4737
          %4784 = vmatpush.msra.mxu0 %v4736
          %4785 = vmatmul.f32.gmra.mxu0 %v4734
          %v4786 = vpop.f32.mrf.mxu0
          %v4787 = vadd.f32 %v4768, %v4786
          %4788 = vdwg.mxu0
          %4789 = vmatpush.msra.mxu0 %v4767
          %4790 = vmatpush.msra.mxu0 %v4766
          %4791 = vmatpush.msra.mxu0 %v4765
          %4792 = vmatpush.msra.mxu0 %v4764
          %4793 = vmatpush.msra.mxu0 %v4763
          %4794 = vmatpush.msra.mxu0 %v4762
          %4795 = vmatpush.msra.mxu0 %v4761
          %4796 = vmatpush.msra.mxu0 %v4760
          %4797 = vmatpush.msra.mxu0 %v4759
          %4798 = vmatpush.msra.mxu0 %v4758
          %4799 = vmatpush.msra.mxu0 %v4757
          %4800 = vmatpush.msra.mxu0 %v4756
          %4801 = vmatpush.msra.mxu0 %v4755
          %4802 = vmatpush.msra.mxu0 %v4754
          %4803 = vmatpush.msra.mxu0 %v4753
          %4804 = vmatpush.msra.mxu0 %v4752
          %4805 = vmatmul.f32.gmra.mxu0 %v4735
          %v4806 = vpop.f32.mrf.mxu0
          %v4807 = vadd.f32 %v4787, %v4806
          %4808 = vdwg.mxu0
          %v4809 = vld [vmem:[#allocation21] sm:$0x1]
          %v4810 = vadd.f32 %v4807, %v4809
          %vm4811 = vcmask 65536
          %4812 = vst.msk [vmem:[%s580] sm:$0x1] %vm4811, %v4810
        $region124: #{tpu_custom_call.1} parent=67 // pred_fallthru
          _
        %s4813 = sand.u32 %s313, 1
        %s4814 = scalar_lea.sflag [#allocation8], %s4813
        %s4815 = sand.u32 %s313, 1
        %s4816 = scalar_lea.vmem [#allocation23], %s4815
        // Predicated region
        $region125: #{tpu_custom_call.1} parent=67 // pred_check
          %p4817 = pneg %p323
        $region126: #{tpu_custom_call.1} parent=67 // pred_check_branch
          %4819 = sbr.rel (%p4817) target = $region128
        $region127: #{tpu_custom_call.1} parent=67 // pred_region
          %4821 = vsyncadd %s4814, 0
          %s4822 = scalar_lea.hbm %s14, %s38
          %s4824 = sshll.u32 %s4816, 4
          %s4825 = int_to_ptr.vmem [resolvable:$true] %s4824
          %s4826 = sshll.u32 %s4822, 4
          %s4827 = int_to_ptr.hbm [resolvable:$true] %s4826
          %4829 = dma.vmem_to_hbm [thread:$0]  %s4825, 16, %s4827, %s4814
        $region128: #{tpu_custom_call.1} parent=67 // pred_fallthru
          _
      $region68: #{tpu_custom_call.1} parent=5 // pred_fallthru
        _
      %p4830 = scmp.le.s32.totalorder 2, %s29
      // Predicated region
      $region129: #{tpu_custom_call.1} parent=5 // pred_check
        %p4831 = pneg %p4830
      $region130: #{tpu_custom_call.1} parent=5 // pred_check_branch
        %4833 = sbr.rel (%p4831) target = $region132
      $region131: #{tpu_custom_call.1} parent=5 // pred_region
        %s4834 = ssub.s32 %s29, 2
        // Predicated region
        $region133: #{tpu_custom_call.1} parent=131 // pred_check
          %p4835 = pneg %p329
        $region134: #{tpu_custom_call.1} parent=131 // pred_check_branch
          %4837 = sbr.rel (%p4835) target = $region136
        $region135: #{tpu_custom_call.1} parent=131 // pred_region
          %s4838 = sand.u32 %s314, 1
          %s4839 = scalar_lea.sflag [#allocation8], %s4838
          %s4840 = sand.u32 %s314, 1
          %s4841 = scalar_lea.vmem [#allocation23], %s4840
          %4843 = dma.done %s4839, 16
        $region136: #{tpu_custom_call.1} parent=131 // pred_fallthru
          _
      $region132: #{tpu_custom_call.1} parent=5 // pred_fallthru
        _
    $region6: #{tpu_custom_call.1} parent=1 // loop_footer
      %s33 = sadd.s32 1, %s29
    $region7: #{tpu_custom_call.1} parent=1 // loop_footer_branch
      %28 = sbr.rel target = $region3
    $region8: #{tpu_custom_call.1} parent=1 // loop_exit
      _
    %4844 = vsyncpa [#allocation7], 1
    %s4845 = scalar_lea.sflag [#allocation7], 1
    %4846 = vsyncpa %s4845, 1
    %4847 = vsyncpa [#allocation10], 1
    %4848 = vsyncpa [#allocation13], 1
    %4849 = vsyncpa [#allocation16], 1
    %4850 = vsyncpa [#allocation19], 1
    %4851 = vsyncpa [#allocation22], 1
    %4852 = vsyncpa [#allocation8], 1
    %s4853 = scalar_lea.sflag [#allocation8], 1
    %4854 = vsyncpa %s4853, 1
  %4855 = vsyncmov [#allocation5]
  %s4856 = vpop.sfrf %4855
  %p4857 = scmp.eq.s32.totalorder %s4856, 0
  %p4858 = pneg %p4857
  %4860 = shalt.err (%p4858)
  %s4861 = scalar_lea.sflag [#allocation5], 1
  %4862 = vsyncmov %s4861
  %s4863 = vpop.sfrf %4862
  %p4864 = scmp.eq.s32.totalorder %s4863, 0
  %p4865 = pneg %p4864
  %4867 = shalt.err (%p4865)

</llo_original>
